<compile_context>
chip_gen: v5e
topology: v5e:2x2
jax: 0.10.0
libtpu: 0.0.40
codegen_flags: <defaults>
</compile_context>

<pallas_src>
import functools
import math

import numpy as np
import jax
import jax.numpy as jnp
from jax import lax
from jax.experimental import pallas as pl
from jax.experimental.pallas import tpu as pltpu


def _sigmoid(x):
    # exact identity 1/(1+exp(-x)) == 0.5*(tanh(x/2)+1); tanh uses the EUP slot.
    return 0.5 * (jnp.tanh(0.5 * x) + 1.0)


def _softplus(x):
    return jnp.maximum(x, 0.0) + jnp.log(1.0 + jnp.exp(-jnp.abs(x)))


# ----------------------------------------------------------------------------
# Pallas kernel: one grid step == one batch tile; both LSTM layers + projection.
# ----------------------------------------------------------------------------
def _range_param_kernel(x_ref, wih0_ref, wih1_ref, b0_ref, b1_ref, whh_ref,
                        wpf_ref, wpb_ref, bp_ref, out_ref,
                        pref_ref, preb_ref, hf_ref, hb_ref,
                        *, n_layers, hd, unroll):
    # x_ref    : (S, Bt, H)          time-major activations
    # wih0_ref : (H, 8*hd)           layer-0 input->gates, [fwd 4hd | bwd 4hd]
    # wih1_ref : (2, hd, 8*hd)       layer-1 input->gates split by input rows
    # b0/b1    : (1, 8*hd)           b_ih + b_hh, [fwd | bwd]
    # whh_ref  : (L, 2, hd, 4*hd)    hidden->gates per layer / direction
    # wpf/wpb  : (1, hd)             projection weight split fwd / bwd
    # bp_ref   : (1, 1)              projection bias
    # out_ref  : (S, Bt)
    # scratch  : pref/preb (S, Bt, 4hd), hf/hb (S, Bt, hd)
    S, Bt, H = x_ref.shape
    G = 4 * hd

    for l in range(n_layers):
        # ---- input -> gates for BOTH directions in one fused MXU matmul ----
        if l == 0:
            pre = jnp.dot(x_ref[...].reshape(S * Bt, H), wih0_ref[...],
                          preferred_element_type=jnp.float32) + b0_ref[...]
        else:
            pre = (jnp.dot(hf_ref[...].reshape(S * Bt, hd), wih1_ref[0],
                           preferred_element_type=jnp.float32)
                   + jnp.dot(hb_ref[...].reshape(S * Bt, hd), wih1_ref[1],
                             preferred_element_type=jnp.float32)
                   + b1_ref[...])
        # direction-major scratch: per-step reads become clean plane loads.
        pref_ref[...] = pre[:, :G].reshape(S, Bt, G)
        preb_ref[...] = pre[:, G:].reshape(S, Bt, G)

        whh_f = whh_ref[l, 0]                     # (hd, 4*hd)
        whh_b = whh_ref[l, 1]

        def cell(g, c):
            i_g = _sigmoid(g[:, 0 * hd:1 * hd])
            f_g = _sigmoid(g[:, 1 * hd:2 * hd])
            c_g = jnp.tanh(g[:, 2 * hd:3 * hd])
            o_g = _sigmoid(g[:, 3 * hd:4 * hd])
            c = f_g * c + i_g * c_g
            h = o_g * jnp.tanh(c)
            return h, c

        # Both directions advance in the SAME time loop (S steps, not 2S).
        def step(t, carry, whh_f=whh_f, whh_b=whh_b):
            h_f, c_f, h_b, c_b = carry
            tb = (S - 1) - t
            g_f = pref_ref[t] + jnp.dot(h_f, whh_f,
                                        preferred_element_type=jnp.float32)
            g_b = preb_ref[tb] + jnp.dot(h_b, whh_b,
                                         preferred_element_type=jnp.float32)
            h_f, c_f = cell(g_f, c_f)
            h_b, c_b = cell(g_b, c_b)
            hf_ref[t] = h_f
            hb_ref[tb] = h_b
            return (h_f, c_f, h_b, c_b)

        z = jnp.zeros((Bt, hd), jnp.float32)
        lax.fori_loop(0, S, step, (z, z, z, z), unroll=unroll)

    # ---- Linear(H, 1) as multiply + lane reduction, then Softplus -----------
    yf = jnp.sum(hf_ref[...] * wpf_ref[...].reshape(1, 1, hd), axis=-1)  # (S, Bt)
    yb = jnp.sum(hb_ref[...] * wpb_ref[...].reshape(1, 1, hd), axis=-1)
    out_ref[...] = _softplus(yf + yb + bp_ref[...])                      # (S, Bt)


# ----------------------------------------------------------------------------
# Parameter packing: PyTorch LSTM layout -> kernel layout (transposed, fused).
# ----------------------------------------------------------------------------
def pack_lstm_params(params, H):
    hd = H // 2
    f32 = jnp.float32

    def layer_dir(l, suffix):
        wih = params[f"weight_ih_l{l}{suffix}"].astype(f32)       # (4hd, In)
        whh = params[f"weight_hh_l{l}{suffix}"].astype(f32)       # (4hd, hd)
        b = (params[f"bias_ih_l{l}{suffix}"]
             + params[f"bias_hh_l{l}{suffix}"]).astype(f32)       # (4hd,)
        return wih.T, whh.T, b                                    # transposed

    # layer 0: input is the full H-wide encoder output
    wf, rf, bf = layer_dir(0, "")
    wb, rb, bb = layer_dir(0, "_reverse")
    wih0 = jnp.concatenate([wf, wb], axis=-1)                     # (H, 8hd)
    b0 = jnp.concatenate([bf, bb])[None, :]                       # (1, 8hd)
    whh_l0 = jnp.stack([rf, rb])                                  # (2, hd, 4hd)

    # layer 1: input is [h_fwd | h_bwd]; split by input rows so the kernel
    # never concatenates hf / hb.
    wf, rf, bf = layer_dir(1, "")
    wb, rb, bb = layer_dir(1, "_reverse")
    wih1_full = jnp.concatenate([wf, wb], axis=-1)                # (2hd, 8hd)
    wih1 = jnp.stack([wih1_full[:hd], wih1_full[hd:]])            # (2, hd, 8hd)
    b1 = jnp.concatenate([bf, bb])[None, :]                       # (1, 8hd)
    whh_l1 = jnp.stack([rf, rb])                                  # (2, hd, 4hd)

    whh = jnp.stack([whh_l0, whh_l1])                             # (2, 2, hd, 4hd)

    wp = params["proj_weight"].astype(f32)                        # (1, H)
    wpf, wpb = wp[:, :hd], wp[:, hd:]                             # (1, hd) each
    bp = params["proj_bias"].astype(f32).reshape(1, 1)            # (1, 1)
    return wih0, wih1, b0, b1, whh, wpf, wpb, bp


# ----------------------------------------------------------------------------
# Wrapper: layout plumbing in plain JAX, compute inside the kernel.
# ----------------------------------------------------------------------------
def range_parameter_predictor_forward(encoder_output, output_len, mask, params, config):
    del output_len    # only used by the training-time packing path (see TODO above)
    H = config["transformer"]["encoder_hidden"]
    hd = H // 2
    n_layers = 2
    B, S, _ = encoder_output.shape

    wih0, wih1, b0, b1, whh, wpf, wpb, bp = pack_lstm_params(params, H)

    # Pad batch to a multiple of 8 so every (Bt, .) op uses full sublanes.
    B_pad = max(8, ((B + 7) // 8) * 8)
    x = encoder_output.astype(jnp.float32)
    if B_pad != B:
        x = jnp.pad(x, ((0, B_pad - B), (0, 0), (0, 0)))
    x_t = jnp.transpose(x, (1, 0, 2))                             # (S, B_pad, H)

    # ---- batch-tile selection ----------------------------------------------
    # One full-batch tile maximizes MXU row utilization and keeps the serial
    # grid short (v5e/v6e single TC).  Halve Bt only when the per-tile VMEM
    # working set would not fit comfortably (v7x has 64 MiB/TC).
    # TODO(synk): on v7x, forcing >= 2 tiles would feed both TensorCores.
    def vmem_estimate(bt):
        act = 4 * S * bt * (2 * H            # double-buffered input block
                            + 2              # output block
                            + 10 * hd)       # pre_f/pre_b/hf/hb scratch
        wts = 2 * 4 * (wih0.size + wih1.size + whh.size
                       + b0.size + b1.size + wpf.size + wpb.size + bp.size)
        return act + wts

    budget = 20 * 1024 * 1024
    Bt = B_pad
    while Bt > 8 and Bt % 16 == 0 and vmem_estimate(Bt) > budget:
        Bt //= 2
    n_tiles = B_pad // Bt

    # Unroll the time loop: fully for short sequences, partially otherwise.
    if S <= 32:
        unroll = True
    else:
        unroll = next(u for u in (8, 4, 2, 1) if S % u == 0)

    kernel = functools.partial(_range_param_kernel,
                               n_layers=n_layers, hd=hd, unroll=unroll)

    def _const(arr):
        nd = arr.ndim
        return pl.BlockSpec(arr.shape, lambda i, _nd=nd: (0,) * _nd)

    out = pl.pallas_call(
        kernel,
        out_shape=jax.ShapeDtypeStruct((n_tiles, S, Bt), jnp.float32),
        grid=(n_tiles,),
        in_specs=[
            pl.BlockSpec((S, Bt, H), lambda i: (0, i, 0)),        # activations
            _const(wih0), _const(wih1), _const(b0), _const(b1),
            _const(whh), _const(wpf), _const(wpb), _const(bp),
        ],
        out_specs=pl.BlockSpec((None, S, Bt), lambda i: (i, 0, 0)),
        scratch_shapes=[
            pltpu.VMEM((S, Bt, 4 * hd), jnp.float32),   # forward pre-gates
            pltpu.VMEM((S, Bt, 4 * hd), jnp.float32),   # backward pre-gates
            pltpu.VMEM((S, Bt, hd), jnp.float32),       # forward hidden states
            pltpu.VMEM((S, Bt, hd), jnp.float32),       # backward hidden states
        ],
        compiler_params=pltpu.CompilerParams(
            dimension_semantics=("parallel",),
            vmem_limit_bytes=40 * 1024 * 1024),
    )(x_t, wih0, wih1, b0, b1, whh, wpf, wpb, bp)

    # (n_tiles, S, Bt) -> (B, S); masked_fill fused into the transpose copy.
    out_bs = out.transpose(0, 2, 1).reshape(B_pad, S)[:B]
    return jnp.where(mask, jnp.float32(1e-8), out_bs)


# ----------------------------------------------------------------------------
# Pure-JAX reference (same math, PyTorch weight layout) for correctness check.
# ----------------------------------------------------------------------------
def range_parameter_predictor_reference(encoder_output, output_len, mask, params, config):
    del output_len
    H = config["transformer"]["encoder_hidden"]
    hd = H // 2
    n_layers = 2
    x = encoder_output.astype(jnp.float32)
    B, S, _ = x.shape

    for l in range(n_layers):
        outs = []
        for suffix in ("", "_reverse"):
            wih = params[f"weight_ih_l{l}{suffix}"]
            whh = params[f"weight_hh_l{l}{suffix}"]
            bias = params[f"bias_ih_l{l}{suffix}"] + params[f"bias_hh_l{l}{suffix}"]

            def cell(carry, xt, wih=wih, whh=whh, bias=bias):
                h, c = carry
                g = xt @ wih.T + h @ whh.T + bias
                i_g, f_g, c_g, o_g = jnp.split(g, 4, axis=-1)
                i_g = jax.nn.sigmoid(i_g)
                f_g = jax.nn.sigmoid(f_g)
                c_g = jnp.tanh(c_g)
                o_g = jax.nn.sigmoid(o_g)
                c = f_g * c + i_g * c_g
                h = o_g * jnp.tanh(c)
                return (h, c), h

            xs = jnp.swapaxes(x, 0, 1)                     # (S, B, In)
            if suffix == "_reverse":
                xs = xs[::-1]
            h0 = jnp.zeros((B, hd), jnp.float32)
            c0 = jnp.zeros((B, hd), jnp.float32)
            _, hs = lax.scan(cell, (h0, c0), xs)           # (S, B, hd)
            if suffix == "_reverse":
                hs = hs[::-1]
            outs.append(jnp.swapaxes(hs, 0, 1))            # (B, S, hd)
        x = jnp.concatenate(outs, axis=-1)                 # (B, S, H)

    y = x @ params["proj_weight"].T + params["proj_bias"]  # (B, S, 1)
    y = jax.nn.softplus(y)[:, :, 0]
    return jnp.where(mask, 1e-8, y)


# ----------------------------------------------------------------------------
# Deterministic parameters (PyTorch nn.LSTM / nn.Linear layout) + demo.
# ----------------------------------------------------------------------------
def make_params(key, config):
    H = config["transformer"]["encoder_hidden"]
    hd = H // 2
    n_layers = 2
    s = 1.0 / math.sqrt(hd)
    params = {}
    for l in range(n_layers):
        in_dim = H   # layer 0: H ; layer 1: 2*hd == H (bidirectional)
        for suffix in ("", "_reverse"):
            key, k1, k2, k3, k4 = jax.random.split(key, 5)
            params[f"weight_ih_l{l}{suffix}"] = jax.random.uniform(
                k1, (4 * hd, in_dim), jnp.float32, -s, s)
            params[f"weight_hh_l{l}{suffix}"] = jax.random.uniform(
                k2, (4 * hd, hd), jnp.float32, -s, s)
            params[f"bias_ih_l{l}{suffix}"] = jax.random.uniform(
                k3, (4 * hd,), jnp.float32, -s, s)
            params[f"bias_hh_l{l}{suffix}"] = jax.random.uniform(
                k4, (4 * hd,), jnp.float32, -s, s)
    key, kw, kb = jax.random.split(key, 3)
    params["proj_weight"] = jax.random.uniform(kw, (1, H), jnp.float32, -0.1, 0.1)
    params["proj_bias"] = jax.random.uniform(kb, (1,), jnp.float32, -0.1, 0.1)
    return params


if __name__ == "__main__":
    config = {"transformer": {"encoder_hidden": 32}}
    B, S = 2, 8
    H = config["transformer"]["encoder_hidden"]

    root = jax.random.PRNGKey(0)
    k_x, k_p = jax.random.split(root, 2)

    encoder_output = jax.random.normal(k_x, (B, S, H), jnp.float32)
    output_len = jnp.array([S, S - 3], dtype=jnp.int32)
    mask = jnp.arange(S)[None, :] >= output_len[:, None]    # True = padded

    params = make_params(k_p, config)

    out = range_parameter_predictor_forward(encoder_output, output_len, mask, params, config)
    out = jax.block_until_ready(out)

    ref = range_parameter_predictor_reference(encoder_output, output_len, mask, params, config)
    np.testing.assert_allclose(np.asarray(out), np.asarray(ref), rtol=5e-3, atol=5e-3)

    print("KERNEL_OK")
</pallas_src>

<mosaic_0001>
module attributes {stable_mosaic.version = 11 : i64} {
  func.func @_range_param_kernel(%arg0: i32, %arg1: memref<8x8x32xf32, #tpu.memory_space<vmem>>, %arg2: memref<32x128xf32, #tpu.memory_space<vmem>>, %arg3: memref<2x16x128xf32, #tpu.memory_space<vmem>>, %arg4: memref<1x128xf32, #tpu.memory_space<vmem>>, %arg5: memref<1x128xf32, #tpu.memory_space<vmem>>, %arg6: memref<2x2x16x64xf32, #tpu.memory_space<vmem>>, %arg7: memref<1x16xf32, #tpu.memory_space<vmem>>, %arg8: memref<1x16xf32, #tpu.memory_space<vmem>>, %arg9: memref<1x1xf32, #tpu.memory_space<vmem>>, %arg10: memref<1x8x8xf32, #tpu.memory_space<vmem>>, %arg11: memref<8x8x64xf32, #tpu.memory_space<vmem>>, %arg12: memref<8x8x64xf32, #tpu.memory_space<vmem>>, %arg13: memref<8x8x16xf32, #tpu.memory_space<vmem>>, %arg14: memref<8x8x16xf32, #tpu.memory_space<vmem>>) attributes {dimension_semantics = [#tpu.dimension_semantics<parallel>], iteration_bounds = array<i64: 1>, scalar_prefetch = 0 : i64, scratch_operands = 4 : i64, tpu.core_type = #tpu.core_type<tc>, window_params = [{transform_indices = @transform_0, window_bounds = array<i64: 8, 8, 32>}, {pipeline_mode = #tpu.pipeline_mode<synchronous>, transform_indices = @transform_1, window_bounds = array<i64: 32, 128>}, {pipeline_mode = #tpu.pipeline_mode<synchronous>, transform_indices = @transform_2, window_bounds = array<i64: 2, 16, 128>}, {pipeline_mode = #tpu.pipeline_mode<synchronous>, transform_indices = @transform_3, window_bounds = array<i64: 1, 128>}, {pipeline_mode = #tpu.pipeline_mode<synchronous>, transform_indices = @transform_4, window_bounds = array<i64: 1, 128>}, {pipeline_mode = #tpu.pipeline_mode<synchronous>, transform_indices = @transform_5, window_bounds = array<i64: 2, 2, 16, 64>}, {pipeline_mode = #tpu.pipeline_mode<synchronous>, transform_indices = @transform_6, window_bounds = array<i64: 1, 16>}, {pipeline_mode = #tpu.pipeline_mode<synchronous>, transform_indices = @transform_7, window_bounds = array<i64: 1, 16>}, {pipeline_mode = #tpu.pipeline_mode<synchronous>, transform_indices = @transform_8, window_bounds = array<i64: 1, 1>}, {transform_indices = @transform_9, window_bounds = array<i64: 1, 8, 8>}]} {
    %c0 = arith.constant 0 : index
    %c0_0 = arith.constant 0 : index
    %c0_1 = arith.constant 0 : index
    %0 = vector.load %arg1[%c0, %c0_0, %c0_1] : memref<8x8x32xf32, #tpu.memory_space<vmem>>, vector<8x8x32xf32>
    %1 = vector.shape_cast %0 : vector<8x8x32xf32> to vector<64x32xf32>
    %c0_2 = arith.constant 0 : index
    %c0_3 = arith.constant 0 : index
    %2 = vector.load %arg2[%c0_2, %c0_3] : memref<32x128xf32, #tpu.memory_space<vmem>>, vector<32x128xf32>
    %cst = arith.constant dense<0.000000e+00> : vector<64x128xf32>
    %3 = tpu.matmul %1, %2, %cst {dimension_numbers = #tpu.dot_dimension_numbers<[1], [0], [0], [1], [0, 0, 1, 1], [], []>} : vector<64x32xf32>, vector<32x128xf32>, vector<64x128xf32> -> vector<64x128xf32>
    %c0_4 = arith.constant 0 : index
    %c0_5 = arith.constant 0 : index
    %4 = vector.load %arg4[%c0_4, %c0_5] : memref<1x128xf32, #tpu.memory_space<vmem>>, vector<1x128xf32>
    %5 = vector.broadcast %4 : vector<1x128xf32> to vector<64x128xf32>
    %6 = arith.addf %3, %5 : vector<64x128xf32>
    %7 = vector.extract_strided_slice %6 {offsets = [0, 0], sizes = [64, 64], strides = [1, 1]} : vector<64x128xf32> to vector<64x64xf32>
    %8 = vector.shape_cast %7 : vector<64x64xf32> to vector<8x8x64xf32>
    %c0_6 = arith.constant 0 : index
    %c0_7 = arith.constant 0 : index
    %c0_8 = arith.constant 0 : index
    %9 = vector.load %arg11[%c0_6, %c0_7, %c0_8] : memref<8x8x64xf32, #tpu.memory_space<vmem>>, vector<8x8x64xf32>
    tpu.vector_store %arg11[%c0_6, %c0_7, %c0_8], %8 {strides = array<i32>} : memref<8x8x64xf32, #tpu.memory_space<vmem>>, vector<8x8x64xf32>,
    %10 = vector.extract_strided_slice %6 {offsets = [0, 64], sizes = [64, 64], strides = [1, 1]} : vector<64x128xf32> to vector<64x64xf32>
    %11 = vector.shape_cast %10 : vector<64x64xf32> to vector<8x8x64xf32>
    %c0_9 = arith.constant 0 : index
    %c0_10 = arith.constant 0 : index
    %c0_11 = arith.constant 0 : index
    %12 = vector.load %arg12[%c0_9, %c0_10, %c0_11] : memref<8x8x64xf32, #tpu.memory_space<vmem>>, vector<8x8x64xf32>
    tpu.vector_store %arg12[%c0_9, %c0_10, %c0_11], %11 {strides = array<i32>} : memref<8x8x64xf32, #tpu.memory_space<vmem>>, vector<8x8x64xf32>,
    %c0_12 = arith.constant 0 : index
    %c0_13 = arith.constant 0 : index
    %c0_14 = arith.constant 0 : index
    %c0_15 = arith.constant 0 : index
    %13 = vector.load %arg6[%c0_12, %c0_13, %c0_14, %c0_15] : memref<2x2x16x64xf32, #tpu.memory_space<vmem>>, vector<1x1x16x64xf32>
    %14 = vector.shape_cast %13 : vector<1x1x16x64xf32> to vector<16x64xf32>
    %c0_16 = arith.constant 0 : index
    %c1 = arith.constant 1 : index
    %c0_17 = arith.constant 0 : index
    %c0_18 = arith.constant 0 : index
    %15 = vector.load %arg6[%c0_16, %c1, %c0_17, %c0_18] : memref<2x2x16x64xf32, #tpu.memory_space<vmem>>, vector<1x1x16x64xf32>
    %16 = vector.shape_cast %15 : vector<1x1x16x64xf32> to vector<16x64xf32>
    %cst_19 = arith.constant 0.000000e+00 : f32
    %17 = vector.broadcast %cst_19 : f32 to vector<8x16xf32>
    %c0_i32 = arith.constant 0 : i32
    %c7_i32 = arith.constant 7 : i32
    %18 = arith.subi %c7_i32, %c0_i32 : i32
    %19 = arith.index_cast %c0_i32 : i32 to index
    %c0_20 = arith.constant 0 : index
    %c0_21 = arith.constant 0 : index
    %20 = vector.load %arg11[%19, %c0_20, %c0_21] : memref<8x8x64xf32, #tpu.memory_space<vmem>>, vector<1x8x64xf32>
    %21 = vector.shape_cast %20 : vector<1x8x64xf32> to vector<8x64xf32>
    %cst_22 = arith.constant dense<0.000000e+00> : vector<8x64xf32>
    %22 = tpu.matmul %17, %14, %cst_22 {dimension_numbers = #tpu.dot_dimension_numbers<[1], [0], [0], [1], [0, 0, 1, 1], [], []>} : vector<8x16xf32>, vector<16x64xf32>, vector<8x64xf32> -> vector<8x64xf32>
    %23 = arith.addf %21, %22 : vector<8x64xf32>
    %24 = arith.index_cast %18 : i32 to index
    %c0_23 = arith.constant 0 : index
    %c0_24 = arith.constant 0 : index
    %25 = vector.load %arg12[%24, %c0_23, %c0_24] : memref<8x8x64xf32, #tpu.memory_space<vmem>>, vector<1x8x64xf32>
    %26 = vector.shape_cast %25 : vector<1x8x64xf32> to vector<8x64xf32>
    %cst_25 = arith.constant dense<0.000000e+00> : vector<8x64xf32>
    %27 = tpu.matmul %17, %16, %cst_25 {dimension_numbers = #tpu.dot_dimension_numbers<[1], [0], [0], [1], [0, 0, 1, 1], [], []>} : vector<8x16xf32>, vector<16x64xf32>, vector<8x64xf32> -> vector<8x64xf32>
    %28 = arith.addf %26, %27 : vector<8x64xf32>
    %29 = vector.extract_strided_slice %23 {offsets = [0, 0], sizes = [8, 16], strides = [1, 1]} : vector<8x64xf32> to vector<8x16xf32>
    %cst_26 = arith.constant 5.000000e-01 : f32
    %30 = vector.broadcast %cst_26 : f32 to vector<8x16xf32>
    %31 = arith.mulf %30, %29 : vector<8x16xf32>
    %32 = math.tanh %31 : vector<8x16xf32>
    %cst_27 = arith.constant 1.000000e+00 : f32
    %33 = vector.broadcast %cst_27 : f32 to vector<8x16xf32>
    %34 = arith.addf %32, %33 : vector<8x16xf32>
    %cst_28 = arith.constant 5.000000e-01 : f32
    %35 = vector.broadcast %cst_28 : f32 to vector<8x16xf32>
    %36 = arith.mulf %35, %34 : vector<8x16xf32>
    %37 = vector.extract_strided_slice %23 {offsets = [0, 16], sizes = [8, 16], strides = [1, 1]} : vector<8x64xf32> to vector<8x16xf32>
    %cst_29 = arith.constant 5.000000e-01 : f32
    %38 = vector.broadcast %cst_29 : f32 to vector<8x16xf32>
    %39 = arith.mulf %38, %37 : vector<8x16xf32>
    %40 = math.tanh %39 : vector<8x16xf32>
    %cst_30 = arith.constant 1.000000e+00 : f32
    %41 = vector.broadcast %cst_30 : f32 to vector<8x16xf32>
    %42 = arith.addf %40, %41 : vector<8x16xf32>
    %cst_31 = arith.constant 5.000000e-01 : f32
    %43 = vector.broadcast %cst_31 : f32 to vector<8x16xf32>
    %44 = arith.mulf %43, %42 : vector<8x16xf32>
    %45 = vector.extract_strided_slice %23 {offsets = [0, 32], sizes = [8, 16], strides = [1, 1]} : vector<8x64xf32> to vector<8x16xf32>
    %46 = math.tanh %45 : vector<8x16xf32>
    %47 = vector.extract_strided_slice %23 {offsets = [0, 48], sizes = [8, 16], strides = [1, 1]} : vector<8x64xf32> to vector<8x16xf32>
    %cst_32 = arith.constant 5.000000e-01 : f32
    %48 = vector.broadcast %cst_32 : f32 to vector<8x16xf32>
    %49 = arith.mulf %48, %47 : vector<8x16xf32>
    %50 = math.tanh %49 : vector<8x16xf32>
    %cst_33 = arith.constant 1.000000e+00 : f32
    %51 = vector.broadcast %cst_33 : f32 to vector<8x16xf32>
    %52 = arith.addf %50, %51 : vector<8x16xf32>
    %cst_34 = arith.constant 5.000000e-01 : f32
    %53 = vector.broadcast %cst_34 : f32 to vector<8x16xf32>
    %54 = arith.mulf %53, %52 : vector<8x16xf32>
    %55 = arith.mulf %44, %17 : vector<8x16xf32>
    %56 = arith.mulf %36, %46 : vector<8x16xf32>
    %57 = arith.addf %55, %56 : vector<8x16xf32>
    %58 = math.tanh %57 : vector<8x16xf32>
    %59 = arith.mulf %54, %58 : vector<8x16xf32>
    %60 = vector.extract_strided_slice %28 {offsets = [0, 0], sizes = [8, 16], strides = [1, 1]} : vector<8x64xf32> to vector<8x16xf32>
    %cst_35 = arith.constant 5.000000e-01 : f32
    %61 = vector.broadcast %cst_35 : f32 to vector<8x16xf32>
    %62 = arith.mulf %61, %60 : vector<8x16xf32>
    %63 = math.tanh %62 : vector<8x16xf32>
    %cst_36 = arith.constant 1.000000e+00 : f32
    %64 = vector.broadcast %cst_36 : f32 to vector<8x16xf32>
    %65 = arith.addf %63, %64 : vector<8x16xf32>
    %cst_37 = arith.constant 5.000000e-01 : f32
    %66 = vector.broadcast %cst_37 : f32 to vector<8x16xf32>
    %67 = arith.mulf %66, %65 : vector<8x16xf32>
    %68 = vector.extract_strided_slice %28 {offsets = [0, 16], sizes = [8, 16], strides = [1, 1]} : vector<8x64xf32> to vector<8x16xf32>
    %cst_38 = arith.constant 5.000000e-01 : f32
    %69 = vector.broadcast %cst_38 : f32 to vector<8x16xf32>
    %70 = arith.mulf %69, %68 : vector<8x16xf32>
    %71 = math.tanh %70 : vector<8x16xf32>
    %cst_39 = arith.constant 1.000000e+00 : f32
    %72 = vector.broadcast %cst_39 : f32 to vector<8x16xf32>
    %73 = arith.addf %71, %72 : vector<8x16xf32>
    %cst_40 = arith.constant 5.000000e-01 : f32
    %74 = vector.broadcast %cst_40 : f32 to vector<8x16xf32>
    %75 = arith.mulf %74, %73 : vector<8x16xf32>
    %76 = vector.extract_strided_slice %28 {offsets = [0, 32], sizes = [8, 16], strides = [1, 1]} : vector<8x64xf32> to vector<8x16xf32>
    %77 = math.tanh %76 : vector<8x16xf32>
    %78 = vector.extract_strided_slice %28 {offsets = [0, 48], sizes = [8, 16], strides = [1, 1]} : vector<8x64xf32> to vector<8x16xf32>
    %cst_41 = arith.constant 5.000000e-01 : f32
    %79 = vector.broadcast %cst_41 : f32 to vector<8x16xf32>
    %80 = arith.mulf %79, %78 : vector<8x16xf32>
    %81 = math.tanh %80 : vector<8x16xf32>
    %cst_42 = arith.constant 1.000000e+00 : f32
    %82 = vector.broadcast %cst_42 : f32 to vector<8x16xf32>
    %83 = arith.addf %81, %82 : vector<8x16xf32>
    %cst_43 = arith.constant 5.000000e-01 : f32
    %84 = vector.broadcast %cst_43 : f32 to vector<8x16xf32>
    %85 = arith.mulf %84, %83 : vector<8x16xf32>
    %86 = arith.mulf %75, %17 : vector<8x16xf32>
    %87 = arith.mulf %67, %77 : vector<8x16xf32>
    %88 = arith.addf %86, %87 : vector<8x16xf32>
    %89 = math.tanh %88 : vector<8x16xf32>
    %90 = arith.mulf %85, %89 : vector<8x16xf32>
    %91 = arith.index_cast %c0_i32 : i32 to index
    %c0_44 = arith.constant 0 : index
    %c0_45 = arith.constant 0 : index
    %92 = vector.load %arg13[%91, %c0_44, %c0_45] : memref<8x8x16xf32, #tpu.memory_space<vmem>>, vector<1x8x16xf32>
    %93 = vector.shape_cast %92 : vector<1x8x16xf32> to vector<8x16xf32>
    %94 = vector.shape_cast %59 : vector<8x16xf32> to vector<1x8x16xf32>
    tpu.vector_store %arg13[%91, %c0_44, %c0_45], %94 {strides = array<i32>} : memref<8x8x16xf32, #tpu.memory_space<vmem>>, vector<1x8x16xf32>,
    %95 = arith.index_cast %18 : i32 to index
    %c0_46 = arith.constant 0 : index
    %c0_47 = arith.constant 0 : index
    %96 = vector.load %arg14[%95, %c0_46, %c0_47] : memref<8x8x16xf32, #tpu.memory_space<vmem>>, vector<1x8x16xf32>
    %97 = vector.shape_cast %96 : vector<1x8x16xf32> to vector<8x16xf32>
    %98 = vector.shape_cast %90 : vector<8x16xf32> to vector<1x8x16xf32>
    tpu.vector_store %arg14[%95, %c0_46, %c0_47], %98 {strides = array<i32>} : memref<8x8x16xf32, #tpu.memory_space<vmem>>, vector<1x8x16xf32>,
    %c1_i32 = arith.constant 1 : i32
    %c7_i32_48 = arith.constant 7 : i32
    %99 = arith.subi %c7_i32_48, %c1_i32 : i32
    %100 = arith.index_cast %c1_i32 : i32 to index
    %c0_49 = arith.constant 0 : index
    %c0_50 = arith.constant 0 : index
    %101 = vector.load %arg11[%100, %c0_49, %c0_50] : memref<8x8x64xf32, #tpu.memory_space<vmem>>, vector<1x8x64xf32>
    %102 = vector.shape_cast %101 : vector<1x8x64xf32> to vector<8x64xf32>
    %cst_51 = arith.constant dense<0.000000e+00> : vector<8x64xf32>
    %103 = tpu.matmul %59, %14, %cst_51 {dimension_numbers = #tpu.dot_dimension_numbers<[1], [0], [0], [1], [0, 0, 1, 1], [], []>} : vector<8x16xf32>, vector<16x64xf32>, vector<8x64xf32> -> vector<8x64xf32>
    %104 = arith.addf %102, %103 : vector<8x64xf32>
    %105 = arith.index_cast %99 : i32 to index
    %c0_52 = arith.constant 0 : index
    %c0_53 = arith.constant 0 : index
    %106 = vector.load %arg12[%105, %c0_52, %c0_53] : memref<8x8x64xf32, #tpu.memory_space<vmem>>, vector<1x8x64xf32>
    %107 = vector.shape_cast %106 : vector<1x8x64xf32> to vector<8x64xf32>
    %cst_54 = arith.constant dense<0.000000e+00> : vector<8x64xf32>
    %108 = tpu.matmul %90, %16, %cst_54 {dimension_numbers = #tpu.dot_dimension_numbers<[1], [0], [0], [1], [0, 0, 1, 1], [], []>} : vector<8x16xf32>, vector<16x64xf32>, vector<8x64xf32> -> vector<8x64xf32>
    %109 = arith.addf %107, %108 : vector<8x64xf32>
    %110 = vector.extract_strided_slice %104 {offsets = [0, 0], sizes = [8, 16], strides = [1, 1]} : vector<8x64xf32> to vector<8x16xf32>
    %cst_55 = arith.constant 5.000000e-01 : f32
    %111 = vector.broadcast %cst_55 : f32 to vector<8x16xf32>
    %112 = arith.mulf %111, %110 : vector<8x16xf32>
    %113 = math.tanh %112 : vector<8x16xf32>
    %cst_56 = arith.constant 1.000000e+00 : f32
    %114 = vector.broadcast %cst_56 : f32 to vector<8x16xf32>
    %115 = arith.addf %113, %114 : vector<8x16xf32>
    %cst_57 = arith.constant 5.000000e-01 : f32
    %116 = vector.broadcast %cst_57 : f32 to vector<8x16xf32>
    %117 = arith.mulf %116, %115 : vector<8x16xf32>
    %118 = vector.extract_strided_slice %104 {offsets = [0, 16], sizes = [8, 16], strides = [1, 1]} : vector<8x64xf32> to vector<8x16xf32>
    %cst_58 = arith.constant 5.000000e-01 : f32
    %119 = vector.broadcast %cst_58 : f32 to vector<8x16xf32>
    %120 = arith.mulf %119, %118 : vector<8x16xf32>
    %121 = math.tanh %120 : vector<8x16xf32>
    %cst_59 = arith.constant 1.000000e+00 : f32
    %122 = vector.broadcast %cst_59 : f32 to vector<8x16xf32>
    %123 = arith.addf %121, %122 : vector<8x16xf32>
    %cst_60 = arith.constant 5.000000e-01 : f32
    %124 = vector.broadcast %cst_60 : f32 to vector<8x16xf32>
    %125 = arith.mulf %124, %123 : vector<8x16xf32>
    %126 = vector.extract_strided_slice %104 {offsets = [0, 32], sizes = [8, 16], strides = [1, 1]} : vector<8x64xf32> to vector<8x16xf32>
    %127 = math.tanh %126 : vector<8x16xf32>
    %128 = vector.extract_strided_slice %104 {offsets = [0, 48], sizes = [8, 16], strides = [1, 1]} : vector<8x64xf32> to vector<8x16xf32>
    %cst_61 = arith.constant 5.000000e-01 : f32
    %129 = vector.broadcast %cst_61 : f32 to vector<8x16xf32>
    %130 = arith.mulf %129, %128 : vector<8x16xf32>
    %131 = math.tanh %130 : vector<8x16xf32>
    %cst_62 = arith.constant 1.000000e+00 : f32
    %132 = vector.broadcast %cst_62 : f32 to vector<8x16xf32>
    %133 = arith.addf %131, %132 : vector<8x16xf32>
    %cst_63 = arith.constant 5.000000e-01 : f32
    %134 = vector.broadcast %cst_63 : f32 to vector<8x16xf32>
    %135 = arith.mulf %134, %133 : vector<8x16xf32>
    %136 = arith.mulf %125, %57 : vector<8x16xf32>
    %137 = arith.mulf %117, %127 : vector<8x16xf32>
    %138 = arith.addf %136, %137 : vector<8x16xf32>
    %139 = math.tanh %138 : vector<8x16xf32>
    %140 = arith.mulf %135, %139 : vector<8x16xf32>
    %141 = vector.extract_strided_slice %109 {offsets = [0, 0], sizes = [8, 16], strides = [1, 1]} : vector<8x64xf32> to vector<8x16xf32>
    %cst_64 = arith.constant 5.000000e-01 : f32
    %142 = vector.broadcast %cst_64 : f32 to vector<8x16xf32>
    %143 = arith.mulf %142, %141 : vector<8x16xf32>
    %144 = math.tanh %143 : vector<8x16xf32>
    %cst_65 = arith.constant 1.000000e+00 : f32
    %145 = vector.broadcast %cst_65 : f32 to vector<8x16xf32>
    %146 = arith.addf %144, %145 : vector<8x16xf32>
    %cst_66 = arith.constant 5.000000e-01 : f32
    %147 = vector.broadcast %cst_66 : f32 to vector<8x16xf32>
    %148 = arith.mulf %147, %146 : vector<8x16xf32>
    %149 = vector.extract_strided_slice %109 {offsets = [0, 16], sizes = [8, 16], strides = [1, 1]} : vector<8x64xf32> to vector<8x16xf32>
    %cst_67 = arith.constant 5.000000e-01 : f32
    %150 = vector.broadcast %cst_67 : f32 to vector<8x16xf32>
    %151 = arith.mulf %150, %149 : vector<8x16xf32>
    %152 = math.tanh %151 : vector<8x16xf32>
    %cst_68 = arith.constant 1.000000e+00 : f32
    %153 = vector.broadcast %cst_68 : f32 to vector<8x16xf32>
    %154 = arith.addf %152, %153 : vector<8x16xf32>
    %cst_69 = arith.constant 5.000000e-01 : f32
    %155 = vector.broadcast %cst_69 : f32 to vector<8x16xf32>
    %156 = arith.mulf %155, %154 : vector<8x16xf32>
    %157 = vector.extract_strided_slice %109 {offsets = [0, 32], sizes = [8, 16], strides = [1, 1]} : vector<8x64xf32> to vector<8x16xf32>
    %158 = math.tanh %157 : vector<8x16xf32>
    %159 = vector.extract_strided_slice %109 {offsets = [0, 48], sizes = [8, 16], strides = [1, 1]} : vector<8x64xf32> to vector<8x16xf32>
    %cst_70 = arith.constant 5.000000e-01 : f32
    %160 = vector.broadcast %cst_70 : f32 to vector<8x16xf32>
    %161 = arith.mulf %160, %159 : vector<8x16xf32>
    %162 = math.tanh %161 : vector<8x16xf32>
    %cst_71 = arith.constant 1.000000e+00 : f32
    %163 = vector.broadcast %cst_71 : f32 to vector<8x16xf32>
    %164 = arith.addf %162, %163 : vector<8x16xf32>
    %cst_72 = arith.constant 5.000000e-01 : f32
    %165 = vector.broadcast %cst_72 : f32 to vector<8x16xf32>
    %166 = arith.mulf %165, %164 : vector<8x16xf32>
    %167 = arith.mulf %156, %88 : vector<8x16xf32>
    %168 = arith.mulf %148, %158 : vector<8x16xf32>
    %169 = arith.addf %167, %168 : vector<8x16xf32>
    %170 = math.tanh %169 : vector<8x16xf32>
    %171 = arith.mulf %166, %170 : vector<8x16xf32>
    %172 = arith.index_cast %c1_i32 : i32 to index
    %c0_73 = arith.constant 0 : index
    %c0_74 = arith.constant 0 : index
    %173 = vector.load %arg13[%172, %c0_73, %c0_74] : memref<8x8x16xf32, #tpu.memory_space<vmem>>, vector<1x8x16xf32>
    %174 = vector.shape_cast %173 : vector<1x8x16xf32> to vector<8x16xf32>
    %175 = vector.shape_cast %140 : vector<8x16xf32> to vector<1x8x16xf32>
    tpu.vector_store %arg13[%172, %c0_73, %c0_74], %175 {strides = array<i32>} : memref<8x8x16xf32, #tpu.memory_space<vmem>>, vector<1x8x16xf32>,
    %176 = arith.index_cast %99 : i32 to index
    %c0_75 = arith.constant 0 : index
    %c0_76 = arith.constant 0 : index
    %177 = vector.load %arg14[%176, %c0_75, %c0_76] : memref<8x8x16xf32, #tpu.memory_space<vmem>>, vector<1x8x16xf32>
    %178 = vector.shape_cast %177 : vector<1x8x16xf32> to vector<8x16xf32>
    %179 = vector.shape_cast %171 : vector<8x16xf32> to vector<1x8x16xf32>
    tpu.vector_store %arg14[%176, %c0_75, %c0_76], %179 {strides = array<i32>} : memref<8x8x16xf32, #tpu.memory_space<vmem>>, vector<1x8x16xf32>,
    %c2_i32 = arith.constant 2 : i32
    %c7_i32_77 = arith.constant 7 : i32
    %180 = arith.subi %c7_i32_77, %c2_i32 : i32
    %181 = arith.index_cast %c2_i32 : i32 to index
    %c0_78 = arith.constant 0 : index
    %c0_79 = arith.constant 0 : index
    %182 = vector.load %arg11[%181, %c0_78, %c0_79] : memref<8x8x64xf32, #tpu.memory_space<vmem>>, vector<1x8x64xf32>
    %183 = vector.shape_cast %182 : vector<1x8x64xf32> to vector<8x64xf32>
    %cst_80 = arith.constant dense<0.000000e+00> : vector<8x64xf32>
    %184 = tpu.matmul %140, %14, %cst_80 {dimension_numbers = #tpu.dot_dimension_numbers<[1], [0], [0], [1], [0, 0, 1, 1], [], []>} : vector<8x16xf32>, vector<16x64xf32>, vector<8x64xf32> -> vector<8x64xf32>
    %185 = arith.addf %183, %184 : vector<8x64xf32>
    %186 = arith.index_cast %180 : i32 to index
    %c0_81 = arith.constant 0 : index
    %c0_82 = arith.constant 0 : index
    %187 = vector.load %arg12[%186, %c0_81, %c0_82] : memref<8x8x64xf32, #tpu.memory_space<vmem>>, vector<1x8x64xf32>
    %188 = vector.shape_cast %187 : vector<1x8x64xf32> to vector<8x64xf32>
    %cst_83 = arith.constant dense<0.000000e+00> : vector<8x64xf32>
    %189 = tpu.matmul %171, %16, %cst_83 {dimension_numbers = #tpu.dot_dimension_numbers<[1], [0], [0], [1], [0, 0, 1, 1], [], []>} : vector<8x16xf32>, vector<16x64xf32>, vector<8x64xf32> -> vector<8x64xf32>
    %190 = arith.addf %188, %189 : vector<8x64xf32>
    %191 = vector.extract_strided_slice %185 {offsets = [0, 0], sizes = [8, 16], strides = [1, 1]} : vector<8x64xf32> to vector<8x16xf32>
    %cst_84 = arith.constant 5.000000e-01 : f32
    %192 = vector.broadcast %cst_84 : f32 to vector<8x16xf32>
    %193 = arith.mulf %192, %191 : vector<8x16xf32>
    %194 = math.tanh %193 : vector<8x16xf32>
    %cst_85 = arith.constant 1.000000e+00 : f32
    %195 = vector.broadcast %cst_85 : f32 to vector<8x16xf32>
    %196 = arith.addf %194, %195 : vector<8x16xf32>
    %cst_86 = arith.constant 5.000000e-01 : f32
    %197 = vector.broadcast %cst_86 : f32 to vector<8x16xf32>
    %198 = arith.mulf %197, %196 : vector<8x16xf32>
    %199 = vector.extract_strided_slice %185 {offsets = [0, 16], sizes = [8, 16], strides = [1, 1]} : vector<8x64xf32> to vector<8x16xf32>
    %cst_87 = arith.constant 5.000000e-01 : f32
    %200 = vector.broadcast %cst_87 : f32 to vector<8x16xf32>
    %201 = arith.mulf %200, %199 : vector<8x16xf32>
    %202 = math.tanh %201 : vector<8x16xf32>
    %cst_88 = arith.constant 1.000000e+00 : f32
    %203 = vector.broadcast %cst_88 : f32 to vector<8x16xf32>
    %204 = arith.addf %202, %203 : vector<8x16xf32>
    %cst_89 = arith.constant 5.000000e-01 : f32
    %205 = vector.broadcast %cst_89 : f32 to vector<8x16xf32>
    %206 = arith.mulf %205, %204 : vector<8x16xf32>
    %207 = vector.extract_strided_slice %185 {offsets = [0, 32], sizes = [8, 16], strides = [1, 1]} : vector<8x64xf32> to vector<8x16xf32>
    %208 = math.tanh %207 : vector<8x16xf32>
    %209 = vector.extract_strided_slice %185 {offsets = [0, 48], sizes = [8, 16], strides = [1, 1]} : vector<8x64xf32> to vector<8x16xf32>
    %cst_90 = arith.constant 5.000000e-01 : f32
    %210 = vector.broadcast %cst_90 : f32 to vector<8x16xf32>
    %211 = arith.mulf %210, %209 : vector<8x16xf32>
    %212 = math.tanh %211 : vector<8x16xf32>
    %cst_91 = arith.constant 1.000000e+00 : f32
    %213 = vector.broadcast %cst_91 : f32 to vector<8x16xf32>
    %214 = arith.addf %212, %213 : vector<8x16xf32>
    %cst_92 = arith.constant 5.000000e-01 : f32
    %215 = vector.broadcast %cst_92 : f32 to vector<8x16xf32>
    %216 = arith.mulf %215, %214 : vector<8x16xf32>
    %217 = arith.mulf %206, %138 : vector<8x16xf32>
    %218 = arith.mulf %198, %208 : vector<8x16xf32>
    %219 = arith.addf %217, %218 : vector<8x16xf32>
    %220 = math.tanh %219 : vector<8x16xf32>
    %221 = arith.mulf %216, %220 : vector<8x16xf32>
    %222 = vector.extract_strided_slice %190 {offsets = [0, 0], sizes = [8, 16], strides = [1, 1]} : vector<8x64xf32> to vector<8x16xf32>
    %cst_93 = arith.constant 5.000000e-01 : f32
    %223 = vector.broadcast %cst_93 : f32 to vector<8x16xf32>
    %224 = arith.mulf %223, %222 : vector<8x16xf32>
    %225 = math.tanh %224 : vector<8x16xf32>
    %cst_94 = arith.constant 1.000000e+00 : f32
    %226 = vector.broadcast %cst_94 : f32 to vector<8x16xf32>
    %227 = arith.addf %225, %226 : vector<8x16xf32>
    %cst_95 = arith.constant 5.000000e-01 : f32
    %228 = vector.broadcast %cst_95 : f32 to vector<8x16xf32>
    %229 = arith.mulf %228, %227 : vector<8x16xf32>
    %230 = vector.extract_strided_slice %190 {offsets = [0, 16], sizes = [8, 16], strides = [1, 1]} : vector<8x64xf32> to vector<8x16xf32>
    %cst_96 = arith.constant 5.000000e-01 : f32
    %231 = vector.broadcast %cst_96 : f32 to vector<8x16xf32>
    %232 = arith.mulf %231, %230 : vector<8x16xf32>
    %233 = math.tanh %232 : vector<8x16xf32>
    %cst_97 = arith.constant 1.000000e+00 : f32
    %234 = vector.broadcast %cst_97 : f32 to vector<8x16xf32>
    %235 = arith.addf %233, %234 : vector<8x16xf32>
    %cst_98 = arith.constant 5.000000e-01 : f32
    %236 = vector.broadcast %cst_98 : f32 to vector<8x16xf32>
    %237 = arith.mulf %236, %235 : vector<8x16xf32>
    %238 = vector.extract_strided_slice %190 {offsets = [0, 32], sizes = [8, 16], strides = [1, 1]} : vector<8x64xf32> to vector<8x16xf32>
    %239 = math.tanh %238 : vector<8x16xf32>
    %240 = vector.extract_strided_slice %190 {offsets = [0, 48], sizes = [8, 16], strides = [1, 1]} : vector<8x64xf32> to vector<8x16xf32>
    %cst_99 = arith.constant 5.000000e-01 : f32
    %241 = vector.broadcast %cst_99 : f32 to vector<8x16xf32>
    %242 = arith.mulf %241, %240 : vector<8x16xf32>
    %243 = math.tanh %242 : vector<8x16xf32>
    %cst_100 = arith.constant 1.000000e+00 : f32
    %244 = vector.broadcast %cst_100 : f32 to vector<8x16xf32>
    %245 = arith.addf %243, %244 : vector<8x16xf32>
    %cst_101 = arith.constant 5.000000e-01 : f32
    %246 = vector.broadcast %cst_101 : f32 to vector<8x16xf32>
    %247 = arith.mulf %246, %245 : vector<8x16xf32>
    %248 = arith.mulf %237, %169 : vector<8x16xf32>
    %249 = arith.mulf %229, %239 : vector<8x16xf32>
    %250 = arith.addf %248, %249 : vector<8x16xf32>
    %251 = math.tanh %250 : vector<8x16xf32>
    %252 = arith.mulf %247, %251 : vector<8x16xf32>
    %253 = arith.index_cast %c2_i32 : i32 to index
    %c0_102 = arith.constant 0 : index
    %c0_103 = arith.constant 0 : index
    %254 = vector.load %arg13[%253, %c0_102, %c0_103] : memref<8x8x16xf32, #tpu.memory_space<vmem>>, vector<1x8x16xf32>
    %255 = vector.shape_cast %254 : vector<1x8x16xf32> to vector<8x16xf32>
    %256 = vector.shape_cast %221 : vector<8x16xf32> to vector<1x8x16xf32>
    tpu.vector_store %arg13[%253, %c0_102, %c0_103], %256 {strides = array<i32>} : memref<8x8x16xf32, #tpu.memory_space<vmem>>, vector<1x8x16xf32>,
    %257 = arith.index_cast %180 : i32 to index
    %c0_104 = arith.constant 0 : index
    %c0_105 = arith.constant 0 : index
    %258 = vector.load %arg14[%257, %c0_104, %c0_105] : memref<8x8x16xf32, #tpu.memory_space<vmem>>, vector<1x8x16xf32>
    %259 = vector.shape_cast %258 : vector<1x8x16xf32> to vector<8x16xf32>
    %260 = vector.shape_cast %252 : vector<8x16xf32> to vector<1x8x16xf32>
    tpu.vector_store %arg14[%257, %c0_104, %c0_105], %260 {strides = array<i32>} : memref<8x8x16xf32, #tpu.memory_space<vmem>>, vector<1x8x16xf32>,
    %c3_i32 = arith.constant 3 : i32
    %c7_i32_106 = arith.constant 7 : i32
    %261 = arith.subi %c7_i32_106, %c3_i32 : i32
    %262 = arith.index_cast %c3_i32 : i32 to index
    %c0_107 = arith.constant 0 : index
    %c0_108 = arith.constant 0 : index
    %263 = vector.load %arg11[%262, %c0_107, %c0_108] : memref<8x8x64xf32, #tpu.memory_space<vmem>>, vector<1x8x64xf32>
    %264 = vector.shape_cast %263 : vector<1x8x64xf32> to vector<8x64xf32>
    %cst_109 = arith.constant dense<0.000000e+00> : vector<8x64xf32>
    %265 = tpu.matmul %221, %14, %cst_109 {dimension_numbers = #tpu.dot_dimension_numbers<[1], [0], [0], [1], [0, 0, 1, 1], [], []>} : vector<8x16xf32>, vector<16x64xf32>, vector<8x64xf32> -> vector<8x64xf32>
    %266 = arith.addf %264, %265 : vector<8x64xf32>
    %267 = arith.index_cast %261 : i32 to index
    %c0_110 = arith.constant 0 : index
    %c0_111 = arith.constant 0 : index
    %268 = vector.load %arg12[%267, %c0_110, %c0_111] : memref<8x8x64xf32, #tpu.memory_space<vmem>>, vector<1x8x64xf32>
    %269 = vector.shape_cast %268 : vector<1x8x64xf32> to vector<8x64xf32>
    %cst_112 = arith.constant dense<0.000000e+00> : vector<8x64xf32>
    %270 = tpu.matmul %252, %16, %cst_112 {dimension_numbers = #tpu.dot_dimension_numbers<[1], [0], [0], [1], [0, 0, 1, 1], [], []>} : vector<8x16xf32>, vector<16x64xf32>, vector<8x64xf32> -> vector<8x64xf32>
    %271 = arith.addf %269, %270 : vector<8x64xf32>
    %272 = vector.extract_strided_slice %266 {offsets = [0, 0], sizes = [8, 16], strides = [1, 1]} : vector<8x64xf32> to vector<8x16xf32>
    %cst_113 = arith.constant 5.000000e-01 : f32
    %273 = vector.broadcast %cst_113 : f32 to vector<8x16xf32>
    %274 = arith.mulf %273, %272 : vector<8x16xf32>
    %275 = math.tanh %274 : vector<8x16xf32>
    %cst_114 = arith.constant 1.000000e+00 : f32
    %276 = vector.broadcast %cst_114 : f32 to vector<8x16xf32>
    %277 = arith.addf %275, %276 : vector<8x16xf32>
    %cst_115 = arith.constant 5.000000e-01 : f32
    %278 = vector.broadcast %cst_115 : f32 to vector<8x16xf32>
    %279 = arith.mulf %278, %277 : vector<8x16xf32>
    %280 = vector.extract_strided_slice %266 {offsets = [0, 16], sizes = [8, 16], strides = [1, 1]} : vector<8x64xf32> to vector<8x16xf32>
    %cst_116 = arith.constant 5.000000e-01 : f32
    %281 = vector.broadcast %cst_116 : f32 to vector<8x16xf32>
    %282 = arith.mulf %281, %280 : vector<8x16xf32>
    %283 = math.tanh %282 : vector<8x16xf32>
    %cst_117 = arith.constant 1.000000e+00 : f32
    %284 = vector.broadcast %cst_117 : f32 to vector<8x16xf32>
    %285 = arith.addf %283, %284 : vector<8x16xf32>
    %cst_118 = arith.constant 5.000000e-01 : f32
    %286 = vector.broadcast %cst_118 : f32 to vector<8x16xf32>
    %287 = arith.mulf %286, %285 : vector<8x16xf32>
    %288 = vector.extract_strided_slice %266 {offsets = [0, 32], sizes = [8, 16], strides = [1, 1]} : vector<8x64xf32> to vector<8x16xf32>
    %289 = math.tanh %288 : vector<8x16xf32>
    %290 = vector.extract_strided_slice %266 {offsets = [0, 48], sizes = [8, 16], strides = [1, 1]} : vector<8x64xf32> to vector<8x16xf32>
    %cst_119 = arith.constant 5.000000e-01 : f32
    %291 = vector.broadcast %cst_119 : f32 to vector<8x16xf32>
    %292 = arith.mulf %291, %290 : vector<8x16xf32>
    %293 = math.tanh %292 : vector<8x16xf32>
    %cst_120 = arith.constant 1.000000e+00 : f32
    %294 = vector.broadcast %cst_120 : f32 to vector<8x16xf32>
    %295 = arith.addf %293, %294 : vector<8x16xf32>
    %cst_121 = arith.constant 5.000000e-01 : f32
    %296 = vector.broadcast %cst_121 : f32 to vector<8x16xf32>
    %297 = arith.mulf %296, %295 : vector<8x16xf32>
    %298 = arith.mulf %287, %219 : vector<8x16xf32>
    %299 = arith.mulf %279, %289 : vector<8x16xf32>
    %300 = arith.addf %298, %299 : vector<8x16xf32>
    %301 = math.tanh %300 : vector<8x16xf32>
    %302 = arith.mulf %297, %301 : vector<8x16xf32>
    %303 = vector.extract_strided_slice %271 {offsets = [0, 0], sizes = [8, 16], strides = [1, 1]} : vector<8x64xf32> to vector<8x16xf32>
    %cst_122 = arith.constant 5.000000e-01 : f32
    %304 = vector.broadcast %cst_122 : f32 to vector<8x16xf32>
    %305 = arith.mulf %304, %303 : vector<8x16xf32>
    %306 = math.tanh %305 : vector<8x16xf32>
    %cst_123 = arith.constant 1.000000e+00 : f32
    %307 = vector.broadcast %cst_123 : f32 to vector<8x16xf32>
    %308 = arith.addf %306, %307 : vector<8x16xf32>
    %cst_124 = arith.constant 5.000000e-01 : f32
    %309 = vector.broadcast %cst_124 : f32 to vector<8x16xf32>
    %310 = arith.mulf %309, %308 : vector<8x16xf32>
    %311 = vector.extract_strided_slice %271 {offsets = [0, 16], sizes = [8, 16], strides = [1, 1]} : vector<8x64xf32> to vector<8x16xf32>
    %cst_125 = arith.constant 5.000000e-01 : f32
    %312 = vector.broadcast %cst_125 : f32 to vector<8x16xf32>
    %313 = arith.mulf %312, %311 : vector<8x16xf32>
    %314 = math.tanh %313 : vector<8x16xf32>
    %cst_126 = arith.constant 1.000000e+00 : f32
    %315 = vector.broadcast %cst_126 : f32 to vector<8x16xf32>
    %316 = arith.addf %314, %315 : vector<8x16xf32>
    %cst_127 = arith.constant 5.000000e-01 : f32
    %317 = vector.broadcast %cst_127 : f32 to vector<8x16xf32>
    %318 = arith.mulf %317, %316 : vector<8x16xf32>
    %319 = vector.extract_strided_slice %271 {offsets = [0, 32], sizes = [8, 16], strides = [1, 1]} : vector<8x64xf32> to vector<8x16xf32>
    %320 = math.tanh %319 : vector<8x16xf32>
    %321 = vector.extract_strided_slice %271 {offsets = [0, 48], sizes = [8, 16], strides = [1, 1]} : vector<8x64xf32> to vector<8x16xf32>
    %cst_128 = arith.constant 5.000000e-01 : f32
    %322 = vector.broadcast %cst_128 : f32 to vector<8x16xf32>
    %323 = arith.mulf %322, %321 : vector<8x16xf32>
    %324 = math.tanh %323 : vector<8x16xf32>
    %cst_129 = arith.constant 1.000000e+00 : f32
    %325 = vector.broadcast %cst_129 : f32 to vector<8x16xf32>
    %326 = arith.addf %324, %325 : vector<8x16xf32>
    %cst_130 = arith.constant 5.000000e-01 : f32
    %327 = vector.broadcast %cst_130 : f32 to vector<8x16xf32>
    %328 = arith.mulf %327, %326 : vector<8x16xf32>
    %329 = arith.mulf %318, %250 : vector<8x16xf32>
    %330 = arith.mulf %310, %320 : vector<8x16xf32>
    %331 = arith.addf %329, %330 : vector<8x16xf32>
    %332 = math.tanh %331 : vector<8x16xf32>
    %333 = arith.mulf %328, %332 : vector<8x16xf32>
    %334 = arith.index_cast %c3_i32 : i32 to index
    %c0_131 = arith.constant 0 : index
    %c0_132 = arith.constant 0 : index
    %335 = vector.load %arg13[%334, %c0_131, %c0_132] : memref<8x8x16xf32, #tpu.memory_space<vmem>>, vector<1x8x16xf32>
    %336 = vector.shape_cast %335 : vector<1x8x16xf32> to vector<8x16xf32>
    %337 = vector.shape_cast %302 : vector<8x16xf32> to vector<1x8x16xf32>
    tpu.vector_store %arg13[%334, %c0_131, %c0_132], %337 {strides = array<i32>} : memref<8x8x16xf32, #tpu.memory_space<vmem>>, vector<1x8x16xf32>,
    %338 = arith.index_cast %261 : i32 to index
    %c0_133 = arith.constant 0 : index
    %c0_134 = arith.constant 0 : index
    %339 = vector.load %arg14[%338, %c0_133, %c0_134] : memref<8x8x16xf32, #tpu.memory_space<vmem>>, vector<1x8x16xf32>
    %340 = vector.shape_cast %339 : vector<1x8x16xf32> to vector<8x16xf32>
    %341 = vector.shape_cast %333 : vector<8x16xf32> to vector<1x8x16xf32>
    tpu.vector_store %arg14[%338, %c0_133, %c0_134], %341 {strides = array<i32>} : memref<8x8x16xf32, #tpu.memory_space<vmem>>, vector<1x8x16xf32>,
    %c4_i32 = arith.constant 4 : i32
    %c7_i32_135 = arith.constant 7 : i32
    %342 = arith.subi %c7_i32_135, %c4_i32 : i32
    %343 = arith.index_cast %c4_i32 : i32 to index
    %c0_136 = arith.constant 0 : index
    %c0_137 = arith.constant 0 : index
    %344 = vector.load %arg11[%343, %c0_136, %c0_137] : memref<8x8x64xf32, #tpu.memory_space<vmem>>, vector<1x8x64xf32>
    %345 = vector.shape_cast %344 : vector<1x8x64xf32> to vector<8x64xf32>
    %cst_138 = arith.constant dense<0.000000e+00> : vector<8x64xf32>
    %346 = tpu.matmul %302, %14, %cst_138 {dimension_numbers = #tpu.dot_dimension_numbers<[1], [0], [0], [1], [0, 0, 1, 1], [], []>} : vector<8x16xf32>, vector<16x64xf32>, vector<8x64xf32> -> vector<8x64xf32>
    %347 = arith.addf %345, %346 : vector<8x64xf32>
    %348 = arith.index_cast %342 : i32 to index
    %c0_139 = arith.constant 0 : index
    %c0_140 = arith.constant 0 : index
    %349 = vector.load %arg12[%348, %c0_139, %c0_140] : memref<8x8x64xf32, #tpu.memory_space<vmem>>, vector<1x8x64xf32>
    %350 = vector.shape_cast %349 : vector<1x8x64xf32> to vector<8x64xf32>
    %cst_141 = arith.constant dense<0.000000e+00> : vector<8x64xf32>
    %351 = tpu.matmul %333, %16, %cst_141 {dimension_numbers = #tpu.dot_dimension_numbers<[1], [0], [0], [1], [0, 0, 1, 1], [], []>} : vector<8x16xf32>, vector<16x64xf32>, vector<8x64xf32> -> vector<8x64xf32>
    %352 = arith.addf %350, %351 : vector<8x64xf32>
    %353 = vector.extract_strided_slice %347 {offsets = [0, 0], sizes = [8, 16], strides = [1, 1]} : vector<8x64xf32> to vector<8x16xf32>
    %cst_142 = arith.constant 5.000000e-01 : f32
    %354 = vector.broadcast %cst_142 : f32 to vector<8x16xf32>
    %355 = arith.mulf %354, %353 : vector<8x16xf32>
    %356 = math.tanh %355 : vector<8x16xf32>
    %cst_143 = arith.constant 1.000000e+00 : f32
    %357 = vector.broadcast %cst_143 : f32 to vector<8x16xf32>
    %358 = arith.addf %356, %357 : vector<8x16xf32>
    %cst_144 = arith.constant 5.000000e-01 : f32
    %359 = vector.broadcast %cst_144 : f32 to vector<8x16xf32>
    %360 = arith.mulf %359, %358 : vector<8x16xf32>
    %361 = vector.extract_strided_slice %347 {offsets = [0, 16], sizes = [8, 16], strides = [1, 1]} : vector<8x64xf32> to vector<8x16xf32>
    %cst_145 = arith.constant 5.000000e-01 : f32
    %362 = vector.broadcast %cst_145 : f32 to vector<8x16xf32>
    %363 = arith.mulf %362, %361 : vector<8x16xf32>
    %364 = math.tanh %363 : vector<8x16xf32>
    %cst_146 = arith.constant 1.000000e+00 : f32
    %365 = vector.broadcast %cst_146 : f32 to vector<8x16xf32>
    %366 = arith.addf %364, %365 : vector<8x16xf32>
    %cst_147 = arith.constant 5.000000e-01 : f32
    %367 = vector.broadcast %cst_147 : f32 to vector<8x16xf32>
    %368 = arith.mulf %367, %366 : vector<8x16xf32>
    %369 = vector.extract_strided_slice %347 {offsets = [0, 32], sizes = [8, 16], strides = [1, 1]} : vector<8x64xf32> to vector<8x16xf32>
    %370 = math.tanh %369 : vector<8x16xf32>
    %371 = vector.extract_strided_slice %347 {offsets = [0, 48], sizes = [8, 16], strides = [1, 1]} : vector<8x64xf32> to vector<8x16xf32>
    %cst_148 = arith.constant 5.000000e-01 : f32
    %372 = vector.broadcast %cst_148 : f32 to vector<8x16xf32>
    %373 = arith.mulf %372, %371 : vector<8x16xf32>
    %374 = math.tanh %373 : vector<8x16xf32>
    %cst_149 = arith.constant 1.000000e+00 : f32
    %375 = vector.broadcast %cst_149 : f32 to vector<8x16xf32>
    %376 = arith.addf %374, %375 : vector<8x16xf32>
    %cst_150 = arith.constant 5.000000e-01 : f32
    %377 = vector.broadcast %cst_150 : f32 to vector<8x16xf32>
    %378 = arith.mulf %377, %376 : vector<8x16xf32>
    %379 = arith.mulf %368, %300 : vector<8x16xf32>
    %380 = arith.mulf %360, %370 : vector<8x16xf32>
    %381 = arith.addf %379, %380 : vector<8x16xf32>
    %382 = math.tanh %381 : vector<8x16xf32>
    %383 = arith.mulf %378, %382 : vector<8x16xf32>
    %384 = vector.extract_strided_slice %352 {offsets = [0, 0], sizes = [8, 16], strides = [1, 1]} : vector<8x64xf32> to vector<8x16xf32>
    %cst_151 = arith.constant 5.000000e-01 : f32
    %385 = vector.broadcast %cst_151 : f32 to vector<8x16xf32>
    %386 = arith.mulf %385, %384 : vector<8x16xf32>
    %387 = math.tanh %386 : vector<8x16xf32>
    %cst_152 = arith.constant 1.000000e+00 : f32
    %388 = vector.broadcast %cst_152 : f32 to vector<8x16xf32>
    %389 = arith.addf %387, %388 : vector<8x16xf32>
    %cst_153 = arith.constant 5.000000e-01 : f32
    %390 = vector.broadcast %cst_153 : f32 to vector<8x16xf32>
    %391 = arith.mulf %390, %389 : vector<8x16xf32>
    %392 = vector.extract_strided_slice %352 {offsets = [0, 16], sizes = [8, 16], strides = [1, 1]} : vector<8x64xf32> to vector<8x16xf32>
    %cst_154 = arith.constant 5.000000e-01 : f32
    %393 = vector.broadcast %cst_154 : f32 to vector<8x16xf32>
    %394 = arith.mulf %393, %392 : vector<8x16xf32>
    %395 = math.tanh %394 : vector<8x16xf32>
    %cst_155 = arith.constant 1.000000e+00 : f32
    %396 = vector.broadcast %cst_155 : f32 to vector<8x16xf32>
    %397 = arith.addf %395, %396 : vector<8x16xf32>
    %cst_156 = arith.constant 5.000000e-01 : f32
    %398 = vector.broadcast %cst_156 : f32 to vector<8x16xf32>
    %399 = arith.mulf %398, %397 : vector<8x16xf32>
    %400 = vector.extract_strided_slice %352 {offsets = [0, 32], sizes = [8, 16], strides = [1, 1]} : vector<8x64xf32> to vector<8x16xf32>
    %401 = math.tanh %400 : vector<8x16xf32>
    %402 = vector.extract_strided_slice %352 {offsets = [0, 48], sizes = [8, 16], strides = [1, 1]} : vector<8x64xf32> to vector<8x16xf32>
    %cst_157 = arith.constant 5.000000e-01 : f32
    %403 = vector.broadcast %cst_157 : f32 to vector<8x16xf32>
    %404 = arith.mulf %403, %402 : vector<8x16xf32>
    %405 = math.tanh %404 : vector<8x16xf32>
    %cst_158 = arith.constant 1.000000e+00 : f32
    %406 = vector.broadcast %cst_158 : f32 to vector<8x16xf32>
    %407 = arith.addf %405, %406 : vector<8x16xf32>
    %cst_159 = arith.constant 5.000000e-01 : f32
    %408 = vector.broadcast %cst_159 : f32 to vector<8x16xf32>
    %409 = arith.mulf %408, %407 : vector<8x16xf32>
    %410 = arith.mulf %399, %331 : vector<8x16xf32>
    %411 = arith.mulf %391, %401 : vector<8x16xf32>
    %412 = arith.addf %410, %411 : vector<8x16xf32>
    %413 = math.tanh %412 : vector<8x16xf32>
    %414 = arith.mulf %409, %413 : vector<8x16xf32>
    %415 = arith.index_cast %c4_i32 : i32 to index
    %c0_160 = arith.constant 0 : index
    %c0_161 = arith.constant 0 : index
    %416 = vector.load %arg13[%415, %c0_160, %c0_161] : memref<8x8x16xf32, #tpu.memory_space<vmem>>, vector<1x8x16xf32>
    %417 = vector.shape_cast %416 : vector<1x8x16xf32> to vector<8x16xf32>
    %418 = vector.shape_cast %383 : vector<8x16xf32> to vector<1x8x16xf32>
    tpu.vector_store %arg13[%415, %c0_160, %c0_161], %418 {strides = array<i32>} : memref<8x8x16xf32, #tpu.memory_space<vmem>>, vector<1x8x16xf32>,
    %419 = arith.index_cast %342 : i32 to index
    %c0_162 = arith.constant 0 : index
    %c0_163 = arith.constant 0 : index
    %420 = vector.load %arg14[%419, %c0_162, %c0_163] : memref<8x8x16xf32, #tpu.memory_space<vmem>>, vector<1x8x16xf32>
    %421 = vector.shape_cast %420 : vector<1x8x16xf32> to vector<8x16xf32>
    %422 = vector.shape_cast %414 : vector<8x16xf32> to vector<1x8x16xf32>
    tpu.vector_store %arg14[%419, %c0_162, %c0_163], %422 {strides = array<i32>} : memref<8x8x16xf32, #tpu.memory_space<vmem>>, vector<1x8x16xf32>,
    %c5_i32 = arith.constant 5 : i32
    %c7_i32_164 = arith.constant 7 : i32
    %423 = arith.subi %c7_i32_164, %c5_i32 : i32
    %424 = arith.index_cast %c5_i32 : i32 to index
    %c0_165 = arith.constant 0 : index
    %c0_166 = arith.constant 0 : index
    %425 = vector.load %arg11[%424, %c0_165, %c0_166] : memref<8x8x64xf32, #tpu.memory_space<vmem>>, vector<1x8x64xf32>
    %426 = vector.shape_cast %425 : vector<1x8x64xf32> to vector<8x64xf32>
    %cst_167 = arith.constant dense<0.000000e+00> : vector<8x64xf32>
    %427 = tpu.matmul %383, %14, %cst_167 {dimension_numbers = #tpu.dot_dimension_numbers<[1], [0], [0], [1], [0, 0, 1, 1], [], []>} : vector<8x16xf32>, vector<16x64xf32>, vector<8x64xf32> -> vector<8x64xf32>
    %428 = arith.addf %426, %427 : vector<8x64xf32>
    %429 = arith.index_cast %423 : i32 to index
    %c0_168 = arith.constant 0 : index
    %c0_169 = arith.constant 0 : index
    %430 = vector.load %arg12[%429, %c0_168, %c0_169] : memref<8x8x64xf32, #tpu.memory_space<vmem>>, vector<1x8x64xf32>
    %431 = vector.shape_cast %430 : vector<1x8x64xf32> to vector<8x64xf32>
    %cst_170 = arith.constant dense<0.000000e+00> : vector<8x64xf32>
    %432 = tpu.matmul %414, %16, %cst_170 {dimension_numbers = #tpu.dot_dimension_numbers<[1], [0], [0], [1], [0, 0, 1, 1], [], []>} : vector<8x16xf32>, vector<16x64xf32>, vector<8x64xf32> -> vector<8x64xf32>
    %433 = arith.addf %431, %432 : vector<8x64xf32>
    %434 = vector.extract_strided_slice %428 {offsets = [0, 0], sizes = [8, 16], strides = [1, 1]} : vector<8x64xf32> to vector<8x16xf32>
    %cst_171 = arith.constant 5.000000e-01 : f32
    %435 = vector.broadcast %cst_171 : f32 to vector<8x16xf32>
    %436 = arith.mulf %435, %434 : vector<8x16xf32>
    %437 = math.tanh %436 : vector<8x16xf32>
    %cst_172 = arith.constant 1.000000e+00 : f32
    %438 = vector.broadcast %cst_172 : f32 to vector<8x16xf32>
    %439 = arith.addf %437, %438 : vector<8x16xf32>
    %cst_173 = arith.constant 5.000000e-01 : f32
    %440 = vector.broadcast %cst_173 : f32 to vector<8x16xf32>
    %441 = arith.mulf %440, %439 : vector<8x16xf32>
    %442 = vector.extract_strided_slice %428 {offsets = [0, 16], sizes = [8, 16], strides = [1, 1]} : vector<8x64xf32> to vector<8x16xf32>
    %cst_174 = arith.constant 5.000000e-01 : f32
    %443 = vector.broadcast %cst_174 : f32 to vector<8x16xf32>
    %444 = arith.mulf %443, %442 : vector<8x16xf32>
    %445 = math.tanh %444 : vector<8x16xf32>
    %cst_175 = arith.constant 1.000000e+00 : f32
    %446 = vector.broadcast %cst_175 : f32 to vector<8x16xf32>
    %447 = arith.addf %445, %446 : vector<8x16xf32>
    %cst_176 = arith.constant 5.000000e-01 : f32
    %448 = vector.broadcast %cst_176 : f32 to vector<8x16xf32>
    %449 = arith.mulf %448, %447 : vector<8x16xf32>
    %450 = vector.extract_strided_slice %428 {offsets = [0, 32], sizes = [8, 16], strides = [1, 1]} : vector<8x64xf32> to vector<8x16xf32>
    %451 = math.tanh %450 : vector<8x16xf32>
    %452 = vector.extract_strided_slice %428 {offsets = [0, 48], sizes = [8, 16], strides = [1, 1]} : vector<8x64xf32> to vector<8x16xf32>
    %cst_177 = arith.constant 5.000000e-01 : f32
    %453 = vector.broadcast %cst_177 : f32 to vector<8x16xf32>
    %454 = arith.mulf %453, %452 : vector<8x16xf32>
    %455 = math.tanh %454 : vector<8x16xf32>
    %cst_178 = arith.constant 1.000000e+00 : f32
    %456 = vector.broadcast %cst_178 : f32 to vector<8x16xf32>
    %457 = arith.addf %455, %456 : vector<8x16xf32>
    %cst_179 = arith.constant 5.000000e-01 : f32
    %458 = vector.broadcast %cst_179 : f32 to vector<8x16xf32>
    %459 = arith.mulf %458, %457 : vector<8x16xf32>
    %460 = arith.mulf %449, %381 : vector<8x16xf32>
    %461 = arith.mulf %441, %451 : vector<8x16xf32>
    %462 = arith.addf %460, %461 : vector<8x16xf32>
    %463 = math.tanh %462 : vector<8x16xf32>
    %464 = arith.mulf %459, %463 : vector<8x16xf32>
    %465 = vector.extract_strided_slice %433 {offsets = [0, 0], sizes = [8, 16], strides = [1, 1]} : vector<8x64xf32> to vector<8x16xf32>
    %cst_180 = arith.constant 5.000000e-01 : f32
    %466 = vector.broadcast %cst_180 : f32 to vector<8x16xf32>
    %467 = arith.mulf %466, %465 : vector<8x16xf32>
    %468 = math.tanh %467 : vector<8x16xf32>
    %cst_181 = arith.constant 1.000000e+00 : f32
    %469 = vector.broadcast %cst_181 : f32 to vector<8x16xf32>
    %470 = arith.addf %468, %469 : vector<8x16xf32>
    %cst_182 = arith.constant 5.000000e-01 : f32
    %471 = vector.broadcast %cst_182 : f32 to vector<8x16xf32>
    %472 = arith.mulf %471, %470 : vector<8x16xf32>
    %473 = vector.extract_strided_slice %433 {offsets = [0, 16], sizes = [8, 16], strides = [1, 1]} : vector<8x64xf32> to vector<8x16xf32>
    %cst_183 = arith.constant 5.000000e-01 : f32
    %474 = vector.broadcast %cst_183 : f32 to vector<8x16xf32>
    %475 = arith.mulf %474, %473 : vector<8x16xf32>
    %476 = math.tanh %475 : vector<8x16xf32>
    %cst_184 = arith.constant 1.000000e+00 : f32
    %477 = vector.broadcast %cst_184 : f32 to vector<8x16xf32>
    %478 = arith.addf %476, %477 : vector<8x16xf32>
    %cst_185 = arith.constant 5.000000e-01 : f32
    %479 = vector.broadcast %cst_185 : f32 to vector<8x16xf32>
    %480 = arith.mulf %479, %478 : vector<8x16xf32>
    %481 = vector.extract_strided_slice %433 {offsets = [0, 32], sizes = [8, 16], strides = [1, 1]} : vector<8x64xf32> to vector<8x16xf32>
    %482 = math.tanh %481 : vector<8x16xf32>
    %483 = vector.extract_strided_slice %433 {offsets = [0, 48], sizes = [8, 16], strides = [1, 1]} : vector<8x64xf32> to vector<8x16xf32>
    %cst_186 = arith.constant 5.000000e-01 : f32
    %484 = vector.broadcast %cst_186 : f32 to vector<8x16xf32>
    %485 = arith.mulf %484, %483 : vector<8x16xf32>
    %486 = math.tanh %485 : vector<8x16xf32>
    %cst_187 = arith.constant 1.000000e+00 : f32
    %487 = vector.broadcast %cst_187 : f32 to vector<8x16xf32>
    %488 = arith.addf %486, %487 : vector<8x16xf32>
    %cst_188 = arith.constant 5.000000e-01 : f32
    %489 = vector.broadcast %cst_188 : f32 to vector<8x16xf32>
    %490 = arith.mulf %489, %488 : vector<8x16xf32>
    %491 = arith.mulf %480, %412 : vector<8x16xf32>
    %492 = arith.mulf %472, %482 : vector<8x16xf32>
    %493 = arith.addf %491, %492 : vector<8x16xf32>
    %494 = math.tanh %493 : vector<8x16xf32>
    %495 = arith.mulf %490, %494 : vector<8x16xf32>
    %496 = arith.index_cast %c5_i32 : i32 to index
    %c0_189 = arith.constant 0 : index
    %c0_190 = arith.constant 0 : index
    %497 = vector.load %arg13[%496, %c0_189, %c0_190] : memref<8x8x16xf32, #tpu.memory_space<vmem>>, vector<1x8x16xf32>
    %498 = vector.shape_cast %497 : vector<1x8x16xf32> to vector<8x16xf32>
    %499 = vector.shape_cast %464 : vector<8x16xf32> to vector<1x8x16xf32>
    tpu.vector_store %arg13[%496, %c0_189, %c0_190], %499 {strides = array<i32>} : memref<8x8x16xf32, #tpu.memory_space<vmem>>, vector<1x8x16xf32>,
    %500 = arith.index_cast %423 : i32 to index
    %c0_191 = arith.constant 0 : index
    %c0_192 = arith.constant 0 : index
    %501 = vector.load %arg14[%500, %c0_191, %c0_192] : memref<8x8x16xf32, #tpu.memory_space<vmem>>, vector<1x8x16xf32>
    %502 = vector.shape_cast %501 : vector<1x8x16xf32> to vector<8x16xf32>
    %503 = vector.shape_cast %495 : vector<8x16xf32> to vector<1x8x16xf32>
    tpu.vector_store %arg14[%500, %c0_191, %c0_192], %503 {strides = array<i32>} : memref<8x8x16xf32, #tpu.memory_space<vmem>>, vector<1x8x16xf32>,
    %c6_i32 = arith.constant 6 : i32
    %c7_i32_193 = arith.constant 7 : i32
    %504 = arith.subi %c7_i32_193, %c6_i32 : i32
    %505 = arith.index_cast %c6_i32 : i32 to index
    %c0_194 = arith.constant 0 : index
    %c0_195 = arith.constant 0 : index
    %506 = vector.load %arg11[%505, %c0_194, %c0_195] : memref<8x8x64xf32, #tpu.memory_space<vmem>>, vector<1x8x64xf32>
    %507 = vector.shape_cast %506 : vector<1x8x64xf32> to vector<8x64xf32>
    %cst_196 = arith.constant dense<0.000000e+00> : vector<8x64xf32>
    %508 = tpu.matmul %464, %14, %cst_196 {dimension_numbers = #tpu.dot_dimension_numbers<[1], [0], [0], [1], [0, 0, 1, 1], [], []>} : vector<8x16xf32>, vector<16x64xf32>, vector<8x64xf32> -> vector<8x64xf32>
    %509 = arith.addf %507, %508 : vector<8x64xf32>
    %510 = arith.index_cast %504 : i32 to index
    %c0_197 = arith.constant 0 : index
    %c0_198 = arith.constant 0 : index
    %511 = vector.load %arg12[%510, %c0_197, %c0_198] : memref<8x8x64xf32, #tpu.memory_space<vmem>>, vector<1x8x64xf32>
    %512 = vector.shape_cast %511 : vector<1x8x64xf32> to vector<8x64xf32>
    %cst_199 = arith.constant dense<0.000000e+00> : vector<8x64xf32>
    %513 = tpu.matmul %495, %16, %cst_199 {dimension_numbers = #tpu.dot_dimension_numbers<[1], [0], [0], [1], [0, 0, 1, 1], [], []>} : vector<8x16xf32>, vector<16x64xf32>, vector<8x64xf32> -> vector<8x64xf32>
    %514 = arith.addf %512, %513 : vector<8x64xf32>
    %515 = vector.extract_strided_slice %509 {offsets = [0, 0], sizes = [8, 16], strides = [1, 1]} : vector<8x64xf32> to vector<8x16xf32>
    %cst_200 = arith.constant 5.000000e-01 : f32
    %516 = vector.broadcast %cst_200 : f32 to vector<8x16xf32>
    %517 = arith.mulf %516, %515 : vector<8x16xf32>
    %518 = math.tanh %517 : vector<8x16xf32>
    %cst_201 = arith.constant 1.000000e+00 : f32
    %519 = vector.broadcast %cst_201 : f32 to vector<8x16xf32>
    %520 = arith.addf %518, %519 : vector<8x16xf32>
    %cst_202 = arith.constant 5.000000e-01 : f32
    %521 = vector.broadcast %cst_202 : f32 to vector<8x16xf32>
    %522 = arith.mulf %521, %520 : vector<8x16xf32>
    %523 = vector.extract_strided_slice %509 {offsets = [0, 16], sizes = [8, 16], strides = [1, 1]} : vector<8x64xf32> to vector<8x16xf32>
    %cst_203 = arith.constant 5.000000e-01 : f32
    %524 = vector.broadcast %cst_203 : f32 to vector<8x16xf32>
    %525 = arith.mulf %524, %523 : vector<8x16xf32>
    %526 = math.tanh %525 : vector<8x16xf32>
    %cst_204 = arith.constant 1.000000e+00 : f32
    %527 = vector.broadcast %cst_204 : f32 to vector<8x16xf32>
    %528 = arith.addf %526, %527 : vector<8x16xf32>
    %cst_205 = arith.constant 5.000000e-01 : f32
    %529 = vector.broadcast %cst_205 : f32 to vector<8x16xf32>
    %530 = arith.mulf %529, %528 : vector<8x16xf32>
    %531 = vector.extract_strided_slice %509 {offsets = [0, 32], sizes = [8, 16], strides = [1, 1]} : vector<8x64xf32> to vector<8x16xf32>
    %532 = math.tanh %531 : vector<8x16xf32>
    %533 = vector.extract_strided_slice %509 {offsets = [0, 48], sizes = [8, 16], strides = [1, 1]} : vector<8x64xf32> to vector<8x16xf32>
    %cst_206 = arith.constant 5.000000e-01 : f32
    %534 = vector.broadcast %cst_206 : f32 to vector<8x16xf32>
    %535 = arith.mulf %534, %533 : vector<8x16xf32>
    %536 = math.tanh %535 : vector<8x16xf32>
    %cst_207 = arith.constant 1.000000e+00 : f32
    %537 = vector.broadcast %cst_207 : f32 to vector<8x16xf32>
    %538 = arith.addf %536, %537 : vector<8x16xf32>
    %cst_208 = arith.constant 5.000000e-01 : f32
    %539 = vector.broadcast %cst_208 : f32 to vector<8x16xf32>
    %540 = arith.mulf %539, %538 : vector<8x16xf32>
    %541 = arith.mulf %530, %462 : vector<8x16xf32>
    %542 = arith.mulf %522, %532 : vector<8x16xf32>
    %543 = arith.addf %541, %542 : vector<8x16xf32>
    %544 = math.tanh %543 : vector<8x16xf32>
    %545 = arith.mulf %540, %544 : vector<8x16xf32>
    %546 = vector.extract_strided_slice %514 {offsets = [0, 0], sizes = [8, 16], strides = [1, 1]} : vector<8x64xf32> to vector<8x16xf32>
    %cst_209 = arith.constant 5.000000e-01 : f32
    %547 = vector.broadcast %cst_209 : f32 to vector<8x16xf32>
    %548 = arith.mulf %547, %546 : vector<8x16xf32>
    %549 = math.tanh %548 : vector<8x16xf32>
    %cst_210 = arith.constant 1.000000e+00 : f32
    %550 = vector.broadcast %cst_210 : f32 to vector<8x16xf32>
    %551 = arith.addf %549, %550 : vector<8x16xf32>
    %cst_211 = arith.constant 5.000000e-01 : f32
    %552 = vector.broadcast %cst_211 : f32 to vector<8x16xf32>
    %553 = arith.mulf %552, %551 : vector<8x16xf32>
    %554 = vector.extract_strided_slice %514 {offsets = [0, 16], sizes = [8, 16], strides = [1, 1]} : vector<8x64xf32> to vector<8x16xf32>
    %cst_212 = arith.constant 5.000000e-01 : f32
    %555 = vector.broadcast %cst_212 : f32 to vector<8x16xf32>
    %556 = arith.mulf %555, %554 : vector<8x16xf32>
    %557 = math.tanh %556 : vector<8x16xf32>
    %cst_213 = arith.constant 1.000000e+00 : f32
    %558 = vector.broadcast %cst_213 : f32 to vector<8x16xf32>
    %559 = arith.addf %557, %558 : vector<8x16xf32>
    %cst_214 = arith.constant 5.000000e-01 : f32
    %560 = vector.broadcast %cst_214 : f32 to vector<8x16xf32>
    %561 = arith.mulf %560, %559 : vector<8x16xf32>
    %562 = vector.extract_strided_slice %514 {offsets = [0, 32], sizes = [8, 16], strides = [1, 1]} : vector<8x64xf32> to vector<8x16xf32>
    %563 = math.tanh %562 : vector<8x16xf32>
    %564 = vector.extract_strided_slice %514 {offsets = [0, 48], sizes = [8, 16], strides = [1, 1]} : vector<8x64xf32> to vector<8x16xf32>
    %cst_215 = arith.constant 5.000000e-01 : f32
    %565 = vector.broadcast %cst_215 : f32 to vector<8x16xf32>
    %566 = arith.mulf %565, %564 : vector<8x16xf32>
    %567 = math.tanh %566 : vector<8x16xf32>
    %cst_216 = arith.constant 1.000000e+00 : f32
    %568 = vector.broadcast %cst_216 : f32 to vector<8x16xf32>
    %569 = arith.addf %567, %568 : vector<8x16xf32>
    %cst_217 = arith.constant 5.000000e-01 : f32
    %570 = vector.broadcast %cst_217 : f32 to vector<8x16xf32>
    %571 = arith.mulf %570, %569 : vector<8x16xf32>
    %572 = arith.mulf %561, %493 : vector<8x16xf32>
    %573 = arith.mulf %553, %563 : vector<8x16xf32>
    %574 = arith.addf %572, %573 : vector<8x16xf32>
    %575 = math.tanh %574 : vector<8x16xf32>
    %576 = arith.mulf %571, %575 : vector<8x16xf32>
    %577 = arith.index_cast %c6_i32 : i32 to index
    %c0_218 = arith.constant 0 : index
    %c0_219 = arith.constant 0 : index
    %578 = vector.load %arg13[%577, %c0_218, %c0_219] : memref<8x8x16xf32, #tpu.memory_space<vmem>>, vector<1x8x16xf32>
    %579 = vector.shape_cast %578 : vector<1x8x16xf32> to vector<8x16xf32>
    %580 = vector.shape_cast %545 : vector<8x16xf32> to vector<1x8x16xf32>
    tpu.vector_store %arg13[%577, %c0_218, %c0_219], %580 {strides = array<i32>} : memref<8x8x16xf32, #tpu.memory_space<vmem>>, vector<1x8x16xf32>,
    %581 = arith.index_cast %504 : i32 to index
    %c0_220 = arith.constant 0 : index
    %c0_221 = arith.constant 0 : index
    %582 = vector.load %arg14[%581, %c0_220, %c0_221] : memref<8x8x16xf32, #tpu.memory_space<vmem>>, vector<1x8x16xf32>
    %583 = vector.shape_cast %582 : vector<1x8x16xf32> to vector<8x16xf32>
    %584 = vector.shape_cast %576 : vector<8x16xf32> to vector<1x8x16xf32>
    tpu.vector_store %arg14[%581, %c0_220, %c0_221], %584 {strides = array<i32>} : memref<8x8x16xf32, #tpu.memory_space<vmem>>, vector<1x8x16xf32>,
    %c7_i32_222 = arith.constant 7 : i32
    %c7_i32_223 = arith.constant 7 : i32
    %585 = arith.subi %c7_i32_223, %c7_i32_222 : i32
    %586 = arith.index_cast %c7_i32_222 : i32 to index
    %c0_224 = arith.constant 0 : index
    %c0_225 = arith.constant 0 : index
    %587 = vector.load %arg11[%586, %c0_224, %c0_225] : memref<8x8x64xf32, #tpu.memory_space<vmem>>, vector<1x8x64xf32>
    %588 = vector.shape_cast %587 : vector<1x8x64xf32> to vector<8x64xf32>
    %cst_226 = arith.constant dense<0.000000e+00> : vector<8x64xf32>
    %589 = tpu.matmul %545, %14, %cst_226 {dimension_numbers = #tpu.dot_dimension_numbers<[1], [0], [0], [1], [0, 0, 1, 1], [], []>} : vector<8x16xf32>, vector<16x64xf32>, vector<8x64xf32> -> vector<8x64xf32>
    %590 = arith.addf %588, %589 : vector<8x64xf32>
    %591 = arith.index_cast %585 : i32 to index
    %c0_227 = arith.constant 0 : index
    %c0_228 = arith.constant 0 : index
    %592 = vector.load %arg12[%591, %c0_227, %c0_228] : memref<8x8x64xf32, #tpu.memory_space<vmem>>, vector<1x8x64xf32>
    %593 = vector.shape_cast %592 : vector<1x8x64xf32> to vector<8x64xf32>
    %cst_229 = arith.constant dense<0.000000e+00> : vector<8x64xf32>
    %594 = tpu.matmul %576, %16, %cst_229 {dimension_numbers = #tpu.dot_dimension_numbers<[1], [0], [0], [1], [0, 0, 1, 1], [], []>} : vector<8x16xf32>, vector<16x64xf32>, vector<8x64xf32> -> vector<8x64xf32>
    %595 = arith.addf %593, %594 : vector<8x64xf32>
    %596 = vector.extract_strided_slice %590 {offsets = [0, 0], sizes = [8, 16], strides = [1, 1]} : vector<8x64xf32> to vector<8x16xf32>
    %cst_230 = arith.constant 5.000000e-01 : f32
    %597 = vector.broadcast %cst_230 : f32 to vector<8x16xf32>
    %598 = arith.mulf %597, %596 : vector<8x16xf32>
    %599 = math.tanh %598 : vector<8x16xf32>
    %cst_231 = arith.constant 1.000000e+00 : f32
    %600 = vector.broadcast %cst_231 : f32 to vector<8x16xf32>
    %601 = arith.addf %599, %600 : vector<8x16xf32>
    %cst_232 = arith.constant 5.000000e-01 : f32
    %602 = vector.broadcast %cst_232 : f32 to vector<8x16xf32>
    %603 = arith.mulf %602, %601 : vector<8x16xf32>
    %604 = vector.extract_strided_slice %590 {offsets = [0, 16], sizes = [8, 16], strides = [1, 1]} : vector<8x64xf32> to vector<8x16xf32>
    %cst_233 = arith.constant 5.000000e-01 : f32
    %605 = vector.broadcast %cst_233 : f32 to vector<8x16xf32>
    %606 = arith.mulf %605, %604 : vector<8x16xf32>
    %607 = math.tanh %606 : vector<8x16xf32>
    %cst_234 = arith.constant 1.000000e+00 : f32
    %608 = vector.broadcast %cst_234 : f32 to vector<8x16xf32>
    %609 = arith.addf %607, %608 : vector<8x16xf32>
    %cst_235 = arith.constant 5.000000e-01 : f32
    %610 = vector.broadcast %cst_235 : f32 to vector<8x16xf32>
    %611 = arith.mulf %610, %609 : vector<8x16xf32>
    %612 = vector.extract_strided_slice %590 {offsets = [0, 32], sizes = [8, 16], strides = [1, 1]} : vector<8x64xf32> to vector<8x16xf32>
    %613 = math.tanh %612 : vector<8x16xf32>
    %614 = vector.extract_strided_slice %590 {offsets = [0, 48], sizes = [8, 16], strides = [1, 1]} : vector<8x64xf32> to vector<8x16xf32>
    %cst_236 = arith.constant 5.000000e-01 : f32
    %615 = vector.broadcast %cst_236 : f32 to vector<8x16xf32>
    %616 = arith.mulf %615, %614 : vector<8x16xf32>
    %617 = math.tanh %616 : vector<8x16xf32>
    %cst_237 = arith.constant 1.000000e+00 : f32
    %618 = vector.broadcast %cst_237 : f32 to vector<8x16xf32>
    %619 = arith.addf %617, %618 : vector<8x16xf32>
    %cst_238 = arith.constant 5.000000e-01 : f32
    %620 = vector.broadcast %cst_238 : f32 to vector<8x16xf32>
    %621 = arith.mulf %620, %619 : vector<8x16xf32>
    %622 = arith.mulf %611, %543 : vector<8x16xf32>
    %623 = arith.mulf %603, %613 : vector<8x16xf32>
    %624 = arith.addf %622, %623 : vector<8x16xf32>
    %625 = math.tanh %624 : vector<8x16xf32>
    %626 = arith.mulf %621, %625 : vector<8x16xf32>
    %627 = vector.extract_strided_slice %595 {offsets = [0, 0], sizes = [8, 16], strides = [1, 1]} : vector<8x64xf32> to vector<8x16xf32>
    %cst_239 = arith.constant 5.000000e-01 : f32
    %628 = vector.broadcast %cst_239 : f32 to vector<8x16xf32>
    %629 = arith.mulf %628, %627 : vector<8x16xf32>
    %630 = math.tanh %629 : vector<8x16xf32>
    %cst_240 = arith.constant 1.000000e+00 : f32
    %631 = vector.broadcast %cst_240 : f32 to vector<8x16xf32>
    %632 = arith.addf %630, %631 : vector<8x16xf32>
    %cst_241 = arith.constant 5.000000e-01 : f32
    %633 = vector.broadcast %cst_241 : f32 to vector<8x16xf32>
    %634 = arith.mulf %633, %632 : vector<8x16xf32>
    %635 = vector.extract_strided_slice %595 {offsets = [0, 16], sizes = [8, 16], strides = [1, 1]} : vector<8x64xf32> to vector<8x16xf32>
    %cst_242 = arith.constant 5.000000e-01 : f32
    %636 = vector.broadcast %cst_242 : f32 to vector<8x16xf32>
    %637 = arith.mulf %636, %635 : vector<8x16xf32>
    %638 = math.tanh %637 : vector<8x16xf32>
    %cst_243 = arith.constant 1.000000e+00 : f32
    %639 = vector.broadcast %cst_243 : f32 to vector<8x16xf32>
    %640 = arith.addf %638, %639 : vector<8x16xf32>
    %cst_244 = arith.constant 5.000000e-01 : f32
    %641 = vector.broadcast %cst_244 : f32 to vector<8x16xf32>
    %642 = arith.mulf %641, %640 : vector<8x16xf32>
    %643 = vector.extract_strided_slice %595 {offsets = [0, 32], sizes = [8, 16], strides = [1, 1]} : vector<8x64xf32> to vector<8x16xf32>
    %644 = math.tanh %643 : vector<8x16xf32>
    %645 = vector.extract_strided_slice %595 {offsets = [0, 48], sizes = [8, 16], strides = [1, 1]} : vector<8x64xf32> to vector<8x16xf32>
    %cst_245 = arith.constant 5.000000e-01 : f32
    %646 = vector.broadcast %cst_245 : f32 to vector<8x16xf32>
    %647 = arith.mulf %646, %645 : vector<8x16xf32>
    %648 = math.tanh %647 : vector<8x16xf32>
    %cst_246 = arith.constant 1.000000e+00 : f32
    %649 = vector.broadcast %cst_246 : f32 to vector<8x16xf32>
    %650 = arith.addf %648, %649 : vector<8x16xf32>
    %cst_247 = arith.constant 5.000000e-01 : f32
    %651 = vector.broadcast %cst_247 : f32 to vector<8x16xf32>
    %652 = arith.mulf %651, %650 : vector<8x16xf32>
    %653 = arith.mulf %642, %574 : vector<8x16xf32>
    %654 = arith.mulf %634, %644 : vector<8x16xf32>
    %655 = arith.addf %653, %654 : vector<8x16xf32>
    %656 = math.tanh %655 : vector<8x16xf32>
    %657 = arith.mulf %652, %656 : vector<8x16xf32>
    %658 = arith.index_cast %c7_i32_222 : i32 to index
    %c0_248 = arith.constant 0 : index
    %c0_249 = arith.constant 0 : index
    %659 = vector.load %arg13[%658, %c0_248, %c0_249] : memref<8x8x16xf32, #tpu.memory_space<vmem>>, vector<1x8x16xf32>
    %660 = vector.shape_cast %659 : vector<1x8x16xf32> to vector<8x16xf32>
    %661 = vector.shape_cast %626 : vector<8x16xf32> to vector<1x8x16xf32>
    tpu.vector_store %arg13[%658, %c0_248, %c0_249], %661 {strides = array<i32>} : memref<8x8x16xf32, #tpu.memory_space<vmem>>, vector<1x8x16xf32>,
    %662 = arith.index_cast %585 : i32 to index
    %c0_250 = arith.constant 0 : index
    %c0_251 = arith.constant 0 : index
    %663 = vector.load %arg14[%662, %c0_250, %c0_251] : memref<8x8x16xf32, #tpu.memory_space<vmem>>, vector<1x8x16xf32>
    %664 = vector.shape_cast %663 : vector<1x8x16xf32> to vector<8x16xf32>
    %665 = vector.shape_cast %657 : vector<8x16xf32> to vector<1x8x16xf32>
    tpu.vector_store %arg14[%662, %c0_250, %c0_251], %665 {strides = array<i32>} : memref<8x8x16xf32, #tpu.memory_space<vmem>>, vector<1x8x16xf32>,
    %c8_i32 = arith.constant 8 : i32
    %c0_252 = arith.constant 0 : index
    %c0_253 = arith.constant 0 : index
    %c0_254 = arith.constant 0 : index
    %666 = vector.load %arg13[%c0_252, %c0_253, %c0_254] : memref<8x8x16xf32, #tpu.memory_space<vmem>>, vector<8x8x16xf32>
    %667 = vector.shape_cast %666 : vector<8x8x16xf32> to vector<64x16xf32>
    %c0_255 = arith.constant 0 : index
    %c0_256 = arith.constant 0 : index
    %c0_257 = arith.constant 0 : index
    %668 = vector.load %arg3[%c0_255, %c0_256, %c0_257] : memref<2x16x128xf32, #tpu.memory_space<vmem>>, vector<1x16x128xf32>
    %669 = vector.shape_cast %668 : vector<1x16x128xf32> to vector<16x128xf32>
    %cst_258 = arith.constant dense<0.000000e+00> : vector<64x128xf32>
    %670 = tpu.matmul %667, %669, %cst_258 {dimension_numbers = #tpu.dot_dimension_numbers<[1], [0], [0], [1], [0, 0, 1, 1], [], []>} : vector<64x16xf32>, vector<16x128xf32>, vector<64x128xf32> -> vector<64x128xf32>
    %c0_259 = arith.constant 0 : index
    %c0_260 = arith.constant 0 : index
    %c0_261 = arith.constant 0 : index
    %671 = vector.load %arg14[%c0_259, %c0_260, %c0_261] : memref<8x8x16xf32, #tpu.memory_space<vmem>>, vector<8x8x16xf32>
    %672 = vector.shape_cast %671 : vector<8x8x16xf32> to vector<64x16xf32>
    %c1_262 = arith.constant 1 : index
    %c0_263 = arith.constant 0 : index
    %c0_264 = arith.constant 0 : index
    %673 = vector.load %arg3[%c1_262, %c0_263, %c0_264] : memref<2x16x128xf32, #tpu.memory_space<vmem>>, vector<1x16x128xf32>
    %674 = vector.shape_cast %673 : vector<1x16x128xf32> to vector<16x128xf32>
    %cst_265 = arith.constant dense<0.000000e+00> : vector<64x128xf32>
    %675 = tpu.matmul %672, %674, %cst_265 {dimension_numbers = #tpu.dot_dimension_numbers<[1], [0], [0], [1], [0, 0, 1, 1], [], []>} : vector<64x16xf32>, vector<16x128xf32>, vector<64x128xf32> -> vector<64x128xf32>
    %676 = arith.addf %670, %675 : vector<64x128xf32>
    %c0_266 = arith.constant 0 : index
    %c0_267 = arith.constant 0 : index
    %677 = vector.load %arg5[%c0_266, %c0_267] : memref<1x128xf32, #tpu.memory_space<vmem>>, vector<1x128xf32>
    %678 = vector.broadcast %677 : vector<1x128xf32> to vector<64x128xf32>
    %679 = arith.addf %676, %678 : vector<64x128xf32>
    %680 = vector.extract_strided_slice %679 {offsets = [0, 0], sizes = [64, 64], strides = [1, 1]} : vector<64x128xf32> to vector<64x64xf32>
    %681 = vector.shape_cast %680 : vector<64x64xf32> to vector<8x8x64xf32>
    %c0_268 = arith.constant 0 : index
    %c0_269 = arith.constant 0 : index
    %c0_270 = arith.constant 0 : index
    %682 = vector.load %arg11[%c0_268, %c0_269, %c0_270] : memref<8x8x64xf32, #tpu.memory_space<vmem>>, vector<8x8x64xf32>
    tpu.vector_store %arg11[%c0_268, %c0_269, %c0_270], %681 {strides = array<i32>} : memref<8x8x64xf32, #tpu.memory_space<vmem>>, vector<8x8x64xf32>,
    %683 = vector.extract_strided_slice %679 {offsets = [0, 64], sizes = [64, 64], strides = [1, 1]} : vector<64x128xf32> to vector<64x64xf32>
    %684 = vector.shape_cast %683 : vector<64x64xf32> to vector<8x8x64xf32>
    %c0_271 = arith.constant 0 : index
    %c0_272 = arith.constant 0 : index
    %c0_273 = arith.constant 0 : index
    %685 = vector.load %arg12[%c0_271, %c0_272, %c0_273] : memref<8x8x64xf32, #tpu.memory_space<vmem>>, vector<8x8x64xf32>
    tpu.vector_store %arg12[%c0_271, %c0_272, %c0_273], %684 {strides = array<i32>} : memref<8x8x64xf32, #tpu.memory_space<vmem>>, vector<8x8x64xf32>,
    %c1_274 = arith.constant 1 : index
    %c0_275 = arith.constant 0 : index
    %c0_276 = arith.constant 0 : index
    %c0_277 = arith.constant 0 : index
    %686 = vector.load %arg6[%c1_274, %c0_275, %c0_276, %c0_277] : memref<2x2x16x64xf32, #tpu.memory_space<vmem>>, vector<1x1x16x64xf32>
    %687 = vector.shape_cast %686 : vector<1x1x16x64xf32> to vector<16x64xf32>
    %c1_278 = arith.constant 1 : index
    %c1_279 = arith.constant 1 : index
    %c0_280 = arith.constant 0 : index
    %c0_281 = arith.constant 0 : index
    %688 = vector.load %arg6[%c1_278, %c1_279, %c0_280, %c0_281] : memref<2x2x16x64xf32, #tpu.memory_space<vmem>>, vector<1x1x16x64xf32>
    %689 = vector.shape_cast %688 : vector<1x1x16x64xf32> to vector<16x64xf32>
    %cst_282 = arith.constant 0.000000e+00 : f32
    %690 = vector.broadcast %cst_282 : f32 to vector<8x16xf32>
    %c0_i32_283 = arith.constant 0 : i32
    %c7_i32_284 = arith.constant 7 : i32
    %691 = arith.subi %c7_i32_284, %c0_i32_283 : i32
    %692 = arith.index_cast %c0_i32_283 : i32 to index
    %c0_285 = arith.constant 0 : index
    %c0_286 = arith.constant 0 : index
    %693 = vector.load %arg11[%692, %c0_285, %c0_286] : memref<8x8x64xf32, #tpu.memory_space<vmem>>, vector<1x8x64xf32>
    %694 = vector.shape_cast %693 : vector<1x8x64xf32> to vector<8x64xf32>
    %cst_287 = arith.constant dense<0.000000e+00> : vector<8x64xf32>
    %695 = tpu.matmul %690, %687, %cst_287 {dimension_numbers = #tpu.dot_dimension_numbers<[1], [0], [0], [1], [0, 0, 1, 1], [], []>} : vector<8x16xf32>, vector<16x64xf32>, vector<8x64xf32> -> vector<8x64xf32>
    %696 = arith.addf %694, %695 : vector<8x64xf32>
    %697 = arith.index_cast %691 : i32 to index
    %c0_288 = arith.constant 0 : index
    %c0_289 = arith.constant 0 : index
    %698 = vector.load %arg12[%697, %c0_288, %c0_289] : memref<8x8x64xf32, #tpu.memory_space<vmem>>, vector<1x8x64xf32>
    %699 = vector.shape_cast %698 : vector<1x8x64xf32> to vector<8x64xf32>
    %cst_290 = arith.constant dense<0.000000e+00> : vector<8x64xf32>
    %700 = tpu.matmul %690, %689, %cst_290 {dimension_numbers = #tpu.dot_dimension_numbers<[1], [0], [0], [1], [0, 0, 1, 1], [], []>} : vector<8x16xf32>, vector<16x64xf32>, vector<8x64xf32> -> vector<8x64xf32>
    %701 = arith.addf %699, %700 : vector<8x64xf32>
    %702 = vector.extract_strided_slice %696 {offsets = [0, 0], sizes = [8, 16], strides = [1, 1]} : vector<8x64xf32> to vector<8x16xf32>
    %cst_291 = arith.constant 5.000000e-01 : f32
    %703 = vector.broadcast %cst_291 : f32 to vector<8x16xf32>
    %704 = arith.mulf %703, %702 : vector<8x16xf32>
    %705 = math.tanh %704 : vector<8x16xf32>
    %cst_292 = arith.constant 1.000000e+00 : f32
    %706 = vector.broadcast %cst_292 : f32 to vector<8x16xf32>
    %707 = arith.addf %705, %706 : vector<8x16xf32>
    %cst_293 = arith.constant 5.000000e-01 : f32
    %708 = vector.broadcast %cst_293 : f32 to vector<8x16xf32>
    %709 = arith.mulf %708, %707 : vector<8x16xf32>
    %710 = vector.extract_strided_slice %696 {offsets = [0, 16], sizes = [8, 16], strides = [1, 1]} : vector<8x64xf32> to vector<8x16xf32>
    %cst_294 = arith.constant 5.000000e-01 : f32
    %711 = vector.broadcast %cst_294 : f32 to vector<8x16xf32>
    %712 = arith.mulf %711, %710 : vector<8x16xf32>
    %713 = math.tanh %712 : vector<8x16xf32>
    %cst_295 = arith.constant 1.000000e+00 : f32
    %714 = vector.broadcast %cst_295 : f32 to vector<8x16xf32>
    %715 = arith.addf %713, %714 : vector<8x16xf32>
    %cst_296 = arith.constant 5.000000e-01 : f32
    %716 = vector.broadcast %cst_296 : f32 to vector<8x16xf32>
    %717 = arith.mulf %716, %715 : vector<8x16xf32>
    %718 = vector.extract_strided_slice %696 {offsets = [0, 32], sizes = [8, 16], strides = [1, 1]} : vector<8x64xf32> to vector<8x16xf32>
    %719 = math.tanh %718 : vector<8x16xf32>
    %720 = vector.extract_strided_slice %696 {offsets = [0, 48], sizes = [8, 16], strides = [1, 1]} : vector<8x64xf32> to vector<8x16xf32>
    %cst_297 = arith.constant 5.000000e-01 : f32
    %721 = vector.broadcast %cst_297 : f32 to vector<8x16xf32>
    %722 = arith.mulf %721, %720 : vector<8x16xf32>
    %723 = math.tanh %722 : vector<8x16xf32>
    %cst_298 = arith.constant 1.000000e+00 : f32
    %724 = vector.broadcast %cst_298 : f32 to vector<8x16xf32>
    %725 = arith.addf %723, %724 : vector<8x16xf32>
    %cst_299 = arith.constant 5.000000e-01 : f32
    %726 = vector.broadcast %cst_299 : f32 to vector<8x16xf32>
    %727 = arith.mulf %726, %725 : vector<8x16xf32>
    %728 = arith.mulf %717, %690 : vector<8x16xf32>
    %729 = arith.mulf %709, %719 : vector<8x16xf32>
    %730 = arith.addf %728, %729 : vector<8x16xf32>
    %731 = math.tanh %730 : vector<8x16xf32>
    %732 = arith.mulf %727, %731 : vector<8x16xf32>
    %733 = vector.extract_strided_slice %701 {offsets = [0, 0], sizes = [8, 16], strides = [1, 1]} : vector<8x64xf32> to vector<8x16xf32>
    %cst_300 = arith.constant 5.000000e-01 : f32
    %734 = vector.broadcast %cst_300 : f32 to vector<8x16xf32>
    %735 = arith.mulf %734, %733 : vector<8x16xf32>
    %736 = math.tanh %735 : vector<8x16xf32>
    %cst_301 = arith.constant 1.000000e+00 : f32
    %737 = vector.broadcast %cst_301 : f32 to vector<8x16xf32>
    %738 = arith.addf %736, %737 : vector<8x16xf32>
    %cst_302 = arith.constant 5.000000e-01 : f32
    %739 = vector.broadcast %cst_302 : f32 to vector<8x16xf32>
    %740 = arith.mulf %739, %738 : vector<8x16xf32>
    %741 = vector.extract_strided_slice %701 {offsets = [0, 16], sizes = [8, 16], strides = [1, 1]} : vector<8x64xf32> to vector<8x16xf32>
    %cst_303 = arith.constant 5.000000e-01 : f32
    %742 = vector.broadcast %cst_303 : f32 to vector<8x16xf32>
    %743 = arith.mulf %742, %741 : vector<8x16xf32>
    %744 = math.tanh %743 : vector<8x16xf32>
    %cst_304 = arith.constant 1.000000e+00 : f32
    %745 = vector.broadcast %cst_304 : f32 to vector<8x16xf32>
    %746 = arith.addf %744, %745 : vector<8x16xf32>
    %cst_305 = arith.constant 5.000000e-01 : f32
    %747 = vector.broadcast %cst_305 : f32 to vector<8x16xf32>
    %748 = arith.mulf %747, %746 : vector<8x16xf32>
    %749 = vector.extract_strided_slice %701 {offsets = [0, 32], sizes = [8, 16], strides = [1, 1]} : vector<8x64xf32> to vector<8x16xf32>
    %750 = math.tanh %749 : vector<8x16xf32>
    %751 = vector.extract_strided_slice %701 {offsets = [0, 48], sizes = [8, 16], strides = [1, 1]} : vector<8x64xf32> to vector<8x16xf32>
    %cst_306 = arith.constant 5.000000e-01 : f32
    %752 = vector.broadcast %cst_306 : f32 to vector<8x16xf32>
    %753 = arith.mulf %752, %751 : vector<8x16xf32>
    %754 = math.tanh %753 : vector<8x16xf32>
    %cst_307 = arith.constant 1.000000e+00 : f32
    %755 = vector.broadcast %cst_307 : f32 to vector<8x16xf32>
    %756 = arith.addf %754, %755 : vector<8x16xf32>
    %cst_308 = arith.constant 5.000000e-01 : f32
    %757 = vector.broadcast %cst_308 : f32 to vector<8x16xf32>
    %758 = arith.mulf %757, %756 : vector<8x16xf32>
    %759 = arith.mulf %748, %690 : vector<8x16xf32>
    %760 = arith.mulf %740, %750 : vector<8x16xf32>
    %761 = arith.addf %759, %760 : vector<8x16xf32>
    %762 = math.tanh %761 : vector<8x16xf32>
    %763 = arith.mulf %758, %762 : vector<8x16xf32>
    %764 = arith.index_cast %c0_i32_283 : i32 to index
    %c0_309 = arith.constant 0 : index
    %c0_310 = arith.constant 0 : index
    %765 = vector.load %arg13[%764, %c0_309, %c0_310] : memref<8x8x16xf32, #tpu.memory_space<vmem>>, vector<1x8x16xf32>
    %766 = vector.shape_cast %765 : vector<1x8x16xf32> to vector<8x16xf32>
    %767 = vector.shape_cast %732 : vector<8x16xf32> to vector<1x8x16xf32>
    tpu.vector_store %arg13[%764, %c0_309, %c0_310], %767 {strides = array<i32>} : memref<8x8x16xf32, #tpu.memory_space<vmem>>, vector<1x8x16xf32>,
    %768 = arith.index_cast %691 : i32 to index
    %c0_311 = arith.constant 0 : index
    %c0_312 = arith.constant 0 : index
    %769 = vector.load %arg14[%768, %c0_311, %c0_312] : memref<8x8x16xf32, #tpu.memory_space<vmem>>, vector<1x8x16xf32>
    %770 = vector.shape_cast %769 : vector<1x8x16xf32> to vector<8x16xf32>
    %771 = vector.shape_cast %763 : vector<8x16xf32> to vector<1x8x16xf32>
    tpu.vector_store %arg14[%768, %c0_311, %c0_312], %771 {strides = array<i32>} : memref<8x8x16xf32, #tpu.memory_space<vmem>>, vector<1x8x16xf32>,
    %c1_i32_313 = arith.constant 1 : i32
    %c7_i32_314 = arith.constant 7 : i32
    %772 = arith.subi %c7_i32_314, %c1_i32_313 : i32
    %773 = arith.index_cast %c1_i32_313 : i32 to index
    %c0_315 = arith.constant 0 : index
    %c0_316 = arith.constant 0 : index
    %774 = vector.load %arg11[%773, %c0_315, %c0_316] : memref<8x8x64xf32, #tpu.memory_space<vmem>>, vector<1x8x64xf32>
    %775 = vector.shape_cast %774 : vector<1x8x64xf32> to vector<8x64xf32>
    %cst_317 = arith.constant dense<0.000000e+00> : vector<8x64xf32>
    %776 = tpu.matmul %732, %687, %cst_317 {dimension_numbers = #tpu.dot_dimension_numbers<[1], [0], [0], [1], [0, 0, 1, 1], [], []>} : vector<8x16xf32>, vector<16x64xf32>, vector<8x64xf32> -> vector<8x64xf32>
    %777 = arith.addf %775, %776 : vector<8x64xf32>
    %778 = arith.index_cast %772 : i32 to index
    %c0_318 = arith.constant 0 : index
    %c0_319 = arith.constant 0 : index
    %779 = vector.load %arg12[%778, %c0_318, %c0_319] : memref<8x8x64xf32, #tpu.memory_space<vmem>>, vector<1x8x64xf32>
    %780 = vector.shape_cast %779 : vector<1x8x64xf32> to vector<8x64xf32>
    %cst_320 = arith.constant dense<0.000000e+00> : vector<8x64xf32>
    %781 = tpu.matmul %763, %689, %cst_320 {dimension_numbers = #tpu.dot_dimension_numbers<[1], [0], [0], [1], [0, 0, 1, 1], [], []>} : vector<8x16xf32>, vector<16x64xf32>, vector<8x64xf32> -> vector<8x64xf32>
    %782 = arith.addf %780, %781 : vector<8x64xf32>
    %783 = vector.extract_strided_slice %777 {offsets = [0, 0], sizes = [8, 16], strides = [1, 1]} : vector<8x64xf32> to vector<8x16xf32>
    %cst_321 = arith.constant 5.000000e-01 : f32
    %784 = vector.broadcast %cst_321 : f32 to vector<8x16xf32>
    %785 = arith.mulf %784, %783 : vector<8x16xf32>
    %786 = math.tanh %785 : vector<8x16xf32>
    %cst_322 = arith.constant 1.000000e+00 : f32
    %787 = vector.broadcast %cst_322 : f32 to vector<8x16xf32>
    %788 = arith.addf %786, %787 : vector<8x16xf32>
    %cst_323 = arith.constant 5.000000e-01 : f32
    %789 = vector.broadcast %cst_323 : f32 to vector<8x16xf32>
    %790 = arith.mulf %789, %788 : vector<8x16xf32>
    %791 = vector.extract_strided_slice %777 {offsets = [0, 16], sizes = [8, 16], strides = [1, 1]} : vector<8x64xf32> to vector<8x16xf32>
    %cst_324 = arith.constant 5.000000e-01 : f32
    %792 = vector.broadcast %cst_324 : f32 to vector<8x16xf32>
    %793 = arith.mulf %792, %791 : vector<8x16xf32>
    %794 = math.tanh %793 : vector<8x16xf32>
    %cst_325 = arith.constant 1.000000e+00 : f32
    %795 = vector.broadcast %cst_325 : f32 to vector<8x16xf32>
    %796 = arith.addf %794, %795 : vector<8x16xf32>
    %cst_326 = arith.constant 5.000000e-01 : f32
    %797 = vector.broadcast %cst_326 : f32 to vector<8x16xf32>
    %798 = arith.mulf %797, %796 : vector<8x16xf32>
    %799 = vector.extract_strided_slice %777 {offsets = [0, 32], sizes = [8, 16], strides = [1, 1]} : vector<8x64xf32> to vector<8x16xf32>
    %800 = math.tanh %799 : vector<8x16xf32>
    %801 = vector.extract_strided_slice %777 {offsets = [0, 48], sizes = [8, 16], strides = [1, 1]} : vector<8x64xf32> to vector<8x16xf32>
    %cst_327 = arith.constant 5.000000e-01 : f32
    %802 = vector.broadcast %cst_327 : f32 to vector<8x16xf32>
    %803 = arith.mulf %802, %801 : vector<8x16xf32>
    %804 = math.tanh %803 : vector<8x16xf32>
    %cst_328 = arith.constant 1.000000e+00 : f32
    %805 = vector.broadcast %cst_328 : f32 to vector<8x16xf32>
    %806 = arith.addf %804, %805 : vector<8x16xf32>
    %cst_329 = arith.constant 5.000000e-01 : f32
    %807 = vector.broadcast %cst_329 : f32 to vector<8x16xf32>
    %808 = arith.mulf %807, %806 : vector<8x16xf32>
    %809 = arith.mulf %798, %730 : vector<8x16xf32>
    %810 = arith.mulf %790, %800 : vector<8x16xf32>
    %811 = arith.addf %809, %810 : vector<8x16xf32>
    %812 = math.tanh %811 : vector<8x16xf32>
    %813 = arith.mulf %808, %812 : vector<8x16xf32>
    %814 = vector.extract_strided_slice %782 {offsets = [0, 0], sizes = [8, 16], strides = [1, 1]} : vector<8x64xf32> to vector<8x16xf32>
    %cst_330 = arith.constant 5.000000e-01 : f32
    %815 = vector.broadcast %cst_330 : f32 to vector<8x16xf32>
    %816 = arith.mulf %815, %814 : vector<8x16xf32>
    %817 = math.tanh %816 : vector<8x16xf32>
    %cst_331 = arith.constant 1.000000e+00 : f32
    %818 = vector.broadcast %cst_331 : f32 to vector<8x16xf32>
    %819 = arith.addf %817, %818 : vector<8x16xf32>
    %cst_332 = arith.constant 5.000000e-01 : f32
    %820 = vector.broadcast %cst_332 : f32 to vector<8x16xf32>
    %821 = arith.mulf %820, %819 : vector<8x16xf32>
    %822 = vector.extract_strided_slice %782 {offsets = [0, 16], sizes = [8, 16], strides = [1, 1]} : vector<8x64xf32> to vector<8x16xf32>
    %cst_333 = arith.constant 5.000000e-01 : f32
    %823 = vector.broadcast %cst_333 : f32 to vector<8x16xf32>
    %824 = arith.mulf %823, %822 : vector<8x16xf32>
    %825 = math.tanh %824 : vector<8x16xf32>
    %cst_334 = arith.constant 1.000000e+00 : f32
    %826 = vector.broadcast %cst_334 : f32 to vector<8x16xf32>
    %827 = arith.addf %825, %826 : vector<8x16xf32>
    %cst_335 = arith.constant 5.000000e-01 : f32
    %828 = vector.broadcast %cst_335 : f32 to vector<8x16xf32>
    %829 = arith.mulf %828, %827 : vector<8x16xf32>
    %830 = vector.extract_strided_slice %782 {offsets = [0, 32], sizes = [8, 16], strides = [1, 1]} : vector<8x64xf32> to vector<8x16xf32>
    %831 = math.tanh %830 : vector<8x16xf32>
    %832 = vector.extract_strided_slice %782 {offsets = [0, 48], sizes = [8, 16], strides = [1, 1]} : vector<8x64xf32> to vector<8x16xf32>
    %cst_336 = arith.constant 5.000000e-01 : f32
    %833 = vector.broadcast %cst_336 : f32 to vector<8x16xf32>
    %834 = arith.mulf %833, %832 : vector<8x16xf32>
    %835 = math.tanh %834 : vector<8x16xf32>
    %cst_337 = arith.constant 1.000000e+00 : f32
    %836 = vector.broadcast %cst_337 : f32 to vector<8x16xf32>
    %837 = arith.addf %835, %836 : vector<8x16xf32>
    %cst_338 = arith.constant 5.000000e-01 : f32
    %838 = vector.broadcast %cst_338 : f32 to vector<8x16xf32>
    %839 = arith.mulf %838, %837 : vector<8x16xf32>
    %840 = arith.mulf %829, %761 : vector<8x16xf32>
    %841 = arith.mulf %821, %831 : vector<8x16xf32>
    %842 = arith.addf %840, %841 : vector<8x16xf32>
    %843 = math.tanh %842 : vector<8x16xf32>
    %844 = arith.mulf %839, %843 : vector<8x16xf32>
    %845 = arith.index_cast %c1_i32_313 : i32 to index
    %c0_339 = arith.constant 0 : index
    %c0_340 = arith.constant 0 : index
    %846 = vector.load %arg13[%845, %c0_339, %c0_340] : memref<8x8x16xf32, #tpu.memory_space<vmem>>, vector<1x8x16xf32>
    %847 = vector.shape_cast %846 : vector<1x8x16xf32> to vector<8x16xf32>
    %848 = vector.shape_cast %813 : vector<8x16xf32> to vector<1x8x16xf32>
    tpu.vector_store %arg13[%845, %c0_339, %c0_340], %848 {strides = array<i32>} : memref<8x8x16xf32, #tpu.memory_space<vmem>>, vector<1x8x16xf32>,
    %849 = arith.index_cast %772 : i32 to index
    %c0_341 = arith.constant 0 : index
    %c0_342 = arith.constant 0 : index
    %850 = vector.load %arg14[%849, %c0_341, %c0_342] : memref<8x8x16xf32, #tpu.memory_space<vmem>>, vector<1x8x16xf32>
    %851 = vector.shape_cast %850 : vector<1x8x16xf32> to vector<8x16xf32>
    %852 = vector.shape_cast %844 : vector<8x16xf32> to vector<1x8x16xf32>
    tpu.vector_store %arg14[%849, %c0_341, %c0_342], %852 {strides = array<i32>} : memref<8x8x16xf32, #tpu.memory_space<vmem>>, vector<1x8x16xf32>,
    %c2_i32_343 = arith.constant 2 : i32
    %c7_i32_344 = arith.constant 7 : i32
    %853 = arith.subi %c7_i32_344, %c2_i32_343 : i32
    %854 = arith.index_cast %c2_i32_343 : i32 to index
    %c0_345 = arith.constant 0 : index
    %c0_346 = arith.constant 0 : index
    %855 = vector.load %arg11[%854, %c0_345, %c0_346] : memref<8x8x64xf32, #tpu.memory_space<vmem>>, vector<1x8x64xf32>
    %856 = vector.shape_cast %855 : vector<1x8x64xf32> to vector<8x64xf32>
    %cst_347 = arith.constant dense<0.000000e+00> : vector<8x64xf32>
    %857 = tpu.matmul %813, %687, %cst_347 {dimension_numbers = #tpu.dot_dimension_numbers<[1], [0], [0], [1], [0, 0, 1, 1], [], []>} : vector<8x16xf32>, vector<16x64xf32>, vector<8x64xf32> -> vector<8x64xf32>
    %858 = arith.addf %856, %857 : vector<8x64xf32>
    %859 = arith.index_cast %853 : i32 to index
    %c0_348 = arith.constant 0 : index
    %c0_349 = arith.constant 0 : index
    %860 = vector.load %arg12[%859, %c0_348, %c0_349] : memref<8x8x64xf32, #tpu.memory_space<vmem>>, vector<1x8x64xf32>
    %861 = vector.shape_cast %860 : vector<1x8x64xf32> to vector<8x64xf32>
    %cst_350 = arith.constant dense<0.000000e+00> : vector<8x64xf32>
    %862 = tpu.matmul %844, %689, %cst_350 {dimension_numbers = #tpu.dot_dimension_numbers<[1], [0], [0], [1], [0, 0, 1, 1], [], []>} : vector<8x16xf32>, vector<16x64xf32>, vector<8x64xf32> -> vector<8x64xf32>
    %863 = arith.addf %861, %862 : vector<8x64xf32>
    %864 = vector.extract_strided_slice %858 {offsets = [0, 0], sizes = [8, 16], strides = [1, 1]} : vector<8x64xf32> to vector<8x16xf32>
    %cst_351 = arith.constant 5.000000e-01 : f32
    %865 = vector.broadcast %cst_351 : f32 to vector<8x16xf32>
    %866 = arith.mulf %865, %864 : vector<8x16xf32>
    %867 = math.tanh %866 : vector<8x16xf32>
    %cst_352 = arith.constant 1.000000e+00 : f32
    %868 = vector.broadcast %cst_352 : f32 to vector<8x16xf32>
    %869 = arith.addf %867, %868 : vector<8x16xf32>
    %cst_353 = arith.constant 5.000000e-01 : f32
    %870 = vector.broadcast %cst_353 : f32 to vector<8x16xf32>
    %871 = arith.mulf %870, %869 : vector<8x16xf32>
    %872 = vector.extract_strided_slice %858 {offsets = [0, 16], sizes = [8, 16], strides = [1, 1]} : vector<8x64xf32> to vector<8x16xf32>
    %cst_354 = arith.constant 5.000000e-01 : f32
    %873 = vector.broadcast %cst_354 : f32 to vector<8x16xf32>
    %874 = arith.mulf %873, %872 : vector<8x16xf32>
    %875 = math.tanh %874 : vector<8x16xf32>
    %cst_355 = arith.constant 1.000000e+00 : f32
    %876 = vector.broadcast %cst_355 : f32 to vector<8x16xf32>
    %877 = arith.addf %875, %876 : vector<8x16xf32>
    %cst_356 = arith.constant 5.000000e-01 : f32
    %878 = vector.broadcast %cst_356 : f32 to vector<8x16xf32>
    %879 = arith.mulf %878, %877 : vector<8x16xf32>
    %880 = vector.extract_strided_slice %858 {offsets = [0, 32], sizes = [8, 16], strides = [1, 1]} : vector<8x64xf32> to vector<8x16xf32>
    %881 = math.tanh %880 : vector<8x16xf32>
    %882 = vector.extract_strided_slice %858 {offsets = [0, 48], sizes = [8, 16], strides = [1, 1]} : vector<8x64xf32> to vector<8x16xf32>
    %cst_357 = arith.constant 5.000000e-01 : f32
    %883 = vector.broadcast %cst_357 : f32 to vector<8x16xf32>
    %884 = arith.mulf %883, %882 : vector<8x16xf32>
    %885 = math.tanh %884 : vector<8x16xf32>
    %cst_358 = arith.constant 1.000000e+00 : f32
    %886 = vector.broadcast %cst_358 : f32 to vector<8x16xf32>
    %887 = arith.addf %885, %886 : vector<8x16xf32>
    %cst_359 = arith.constant 5.000000e-01 : f32
    %888 = vector.broadcast %cst_359 : f32 to vector<8x16xf32>
    %889 = arith.mulf %888, %887 : vector<8x16xf32>
    %890 = arith.mulf %879, %811 : vector<8x16xf32>
    %891 = arith.mulf %871, %881 : vector<8x16xf32>
    %892 = arith.addf %890, %891 : vector<8x16xf32>
    %893 = math.tanh %892 : vector<8x16xf32>
    %894 = arith.mulf %889, %893 : vector<8x16xf32>
    %895 = vector.extract_strided_slice %863 {offsets = [0, 0], sizes = [8, 16], strides = [1, 1]} : vector<8x64xf32> to vector<8x16xf32>
    %cst_360 = arith.constant 5.000000e-01 : f32
    %896 = vector.broadcast %cst_360 : f32 to vector<8x16xf32>
    %897 = arith.mulf %896, %895 : vector<8x16xf32>
    %898 = math.tanh %897 : vector<8x16xf32>
    %cst_361 = arith.constant 1.000000e+00 : f32
    %899 = vector.broadcast %cst_361 : f32 to vector<8x16xf32>
    %900 = arith.addf %898, %899 : vector<8x16xf32>
    %cst_362 = arith.constant 5.000000e-01 : f32
    %901 = vector.broadcast %cst_362 : f32 to vector<8x16xf32>
    %902 = arith.mulf %901, %900 : vector<8x16xf32>
    %903 = vector.extract_strided_slice %863 {offsets = [0, 16], sizes = [8, 16], strides = [1, 1]} : vector<8x64xf32> to vector<8x16xf32>
    %cst_363 = arith.constant 5.000000e-01 : f32
    %904 = vector.broadcast %cst_363 : f32 to vector<8x16xf32>
    %905 = arith.mulf %904, %903 : vector<8x16xf32>
    %906 = math.tanh %905 : vector<8x16xf32>
    %cst_364 = arith.constant 1.000000e+00 : f32
    %907 = vector.broadcast %cst_364 : f32 to vector<8x16xf32>
    %908 = arith.addf %906, %907 : vector<8x16xf32>
    %cst_365 = arith.constant 5.000000e-01 : f32
    %909 = vector.broadcast %cst_365 : f32 to vector<8x16xf32>
    %910 = arith.mulf %909, %908 : vector<8x16xf32>
    %911 = vector.extract_strided_slice %863 {offsets = [0, 32], sizes = [8, 16], strides = [1, 1]} : vector<8x64xf32> to vector<8x16xf32>
    %912 = math.tanh %911 : vector<8x16xf32>
    %913 = vector.extract_strided_slice %863 {offsets = [0, 48], sizes = [8, 16], strides = [1, 1]} : vector<8x64xf32> to vector<8x16xf32>
    %cst_366 = arith.constant 5.000000e-01 : f32
    %914 = vector.broadcast %cst_366 : f32 to vector<8x16xf32>
    %915 = arith.mulf %914, %913 : vector<8x16xf32>
    %916 = math.tanh %915 : vector<8x16xf32>
    %cst_367 = arith.constant 1.000000e+00 : f32
    %917 = vector.broadcast %cst_367 : f32 to vector<8x16xf32>
    %918 = arith.addf %916, %917 : vector<8x16xf32>
    %cst_368 = arith.constant 5.000000e-01 : f32
    %919 = vector.broadcast %cst_368 : f32 to vector<8x16xf32>
    %920 = arith.mulf %919, %918 : vector<8x16xf32>
    %921 = arith.mulf %910, %842 : vector<8x16xf32>
    %922 = arith.mulf %902, %912 : vector<8x16xf32>
    %923 = arith.addf %921, %922 : vector<8x16xf32>
    %924 = math.tanh %923 : vector<8x16xf32>
    %925 = arith.mulf %920, %924 : vector<8x16xf32>
    %926 = arith.index_cast %c2_i32_343 : i32 to index
    %c0_369 = arith.constant 0 : index
    %c0_370 = arith.constant 0 : index
    %927 = vector.load %arg13[%926, %c0_369, %c0_370] : memref<8x8x16xf32, #tpu.memory_space<vmem>>, vector<1x8x16xf32>
    %928 = vector.shape_cast %927 : vector<1x8x16xf32> to vector<8x16xf32>
    %929 = vector.shape_cast %894 : vector<8x16xf32> to vector<1x8x16xf32>
    tpu.vector_store %arg13[%926, %c0_369, %c0_370], %929 {strides = array<i32>} : memref<8x8x16xf32, #tpu.memory_space<vmem>>, vector<1x8x16xf32>,
    %930 = arith.index_cast %853 : i32 to index
    %c0_371 = arith.constant 0 : index
    %c0_372 = arith.constant 0 : index
    %931 = vector.load %arg14[%930, %c0_371, %c0_372] : memref<8x8x16xf32, #tpu.memory_space<vmem>>, vector<1x8x16xf32>
    %932 = vector.shape_cast %931 : vector<1x8x16xf32> to vector<8x16xf32>
    %933 = vector.shape_cast %925 : vector<8x16xf32> to vector<1x8x16xf32>
    tpu.vector_store %arg14[%930, %c0_371, %c0_372], %933 {strides = array<i32>} : memref<8x8x16xf32, #tpu.memory_space<vmem>>, vector<1x8x16xf32>,
    %c3_i32_373 = arith.constant 3 : i32
    %c7_i32_374 = arith.constant 7 : i32
    %934 = arith.subi %c7_i32_374, %c3_i32_373 : i32
    %935 = arith.index_cast %c3_i32_373 : i32 to index
    %c0_375 = arith.constant 0 : index
    %c0_376 = arith.constant 0 : index
    %936 = vector.load %arg11[%935, %c0_375, %c0_376] : memref<8x8x64xf32, #tpu.memory_space<vmem>>, vector<1x8x64xf32>
    %937 = vector.shape_cast %936 : vector<1x8x64xf32> to vector<8x64xf32>
    %cst_377 = arith.constant dense<0.000000e+00> : vector<8x64xf32>
    %938 = tpu.matmul %894, %687, %cst_377 {dimension_numbers = #tpu.dot_dimension_numbers<[1], [0], [0], [1], [0, 0, 1, 1], [], []>} : vector<8x16xf32>, vector<16x64xf32>, vector<8x64xf32> -> vector<8x64xf32>
    %939 = arith.addf %937, %938 : vector<8x64xf32>
    %940 = arith.index_cast %934 : i32 to index
    %c0_378 = arith.constant 0 : index
    %c0_379 = arith.constant 0 : index
    %941 = vector.load %arg12[%940, %c0_378, %c0_379] : memref<8x8x64xf32, #tpu.memory_space<vmem>>, vector<1x8x64xf32>
    %942 = vector.shape_cast %941 : vector<1x8x64xf32> to vector<8x64xf32>
    %cst_380 = arith.constant dense<0.000000e+00> : vector<8x64xf32>
    %943 = tpu.matmul %925, %689, %cst_380 {dimension_numbers = #tpu.dot_dimension_numbers<[1], [0], [0], [1], [0, 0, 1, 1], [], []>} : vector<8x16xf32>, vector<16x64xf32>, vector<8x64xf32> -> vector<8x64xf32>
    %944 = arith.addf %942, %943 : vector<8x64xf32>
    %945 = vector.extract_strided_slice %939 {offsets = [0, 0], sizes = [8, 16], strides = [1, 1]} : vector<8x64xf32> to vector<8x16xf32>
    %cst_381 = arith.constant 5.000000e-01 : f32
    %946 = vector.broadcast %cst_381 : f32 to vector<8x16xf32>
    %947 = arith.mulf %946, %945 : vector<8x16xf32>
    %948 = math.tanh %947 : vector<8x16xf32>
    %cst_382 = arith.constant 1.000000e+00 : f32
    %949 = vector.broadcast %cst_382 : f32 to vector<8x16xf32>
    %950 = arith.addf %948, %949 : vector<8x16xf32>
    %cst_383 = arith.constant 5.000000e-01 : f32
    %951 = vector.broadcast %cst_383 : f32 to vector<8x16xf32>
    %952 = arith.mulf %951, %950 : vector<8x16xf32>
    %953 = vector.extract_strided_slice %939 {offsets = [0, 16], sizes = [8, 16], strides = [1, 1]} : vector<8x64xf32> to vector<8x16xf32>
    %cst_384 = arith.constant 5.000000e-01 : f32
    %954 = vector.broadcast %cst_384 : f32 to vector<8x16xf32>
    %955 = arith.mulf %954, %953 : vector<8x16xf32>
    %956 = math.tanh %955 : vector<8x16xf32>
    %cst_385 = arith.constant 1.000000e+00 : f32
    %957 = vector.broadcast %cst_385 : f32 to vector<8x16xf32>
    %958 = arith.addf %956, %957 : vector<8x16xf32>
    %cst_386 = arith.constant 5.000000e-01 : f32
    %959 = vector.broadcast %cst_386 : f32 to vector<8x16xf32>
    %960 = arith.mulf %959, %958 : vector<8x16xf32>
    %961 = vector.extract_strided_slice %939 {offsets = [0, 32], sizes = [8, 16], strides = [1, 1]} : vector<8x64xf32> to vector<8x16xf32>
    %962 = math.tanh %961 : vector<8x16xf32>
    %963 = vector.extract_strided_slice %939 {offsets = [0, 48], sizes = [8, 16], strides = [1, 1]} : vector<8x64xf32> to vector<8x16xf32>
    %cst_387 = arith.constant 5.000000e-01 : f32
    %964 = vector.broadcast %cst_387 : f32 to vector<8x16xf32>
    %965 = arith.mulf %964, %963 : vector<8x16xf32>
    %966 = math.tanh %965 : vector<8x16xf32>
    %cst_388 = arith.constant 1.000000e+00 : f32
    %967 = vector.broadcast %cst_388 : f32 to vector<8x16xf32>
    %968 = arith.addf %966, %967 : vector<8x16xf32>
    %cst_389 = arith.constant 5.000000e-01 : f32
    %969 = vector.broadcast %cst_389 : f32 to vector<8x16xf32>
    %970 = arith.mulf %969, %968 : vector<8x16xf32>
    %971 = arith.mulf %960, %892 : vector<8x16xf32>
    %972 = arith.mulf %952, %962 : vector<8x16xf32>
    %973 = arith.addf %971, %972 : vector<8x16xf32>
    %974 = math.tanh %973 : vector<8x16xf32>
    %975 = arith.mulf %970, %974 : vector<8x16xf32>
    %976 = vector.extract_strided_slice %944 {offsets = [0, 0], sizes = [8, 16], strides = [1, 1]} : vector<8x64xf32> to vector<8x16xf32>
    %cst_390 = arith.constant 5.000000e-01 : f32
    %977 = vector.broadcast %cst_390 : f32 to vector<8x16xf32>
    %978 = arith.mulf %977, %976 : vector<8x16xf32>
    %979 = math.tanh %978 : vector<8x16xf32>
    %cst_391 = arith.constant 1.000000e+00 : f32
    %980 = vector.broadcast %cst_391 : f32 to vector<8x16xf32>
    %981 = arith.addf %979, %980 : vector<8x16xf32>
    %cst_392 = arith.constant 5.000000e-01 : f32
    %982 = vector.broadcast %cst_392 : f32 to vector<8x16xf32>
    %983 = arith.mulf %982, %981 : vector<8x16xf32>
    %984 = vector.extract_strided_slice %944 {offsets = [0, 16], sizes = [8, 16], strides = [1, 1]} : vector<8x64xf32> to vector<8x16xf32>
    %cst_393 = arith.constant 5.000000e-01 : f32
    %985 = vector.broadcast %cst_393 : f32 to vector<8x16xf32>
    %986 = arith.mulf %985, %984 : vector<8x16xf32>
    %987 = math.tanh %986 : vector<8x16xf32>
    %cst_394 = arith.constant 1.000000e+00 : f32
    %988 = vector.broadcast %cst_394 : f32 to vector<8x16xf32>
    %989 = arith.addf %987, %988 : vector<8x16xf32>
    %cst_395 = arith.constant 5.000000e-01 : f32
    %990 = vector.broadcast %cst_395 : f32 to vector<8x16xf32>
    %991 = arith.mulf %990, %989 : vector<8x16xf32>
    %992 = vector.extract_strided_slice %944 {offsets = [0, 32], sizes = [8, 16], strides = [1, 1]} : vector<8x64xf32> to vector<8x16xf32>
    %993 = math.tanh %992 : vector<8x16xf32>
    %994 = vector.extract_strided_slice %944 {offsets = [0, 48], sizes = [8, 16], strides = [1, 1]} : vector<8x64xf32> to vector<8x16xf32>
    %cst_396 = arith.constant 5.000000e-01 : f32
    %995 = vector.broadcast %cst_396 : f32 to vector<8x16xf32>
    %996 = arith.mulf %995, %994 : vector<8x16xf32>
    %997 = math.tanh %996 : vector<8x16xf32>
    %cst_397 = arith.constant 1.000000e+00 : f32
    %998 = vector.broadcast %cst_397 : f32 to vector<8x16xf32>
    %999 = arith.addf %997, %998 : vector<8x16xf32>
    %cst_398 = arith.constant 5.000000e-01 : f32
    %1000 = vector.broadcast %cst_398 : f32 to vector<8x16xf32>
    %1001 = arith.mulf %1000, %999 : vector<8x16xf32>
    %1002 = arith.mulf %991, %923 : vector<8x16xf32>
    %1003 = arith.mulf %983, %993 : vector<8x16xf32>
    %1004 = arith.addf %1002, %1003 : vector<8x16xf32>
    %1005 = math.tanh %1004 : vector<8x16xf32>
    %1006 = arith.mulf %1001, %1005 : vector<8x16xf32>
    %1007 = arith.index_cast %c3_i32_373 : i32 to index
    %c0_399 = arith.constant 0 : index
    %c0_400 = arith.constant 0 : index
    %1008 = vector.load %arg13[%1007, %c0_399, %c0_400] : memref<8x8x16xf32, #tpu.memory_space<vmem>>, vector<1x8x16xf32>
    %1009 = vector.shape_cast %1008 : vector<1x8x16xf32> to vector<8x16xf32>
    %1010 = vector.shape_cast %975 : vector<8x16xf32> to vector<1x8x16xf32>
    tpu.vector_store %arg13[%1007, %c0_399, %c0_400], %1010 {strides = array<i32>} : memref<8x8x16xf32, #tpu.memory_space<vmem>>, vector<1x8x16xf32>,
    %1011 = arith.index_cast %934 : i32 to index
    %c0_401 = arith.constant 0 : index
    %c0_402 = arith.constant 0 : index
    %1012 = vector.load %arg14[%1011, %c0_401, %c0_402] : memref<8x8x16xf32, #tpu.memory_space<vmem>>, vector<1x8x16xf32>
    %1013 = vector.shape_cast %1012 : vector<1x8x16xf32> to vector<8x16xf32>
    %1014 = vector.shape_cast %1006 : vector<8x16xf32> to vector<1x8x16xf32>
    tpu.vector_store %arg14[%1011, %c0_401, %c0_402], %1014 {strides = array<i32>} : memref<8x8x16xf32, #tpu.memory_space<vmem>>, vector<1x8x16xf32>,
    %c4_i32_403 = arith.constant 4 : i32
    %c7_i32_404 = arith.constant 7 : i32
    %1015 = arith.subi %c7_i32_404, %c4_i32_403 : i32
    %1016 = arith.index_cast %c4_i32_403 : i32 to index
    %c0_405 = arith.constant 0 : index
    %c0_406 = arith.constant 0 : index
    %1017 = vector.load %arg11[%1016, %c0_405, %c0_406] : memref<8x8x64xf32, #tpu.memory_space<vmem>>, vector<1x8x64xf32>
    %1018 = vector.shape_cast %1017 : vector<1x8x64xf32> to vector<8x64xf32>
    %cst_407 = arith.constant dense<0.000000e+00> : vector<8x64xf32>
    %1019 = tpu.matmul %975, %687, %cst_407 {dimension_numbers = #tpu.dot_dimension_numbers<[1], [0], [0], [1], [0, 0, 1, 1], [], []>} : vector<8x16xf32>, vector<16x64xf32>, vector<8x64xf32> -> vector<8x64xf32>
    %1020 = arith.addf %1018, %1019 : vector<8x64xf32>
    %1021 = arith.index_cast %1015 : i32 to index
    %c0_408 = arith.constant 0 : index
    %c0_409 = arith.constant 0 : index
    %1022 = vector.load %arg12[%1021, %c0_408, %c0_409] : memref<8x8x64xf32, #tpu.memory_space<vmem>>, vector<1x8x64xf32>
    %1023 = vector.shape_cast %1022 : vector<1x8x64xf32> to vector<8x64xf32>
    %cst_410 = arith.constant dense<0.000000e+00> : vector<8x64xf32>
    %1024 = tpu.matmul %1006, %689, %cst_410 {dimension_numbers = #tpu.dot_dimension_numbers<[1], [0], [0], [1], [0, 0, 1, 1], [], []>} : vector<8x16xf32>, vector<16x64xf32>, vector<8x64xf32> -> vector<8x64xf32>
    %1025 = arith.addf %1023, %1024 : vector<8x64xf32>
    %1026 = vector.extract_strided_slice %1020 {offsets = [0, 0], sizes = [8, 16], strides = [1, 1]} : vector<8x64xf32> to vector<8x16xf32>
    %cst_411 = arith.constant 5.000000e-01 : f32
    %1027 = vector.broadcast %cst_411 : f32 to vector<8x16xf32>
    %1028 = arith.mulf %1027, %1026 : vector<8x16xf32>
    %1029 = math.tanh %1028 : vector<8x16xf32>
    %cst_412 = arith.constant 1.000000e+00 : f32
    %1030 = vector.broadcast %cst_412 : f32 to vector<8x16xf32>
    %1031 = arith.addf %1029, %1030 : vector<8x16xf32>
    %cst_413 = arith.constant 5.000000e-01 : f32
    %1032 = vector.broadcast %cst_413 : f32 to vector<8x16xf32>
    %1033 = arith.mulf %1032, %1031 : vector<8x16xf32>
    %1034 = vector.extract_strided_slice %1020 {offsets = [0, 16], sizes = [8, 16], strides = [1, 1]} : vector<8x64xf32> to vector<8x16xf32>
    %cst_414 = arith.constant 5.000000e-01 : f32
    %1035 = vector.broadcast %cst_414 : f32 to vector<8x16xf32>
    %1036 = arith.mulf %1035, %1034 : vector<8x16xf32>
    %1037 = math.tanh %1036 : vector<8x16xf32>
    %cst_415 = arith.constant 1.000000e+00 : f32
    %1038 = vector.broadcast %cst_415 : f32 to vector<8x16xf32>
    %1039 = arith.addf %1037, %1038 : vector<8x16xf32>
    %cst_416 = arith.constant 5.000000e-01 : f32
    %1040 = vector.broadcast %cst_416 : f32 to vector<8x16xf32>
    %1041 = arith.mulf %1040, %1039 : vector<8x16xf32>
    %1042 = vector.extract_strided_slice %1020 {offsets = [0, 32], sizes = [8, 16], strides = [1, 1]} : vector<8x64xf32> to vector<8x16xf32>
    %1043 = math.tanh %1042 : vector<8x16xf32>
    %1044 = vector.extract_strided_slice %1020 {offsets = [0, 48], sizes = [8, 16], strides = [1, 1]} : vector<8x64xf32> to vector<8x16xf32>
    %cst_417 = arith.constant 5.000000e-01 : f32
    %1045 = vector.broadcast %cst_417 : f32 to vector<8x16xf32>
    %1046 = arith.mulf %1045, %1044 : vector<8x16xf32>
    %1047 = math.tanh %1046 : vector<8x16xf32>
    %cst_418 = arith.constant 1.000000e+00 : f32
    %1048 = vector.broadcast %cst_418 : f32 to vector<8x16xf32>
    %1049 = arith.addf %1047, %1048 : vector<8x16xf32>
    %cst_419 = arith.constant 5.000000e-01 : f32
    %1050 = vector.broadcast %cst_419 : f32 to vector<8x16xf32>
    %1051 = arith.mulf %1050, %1049 : vector<8x16xf32>
    %1052 = arith.mulf %1041, %973 : vector<8x16xf32>
    %1053 = arith.mulf %1033, %1043 : vector<8x16xf32>
    %1054 = arith.addf %1052, %1053 : vector<8x16xf32>
    %1055 = math.tanh %1054 : vector<8x16xf32>
    %1056 = arith.mulf %1051, %1055 : vector<8x16xf32>
    %1057 = vector.extract_strided_slice %1025 {offsets = [0, 0], sizes = [8, 16], strides = [1, 1]} : vector<8x64xf32> to vector<8x16xf32>
    %cst_420 = arith.constant 5.000000e-01 : f32
    %1058 = vector.broadcast %cst_420 : f32 to vector<8x16xf32>
    %1059 = arith.mulf %1058, %1057 : vector<8x16xf32>
    %1060 = math.tanh %1059 : vector<8x16xf32>
    %cst_421 = arith.constant 1.000000e+00 : f32
    %1061 = vector.broadcast %cst_421 : f32 to vector<8x16xf32>
    %1062 = arith.addf %1060, %1061 : vector<8x16xf32>
    %cst_422 = arith.constant 5.000000e-01 : f32
    %1063 = vector.broadcast %cst_422 : f32 to vector<8x16xf32>
    %1064 = arith.mulf %1063, %1062 : vector<8x16xf32>
    %1065 = vector.extract_strided_slice %1025 {offsets = [0, 16], sizes = [8, 16], strides = [1, 1]} : vector<8x64xf32> to vector<8x16xf32>
    %cst_423 = arith.constant 5.000000e-01 : f32
    %1066 = vector.broadcast %cst_423 : f32 to vector<8x16xf32>
    %1067 = arith.mulf %1066, %1065 : vector<8x16xf32>
    %1068 = math.tanh %1067 : vector<8x16xf32>
    %cst_424 = arith.constant 1.000000e+00 : f32
    %1069 = vector.broadcast %cst_424 : f32 to vector<8x16xf32>
    %1070 = arith.addf %1068, %1069 : vector<8x16xf32>
    %cst_425 = arith.constant 5.000000e-01 : f32
    %1071 = vector.broadcast %cst_425 : f32 to vector<8x16xf32>
    %1072 = arith.mulf %1071, %1070 : vector<8x16xf32>
    %1073 = vector.extract_strided_slice %1025 {offsets = [0, 32], sizes = [8, 16], strides = [1, 1]} : vector<8x64xf32> to vector<8x16xf32>
    %1074 = math.tanh %1073 : vector<8x16xf32>
    %1075 = vector.extract_strided_slice %1025 {offsets = [0, 48], sizes = [8, 16], strides = [1, 1]} : vector<8x64xf32> to vector<8x16xf32>
    %cst_426 = arith.constant 5.000000e-01 : f32
    %1076 = vector.broadcast %cst_426 : f32 to vector<8x16xf32>
    %1077 = arith.mulf %1076, %1075 : vector<8x16xf32>
    %1078 = math.tanh %1077 : vector<8x16xf32>
    %cst_427 = arith.constant 1.000000e+00 : f32
    %1079 = vector.broadcast %cst_427 : f32 to vector<8x16xf32>
    %1080 = arith.addf %1078, %1079 : vector<8x16xf32>
    %cst_428 = arith.constant 5.000000e-01 : f32
    %1081 = vector.broadcast %cst_428 : f32 to vector<8x16xf32>
    %1082 = arith.mulf %1081, %1080 : vector<8x16xf32>
    %1083 = arith.mulf %1072, %1004 : vector<8x16xf32>
    %1084 = arith.mulf %1064, %1074 : vector<8x16xf32>
    %1085 = arith.addf %1083, %1084 : vector<8x16xf32>
    %1086 = math.tanh %1085 : vector<8x16xf32>
    %1087 = arith.mulf %1082, %1086 : vector<8x16xf32>
    %1088 = arith.index_cast %c4_i32_403 : i32 to index
    %c0_429 = arith.constant 0 : index
    %c0_430 = arith.constant 0 : index
    %1089 = vector.load %arg13[%1088, %c0_429, %c0_430] : memref<8x8x16xf32, #tpu.memory_space<vmem>>, vector<1x8x16xf32>
    %1090 = vector.shape_cast %1089 : vector<1x8x16xf32> to vector<8x16xf32>
    %1091 = vector.shape_cast %1056 : vector<8x16xf32> to vector<1x8x16xf32>
    tpu.vector_store %arg13[%1088, %c0_429, %c0_430], %1091 {strides = array<i32>} : memref<8x8x16xf32, #tpu.memory_space<vmem>>, vector<1x8x16xf32>,
    %1092 = arith.index_cast %1015 : i32 to index
    %c0_431 = arith.constant 0 : index
    %c0_432 = arith.constant 0 : index
    %1093 = vector.load %arg14[%1092, %c0_431, %c0_432] : memref<8x8x16xf32, #tpu.memory_space<vmem>>, vector<1x8x16xf32>
    %1094 = vector.shape_cast %1093 : vector<1x8x16xf32> to vector<8x16xf32>
    %1095 = vector.shape_cast %1087 : vector<8x16xf32> to vector<1x8x16xf32>
    tpu.vector_store %arg14[%1092, %c0_431, %c0_432], %1095 {strides = array<i32>} : memref<8x8x16xf32, #tpu.memory_space<vmem>>, vector<1x8x16xf32>,
    %c5_i32_433 = arith.constant 5 : i32
    %c7_i32_434 = arith.constant 7 : i32
    %1096 = arith.subi %c7_i32_434, %c5_i32_433 : i32
    %1097 = arith.index_cast %c5_i32_433 : i32 to index
    %c0_435 = arith.constant 0 : index
    %c0_436 = arith.constant 0 : index
    %1098 = vector.load %arg11[%1097, %c0_435, %c0_436] : memref<8x8x64xf32, #tpu.memory_space<vmem>>, vector<1x8x64xf32>
    %1099 = vector.shape_cast %1098 : vector<1x8x64xf32> to vector<8x64xf32>
    %cst_437 = arith.constant dense<0.000000e+00> : vector<8x64xf32>
    %1100 = tpu.matmul %1056, %687, %cst_437 {dimension_numbers = #tpu.dot_dimension_numbers<[1], [0], [0], [1], [0, 0, 1, 1], [], []>} : vector<8x16xf32>, vector<16x64xf32>, vector<8x64xf32> -> vector<8x64xf32>
    %1101 = arith.addf %1099, %1100 : vector<8x64xf32>
    %1102 = arith.index_cast %1096 : i32 to index
    %c0_438 = arith.constant 0 : index
    %c0_439 = arith.constant 0 : index
    %1103 = vector.load %arg12[%1102, %c0_438, %c0_439] : memref<8x8x64xf32, #tpu.memory_space<vmem>>, vector<1x8x64xf32>
    %1104 = vector.shape_cast %1103 : vector<1x8x64xf32> to vector<8x64xf32>
    %cst_440 = arith.constant dense<0.000000e+00> : vector<8x64xf32>
    %1105 = tpu.matmul %1087, %689, %cst_440 {dimension_numbers = #tpu.dot_dimension_numbers<[1], [0], [0], [1], [0, 0, 1, 1], [], []>} : vector<8x16xf32>, vector<16x64xf32>, vector<8x64xf32> -> vector<8x64xf32>
    %1106 = arith.addf %1104, %1105 : vector<8x64xf32>
    %1107 = vector.extract_strided_slice %1101 {offsets = [0, 0], sizes = [8, 16], strides = [1, 1]} : vector<8x64xf32> to vector<8x16xf32>
    %cst_441 = arith.constant 5.000000e-01 : f32
    %1108 = vector.broadcast %cst_441 : f32 to vector<8x16xf32>
    %1109 = arith.mulf %1108, %1107 : vector<8x16xf32>
    %1110 = math.tanh %1109 : vector<8x16xf32>
    %cst_442 = arith.constant 1.000000e+00 : f32
    %1111 = vector.broadcast %cst_442 : f32 to vector<8x16xf32>
    %1112 = arith.addf %1110, %1111 : vector<8x16xf32>
    %cst_443 = arith.constant 5.000000e-01 : f32
    %1113 = vector.broadcast %cst_443 : f32 to vector<8x16xf32>
    %1114 = arith.mulf %1113, %1112 : vector<8x16xf32>
    %1115 = vector.extract_strided_slice %1101 {offsets = [0, 16], sizes = [8, 16], strides = [1, 1]} : vector<8x64xf32> to vector<8x16xf32>
    %cst_444 = arith.constant 5.000000e-01 : f32
    %1116 = vector.broadcast %cst_444 : f32 to vector<8x16xf32>
    %1117 = arith.mulf %1116, %1115 : vector<8x16xf32>
    %1118 = math.tanh %1117 : vector<8x16xf32>
    %cst_445 = arith.constant 1.000000e+00 : f32
    %1119 = vector.broadcast %cst_445 : f32 to vector<8x16xf32>
    %1120 = arith.addf %1118, %1119 : vector<8x16xf32>
    %cst_446 = arith.constant 5.000000e-01 : f32
    %1121 = vector.broadcast %cst_446 : f32 to vector<8x16xf32>
    %1122 = arith.mulf %1121, %1120 : vector<8x16xf32>
    %1123 = vector.extract_strided_slice %1101 {offsets = [0, 32], sizes = [8, 16], strides = [1, 1]} : vector<8x64xf32> to vector<8x16xf32>
    %1124 = math.tanh %1123 : vector<8x16xf32>
    %1125 = vector.extract_strided_slice %1101 {offsets = [0, 48], sizes = [8, 16], strides = [1, 1]} : vector<8x64xf32> to vector<8x16xf32>
    %cst_447 = arith.constant 5.000000e-01 : f32
    %1126 = vector.broadcast %cst_447 : f32 to vector<8x16xf32>
    %1127 = arith.mulf %1126, %1125 : vector<8x16xf32>
    %1128 = math.tanh %1127 : vector<8x16xf32>
    %cst_448 = arith.constant 1.000000e+00 : f32
    %1129 = vector.broadcast %cst_448 : f32 to vector<8x16xf32>
    %1130 = arith.addf %1128, %1129 : vector<8x16xf32>
    %cst_449 = arith.constant 5.000000e-01 : f32
    %1131 = vector.broadcast %cst_449 : f32 to vector<8x16xf32>
    %1132 = arith.mulf %1131, %1130 : vector<8x16xf32>
    %1133 = arith.mulf %1122, %1054 : vector<8x16xf32>
    %1134 = arith.mulf %1114, %1124 : vector<8x16xf32>
    %1135 = arith.addf %1133, %1134 : vector<8x16xf32>
    %1136 = math.tanh %1135 : vector<8x16xf32>
    %1137 = arith.mulf %1132, %1136 : vector<8x16xf32>
    %1138 = vector.extract_strided_slice %1106 {offsets = [0, 0], sizes = [8, 16], strides = [1, 1]} : vector<8x64xf32> to vector<8x16xf32>
    %cst_450 = arith.constant 5.000000e-01 : f32
    %1139 = vector.broadcast %cst_450 : f32 to vector<8x16xf32>
    %1140 = arith.mulf %1139, %1138 : vector<8x16xf32>
    %1141 = math.tanh %1140 : vector<8x16xf32>
    %cst_451 = arith.constant 1.000000e+00 : f32
    %1142 = vector.broadcast %cst_451 : f32 to vector<8x16xf32>
    %1143 = arith.addf %1141, %1142 : vector<8x16xf32>
    %cst_452 = arith.constant 5.000000e-01 : f32
    %1144 = vector.broadcast %cst_452 : f32 to vector<8x16xf32>
    %1145 = arith.mulf %1144, %1143 : vector<8x16xf32>
    %1146 = vector.extract_strided_slice %1106 {offsets = [0, 16], sizes = [8, 16], strides = [1, 1]} : vector<8x64xf32> to vector<8x16xf32>
    %cst_453 = arith.constant 5.000000e-01 : f32
    %1147 = vector.broadcast %cst_453 : f32 to vector<8x16xf32>
    %1148 = arith.mulf %1147, %1146 : vector<8x16xf32>
    %1149 = math.tanh %1148 : vector<8x16xf32>
    %cst_454 = arith.constant 1.000000e+00 : f32
    %1150 = vector.broadcast %cst_454 : f32 to vector<8x16xf32>
    %1151 = arith.addf %1149, %1150 : vector<8x16xf32>
    %cst_455 = arith.constant 5.000000e-01 : f32
    %1152 = vector.broadcast %cst_455 : f32 to vector<8x16xf32>
    %1153 = arith.mulf %1152, %1151 : vector<8x16xf32>
    %1154 = vector.extract_strided_slice %1106 {offsets = [0, 32], sizes = [8, 16], strides = [1, 1]} : vector<8x64xf32> to vector<8x16xf32>
    %1155 = math.tanh %1154 : vector<8x16xf32>
    %1156 = vector.extract_strided_slice %1106 {offsets = [0, 48], sizes = [8, 16], strides = [1, 1]} : vector<8x64xf32> to vector<8x16xf32>
    %cst_456 = arith.constant 5.000000e-01 : f32
    %1157 = vector.broadcast %cst_456 : f32 to vector<8x16xf32>
    %1158 = arith.mulf %1157, %1156 : vector<8x16xf32>
    %1159 = math.tanh %1158 : vector<8x16xf32>
    %cst_457 = arith.constant 1.000000e+00 : f32
    %1160 = vector.broadcast %cst_457 : f32 to vector<8x16xf32>
    %1161 = arith.addf %1159, %1160 : vector<8x16xf32>
    %cst_458 = arith.constant 5.000000e-01 : f32
    %1162 = vector.broadcast %cst_458 : f32 to vector<8x16xf32>
    %1163 = arith.mulf %1162, %1161 : vector<8x16xf32>
    %1164 = arith.mulf %1153, %1085 : vector<8x16xf32>
    %1165 = arith.mulf %1145, %1155 : vector<8x16xf32>
    %1166 = arith.addf %1164, %1165 : vector<8x16xf32>
    %1167 = math.tanh %1166 : vector<8x16xf32>
    %1168 = arith.mulf %1163, %1167 : vector<8x16xf32>
    %1169 = arith.index_cast %c5_i32_433 : i32 to index
    %c0_459 = arith.constant 0 : index
    %c0_460 = arith.constant 0 : index
    %1170 = vector.load %arg13[%1169, %c0_459, %c0_460] : memref<8x8x16xf32, #tpu.memory_space<vmem>>, vector<1x8x16xf32>
    %1171 = vector.shape_cast %1170 : vector<1x8x16xf32> to vector<8x16xf32>
    %1172 = vector.shape_cast %1137 : vector<8x16xf32> to vector<1x8x16xf32>
    tpu.vector_store %arg13[%1169, %c0_459, %c0_460], %1172 {strides = array<i32>} : memref<8x8x16xf32, #tpu.memory_space<vmem>>, vector<1x8x16xf32>,
    %1173 = arith.index_cast %1096 : i32 to index
    %c0_461 = arith.constant 0 : index
    %c0_462 = arith.constant 0 : index
    %1174 = vector.load %arg14[%1173, %c0_461, %c0_462] : memref<8x8x16xf32, #tpu.memory_space<vmem>>, vector<1x8x16xf32>
    %1175 = vector.shape_cast %1174 : vector<1x8x16xf32> to vector<8x16xf32>
    %1176 = vector.shape_cast %1168 : vector<8x16xf32> to vector<1x8x16xf32>
    tpu.vector_store %arg14[%1173, %c0_461, %c0_462], %1176 {strides = array<i32>} : memref<8x8x16xf32, #tpu.memory_space<vmem>>, vector<1x8x16xf32>,
    %c6_i32_463 = arith.constant 6 : i32
    %c7_i32_464 = arith.constant 7 : i32
    %1177 = arith.subi %c7_i32_464, %c6_i32_463 : i32
    %1178 = arith.index_cast %c6_i32_463 : i32 to index
    %c0_465 = arith.constant 0 : index
    %c0_466 = arith.constant 0 : index
    %1179 = vector.load %arg11[%1178, %c0_465, %c0_466] : memref<8x8x64xf32, #tpu.memory_space<vmem>>, vector<1x8x64xf32>
    %1180 = vector.shape_cast %1179 : vector<1x8x64xf32> to vector<8x64xf32>
    %cst_467 = arith.constant dense<0.000000e+00> : vector<8x64xf32>
    %1181 = tpu.matmul %1137, %687, %cst_467 {dimension_numbers = #tpu.dot_dimension_numbers<[1], [0], [0], [1], [0, 0, 1, 1], [], []>} : vector<8x16xf32>, vector<16x64xf32>, vector<8x64xf32> -> vector<8x64xf32>
    %1182 = arith.addf %1180, %1181 : vector<8x64xf32>
    %1183 = arith.index_cast %1177 : i32 to index
    %c0_468 = arith.constant 0 : index
    %c0_469 = arith.constant 0 : index
    %1184 = vector.load %arg12[%1183, %c0_468, %c0_469] : memref<8x8x64xf32, #tpu.memory_space<vmem>>, vector<1x8x64xf32>
    %1185 = vector.shape_cast %1184 : vector<1x8x64xf32> to vector<8x64xf32>
    %cst_470 = arith.constant dense<0.000000e+00> : vector<8x64xf32>
    %1186 = tpu.matmul %1168, %689, %cst_470 {dimension_numbers = #tpu.dot_dimension_numbers<[1], [0], [0], [1], [0, 0, 1, 1], [], []>} : vector<8x16xf32>, vector<16x64xf32>, vector<8x64xf32> -> vector<8x64xf32>
    %1187 = arith.addf %1185, %1186 : vector<8x64xf32>
    %1188 = vector.extract_strided_slice %1182 {offsets = [0, 0], sizes = [8, 16], strides = [1, 1]} : vector<8x64xf32> to vector<8x16xf32>
    %cst_471 = arith.constant 5.000000e-01 : f32
    %1189 = vector.broadcast %cst_471 : f32 to vector<8x16xf32>
    %1190 = arith.mulf %1189, %1188 : vector<8x16xf32>
    %1191 = math.tanh %1190 : vector<8x16xf32>
    %cst_472 = arith.constant 1.000000e+00 : f32
    %1192 = vector.broadcast %cst_472 : f32 to vector<8x16xf32>
    %1193 = arith.addf %1191, %1192 : vector<8x16xf32>
    %cst_473 = arith.constant 5.000000e-01 : f32
    %1194 = vector.broadcast %cst_473 : f32 to vector<8x16xf32>
    %1195 = arith.mulf %1194, %1193 : vector<8x16xf32>
    %1196 = vector.extract_strided_slice %1182 {offsets = [0, 16], sizes = [8, 16], strides = [1, 1]} : vector<8x64xf32> to vector<8x16xf32>
    %cst_474 = arith.constant 5.000000e-01 : f32
    %1197 = vector.broadcast %cst_474 : f32 to vector<8x16xf32>
    %1198 = arith.mulf %1197, %1196 : vector<8x16xf32>
    %1199 = math.tanh %1198 : vector<8x16xf32>
    %cst_475 = arith.constant 1.000000e+00 : f32
    %1200 = vector.broadcast %cst_475 : f32 to vector<8x16xf32>
    %1201 = arith.addf %1199, %1200 : vector<8x16xf32>
    %cst_476 = arith.constant 5.000000e-01 : f32
    %1202 = vector.broadcast %cst_476 : f32 to vector<8x16xf32>
    %1203 = arith.mulf %1202, %1201 : vector<8x16xf32>
    %1204 = vector.extract_strided_slice %1182 {offsets = [0, 32], sizes = [8, 16], strides = [1, 1]} : vector<8x64xf32> to vector<8x16xf32>
    %1205 = math.tanh %1204 : vector<8x16xf32>
    %1206 = vector.extract_strided_slice %1182 {offsets = [0, 48], sizes = [8, 16], strides = [1, 1]} : vector<8x64xf32> to vector<8x16xf32>
    %cst_477 = arith.constant 5.000000e-01 : f32
    %1207 = vector.broadcast %cst_477 : f32 to vector<8x16xf32>
    %1208 = arith.mulf %1207, %1206 : vector<8x16xf32>
    %1209 = math.tanh %1208 : vector<8x16xf32>
    %cst_478 = arith.constant 1.000000e+00 : f32
    %1210 = vector.broadcast %cst_478 : f32 to vector<8x16xf32>
    %1211 = arith.addf %1209, %1210 : vector<8x16xf32>
    %cst_479 = arith.constant 5.000000e-01 : f32
    %1212 = vector.broadcast %cst_479 : f32 to vector<8x16xf32>
    %1213 = arith.mulf %1212, %1211 : vector<8x16xf32>
    %1214 = arith.mulf %1203, %1135 : vector<8x16xf32>
    %1215 = arith.mulf %1195, %1205 : vector<8x16xf32>
    %1216 = arith.addf %1214, %1215 : vector<8x16xf32>
    %1217 = math.tanh %1216 : vector<8x16xf32>
    %1218 = arith.mulf %1213, %1217 : vector<8x16xf32>
    %1219 = vector.extract_strided_slice %1187 {offsets = [0, 0], sizes = [8, 16], strides = [1, 1]} : vector<8x64xf32> to vector<8x16xf32>
    %cst_480 = arith.constant 5.000000e-01 : f32
    %1220 = vector.broadcast %cst_480 : f32 to vector<8x16xf32>
    %1221 = arith.mulf %1220, %1219 : vector<8x16xf32>
    %1222 = math.tanh %1221 : vector<8x16xf32>
    %cst_481 = arith.constant 1.000000e+00 : f32
    %1223 = vector.broadcast %cst_481 : f32 to vector<8x16xf32>
    %1224 = arith.addf %1222, %1223 : vector<8x16xf32>
    %cst_482 = arith.constant 5.000000e-01 : f32
    %1225 = vector.broadcast %cst_482 : f32 to vector<8x16xf32>
    %1226 = arith.mulf %1225, %1224 : vector<8x16xf32>
    %1227 = vector.extract_strided_slice %1187 {offsets = [0, 16], sizes = [8, 16], strides = [1, 1]} : vector<8x64xf32> to vector<8x16xf32>
    %cst_483 = arith.constant 5.000000e-01 : f32
    %1228 = vector.broadcast %cst_483 : f32 to vector<8x16xf32>
    %1229 = arith.mulf %1228, %1227 : vector<8x16xf32>
    %1230 = math.tanh %1229 : vector<8x16xf32>
    %cst_484 = arith.constant 1.000000e+00 : f32
    %1231 = vector.broadcast %cst_484 : f32 to vector<8x16xf32>
    %1232 = arith.addf %1230, %1231 : vector<8x16xf32>
    %cst_485 = arith.constant 5.000000e-01 : f32
    %1233 = vector.broadcast %cst_485 : f32 to vector<8x16xf32>
    %1234 = arith.mulf %1233, %1232 : vector<8x16xf32>
    %1235 = vector.extract_strided_slice %1187 {offsets = [0, 32], sizes = [8, 16], strides = [1, 1]} : vector<8x64xf32> to vector<8x16xf32>
    %1236 = math.tanh %1235 : vector<8x16xf32>
    %1237 = vector.extract_strided_slice %1187 {offsets = [0, 48], sizes = [8, 16], strides = [1, 1]} : vector<8x64xf32> to vector<8x16xf32>
    %cst_486 = arith.constant 5.000000e-01 : f32
    %1238 = vector.broadcast %cst_486 : f32 to vector<8x16xf32>
    %1239 = arith.mulf %1238, %1237 : vector<8x16xf32>
    %1240 = math.tanh %1239 : vector<8x16xf32>
    %cst_487 = arith.constant 1.000000e+00 : f32
    %1241 = vector.broadcast %cst_487 : f32 to vector<8x16xf32>
    %1242 = arith.addf %1240, %1241 : vector<8x16xf32>
    %cst_488 = arith.constant 5.000000e-01 : f32
    %1243 = vector.broadcast %cst_488 : f32 to vector<8x16xf32>
    %1244 = arith.mulf %1243, %1242 : vector<8x16xf32>
    %1245 = arith.mulf %1234, %1166 : vector<8x16xf32>
    %1246 = arith.mulf %1226, %1236 : vector<8x16xf32>
    %1247 = arith.addf %1245, %1246 : vector<8x16xf32>
    %1248 = math.tanh %1247 : vector<8x16xf32>
    %1249 = arith.mulf %1244, %1248 : vector<8x16xf32>
    %1250 = arith.index_cast %c6_i32_463 : i32 to index
    %c0_489 = arith.constant 0 : index
    %c0_490 = arith.constant 0 : index
    %1251 = vector.load %arg13[%1250, %c0_489, %c0_490] : memref<8x8x16xf32, #tpu.memory_space<vmem>>, vector<1x8x16xf32>
    %1252 = vector.shape_cast %1251 : vector<1x8x16xf32> to vector<8x16xf32>
    %1253 = vector.shape_cast %1218 : vector<8x16xf32> to vector<1x8x16xf32>
    tpu.vector_store %arg13[%1250, %c0_489, %c0_490], %1253 {strides = array<i32>} : memref<8x8x16xf32, #tpu.memory_space<vmem>>, vector<1x8x16xf32>,
    %1254 = arith.index_cast %1177 : i32 to index
    %c0_491 = arith.constant 0 : index
    %c0_492 = arith.constant 0 : index
    %1255 = vector.load %arg14[%1254, %c0_491, %c0_492] : memref<8x8x16xf32, #tpu.memory_space<vmem>>, vector<1x8x16xf32>
    %1256 = vector.shape_cast %1255 : vector<1x8x16xf32> to vector<8x16xf32>
    %1257 = vector.shape_cast %1249 : vector<8x16xf32> to vector<1x8x16xf32>
    tpu.vector_store %arg14[%1254, %c0_491, %c0_492], %1257 {strides = array<i32>} : memref<8x8x16xf32, #tpu.memory_space<vmem>>, vector<1x8x16xf32>,
    %c7_i32_493 = arith.constant 7 : i32
    %c7_i32_494 = arith.constant 7 : i32
    %1258 = arith.subi %c7_i32_494, %c7_i32_493 : i32
    %1259 = arith.index_cast %c7_i32_493 : i32 to index
    %c0_495 = arith.constant 0 : index
    %c0_496 = arith.constant 0 : index
    %1260 = vector.load %arg11[%1259, %c0_495, %c0_496] : memref<8x8x64xf32, #tpu.memory_space<vmem>>, vector<1x8x64xf32>
    %1261 = vector.shape_cast %1260 : vector<1x8x64xf32> to vector<8x64xf32>
    %cst_497 = arith.constant dense<0.000000e+00> : vector<8x64xf32>
    %1262 = tpu.matmul %1218, %687, %cst_497 {dimension_numbers = #tpu.dot_dimension_numbers<[1], [0], [0], [1], [0, 0, 1, 1], [], []>} : vector<8x16xf32>, vector<16x64xf32>, vector<8x64xf32> -> vector<8x64xf32>
    %1263 = arith.addf %1261, %1262 : vector<8x64xf32>
    %1264 = arith.index_cast %1258 : i32 to index
    %c0_498 = arith.constant 0 : index
    %c0_499 = arith.constant 0 : index
    %1265 = vector.load %arg12[%1264, %c0_498, %c0_499] : memref<8x8x64xf32, #tpu.memory_space<vmem>>, vector<1x8x64xf32>
    %1266 = vector.shape_cast %1265 : vector<1x8x64xf32> to vector<8x64xf32>
    %cst_500 = arith.constant dense<0.000000e+00> : vector<8x64xf32>
    %1267 = tpu.matmul %1249, %689, %cst_500 {dimension_numbers = #tpu.dot_dimension_numbers<[1], [0], [0], [1], [0, 0, 1, 1], [], []>} : vector<8x16xf32>, vector<16x64xf32>, vector<8x64xf32> -> vector<8x64xf32>
    %1268 = arith.addf %1266, %1267 : vector<8x64xf32>
    %1269 = vector.extract_strided_slice %1263 {offsets = [0, 0], sizes = [8, 16], strides = [1, 1]} : vector<8x64xf32> to vector<8x16xf32>
    %cst_501 = arith.constant 5.000000e-01 : f32
    %1270 = vector.broadcast %cst_501 : f32 to vector<8x16xf32>
    %1271 = arith.mulf %1270, %1269 : vector<8x16xf32>
    %1272 = math.tanh %1271 : vector<8x16xf32>
    %cst_502 = arith.constant 1.000000e+00 : f32
    %1273 = vector.broadcast %cst_502 : f32 to vector<8x16xf32>
    %1274 = arith.addf %1272, %1273 : vector<8x16xf32>
    %cst_503 = arith.constant 5.000000e-01 : f32
    %1275 = vector.broadcast %cst_503 : f32 to vector<8x16xf32>
    %1276 = arith.mulf %1275, %1274 : vector<8x16xf32>
    %1277 = vector.extract_strided_slice %1263 {offsets = [0, 16], sizes = [8, 16], strides = [1, 1]} : vector<8x64xf32> to vector<8x16xf32>
    %cst_504 = arith.constant 5.000000e-01 : f32
    %1278 = vector.broadcast %cst_504 : f32 to vector<8x16xf32>
    %1279 = arith.mulf %1278, %1277 : vector<8x16xf32>
    %1280 = math.tanh %1279 : vector<8x16xf32>
    %cst_505 = arith.constant 1.000000e+00 : f32
    %1281 = vector.broadcast %cst_505 : f32 to vector<8x16xf32>
    %1282 = arith.addf %1280, %1281 : vector<8x16xf32>
    %cst_506 = arith.constant 5.000000e-01 : f32
    %1283 = vector.broadcast %cst_506 : f32 to vector<8x16xf32>
    %1284 = arith.mulf %1283, %1282 : vector<8x16xf32>
    %1285 = vector.extract_strided_slice %1263 {offsets = [0, 32], sizes = [8, 16], strides = [1, 1]} : vector<8x64xf32> to vector<8x16xf32>
    %1286 = math.tanh %1285 : vector<8x16xf32>
    %1287 = vector.extract_strided_slice %1263 {offsets = [0, 48], sizes = [8, 16], strides = [1, 1]} : vector<8x64xf32> to vector<8x16xf32>
    %cst_507 = arith.constant 5.000000e-01 : f32
    %1288 = vector.broadcast %cst_507 : f32 to vector<8x16xf32>
    %1289 = arith.mulf %1288, %1287 : vector<8x16xf32>
    %1290 = math.tanh %1289 : vector<8x16xf32>
    %cst_508 = arith.constant 1.000000e+00 : f32
    %1291 = vector.broadcast %cst_508 : f32 to vector<8x16xf32>
    %1292 = arith.addf %1290, %1291 : vector<8x16xf32>
    %cst_509 = arith.constant 5.000000e-01 : f32
    %1293 = vector.broadcast %cst_509 : f32 to vector<8x16xf32>
    %1294 = arith.mulf %1293, %1292 : vector<8x16xf32>
    %1295 = arith.mulf %1284, %1216 : vector<8x16xf32>
    %1296 = arith.mulf %1276, %1286 : vector<8x16xf32>
    %1297 = arith.addf %1295, %1296 : vector<8x16xf32>
    %1298 = math.tanh %1297 : vector<8x16xf32>
    %1299 = arith.mulf %1294, %1298 : vector<8x16xf32>
    %1300 = vector.extract_strided_slice %1268 {offsets = [0, 0], sizes = [8, 16], strides = [1, 1]} : vector<8x64xf32> to vector<8x16xf32>
    %cst_510 = arith.constant 5.000000e-01 : f32
    %1301 = vector.broadcast %cst_510 : f32 to vector<8x16xf32>
    %1302 = arith.mulf %1301, %1300 : vector<8x16xf32>
    %1303 = math.tanh %1302 : vector<8x16xf32>
    %cst_511 = arith.constant 1.000000e+00 : f32
    %1304 = vector.broadcast %cst_511 : f32 to vector<8x16xf32>
    %1305 = arith.addf %1303, %1304 : vector<8x16xf32>
    %cst_512 = arith.constant 5.000000e-01 : f32
    %1306 = vector.broadcast %cst_512 : f32 to vector<8x16xf32>
    %1307 = arith.mulf %1306, %1305 : vector<8x16xf32>
    %1308 = vector.extract_strided_slice %1268 {offsets = [0, 16], sizes = [8, 16], strides = [1, 1]} : vector<8x64xf32> to vector<8x16xf32>
    %cst_513 = arith.constant 5.000000e-01 : f32
    %1309 = vector.broadcast %cst_513 : f32 to vector<8x16xf32>
    %1310 = arith.mulf %1309, %1308 : vector<8x16xf32>
    %1311 = math.tanh %1310 : vector<8x16xf32>
    %cst_514 = arith.constant 1.000000e+00 : f32
    %1312 = vector.broadcast %cst_514 : f32 to vector<8x16xf32>
    %1313 = arith.addf %1311, %1312 : vector<8x16xf32>
    %cst_515 = arith.constant 5.000000e-01 : f32
    %1314 = vector.broadcast %cst_515 : f32 to vector<8x16xf32>
    %1315 = arith.mulf %1314, %1313 : vector<8x16xf32>
    %1316 = vector.extract_strided_slice %1268 {offsets = [0, 32], sizes = [8, 16], strides = [1, 1]} : vector<8x64xf32> to vector<8x16xf32>
    %1317 = math.tanh %1316 : vector<8x16xf32>
    %1318 = vector.extract_strided_slice %1268 {offsets = [0, 48], sizes = [8, 16], strides = [1, 1]} : vector<8x64xf32> to vector<8x16xf32>
    %cst_516 = arith.constant 5.000000e-01 : f32
    %1319 = vector.broadcast %cst_516 : f32 to vector<8x16xf32>
    %1320 = arith.mulf %1319, %1318 : vector<8x16xf32>
    %1321 = math.tanh %1320 : vector<8x16xf32>
    %cst_517 = arith.constant 1.000000e+00 : f32
    %1322 = vector.broadcast %cst_517 : f32 to vector<8x16xf32>
    %1323 = arith.addf %1321, %1322 : vector<8x16xf32>
    %cst_518 = arith.constant 5.000000e-01 : f32
    %1324 = vector.broadcast %cst_518 : f32 to vector<8x16xf32>
    %1325 = arith.mulf %1324, %1323 : vector<8x16xf32>
    %1326 = arith.mulf %1315, %1247 : vector<8x16xf32>
    %1327 = arith.mulf %1307, %1317 : vector<8x16xf32>
    %1328 = arith.addf %1326, %1327 : vector<8x16xf32>
    %1329 = math.tanh %1328 : vector<8x16xf32>
    %1330 = arith.mulf %1325, %1329 : vector<8x16xf32>
    %1331 = arith.index_cast %c7_i32_493 : i32 to index
    %c0_519 = arith.constant 0 : index
    %c0_520 = arith.constant 0 : index
    %1332 = vector.load %arg13[%1331, %c0_519, %c0_520] : memref<8x8x16xf32, #tpu.memory_space<vmem>>, vector<1x8x16xf32>
    %1333 = vector.shape_cast %1332 : vector<1x8x16xf32> to vector<8x16xf32>
    %1334 = vector.shape_cast %1299 : vector<8x16xf32> to vector<1x8x16xf32>
    tpu.vector_store %arg13[%1331, %c0_519, %c0_520], %1334 {strides = array<i32>} : memref<8x8x16xf32, #tpu.memory_space<vmem>>, vector<1x8x16xf32>,
    %1335 = arith.index_cast %1258 : i32 to index
    %c0_521 = arith.constant 0 : index
    %c0_522 = arith.constant 0 : index
    %1336 = vector.load %arg14[%1335, %c0_521, %c0_522] : memref<8x8x16xf32, #tpu.memory_space<vmem>>, vector<1x8x16xf32>
    %1337 = vector.shape_cast %1336 : vector<1x8x16xf32> to vector<8x16xf32>
    %1338 = vector.shape_cast %1330 : vector<8x16xf32> to vector<1x8x16xf32>
    tpu.vector_store %arg14[%1335, %c0_521, %c0_522], %1338 {strides = array<i32>} : memref<8x8x16xf32, #tpu.memory_space<vmem>>, vector<1x8x16xf32>,
    %c8_i32_523 = arith.constant 8 : i32
    %c0_524 = arith.constant 0 : index
    %c0_525 = arith.constant 0 : index
    %c0_526 = arith.constant 0 : index
    %1339 = vector.load %arg13[%c0_524, %c0_525, %c0_526] : memref<8x8x16xf32, #tpu.memory_space<vmem>>, vector<8x8x16xf32>
    %c0_527 = arith.constant 0 : index
    %c0_528 = arith.constant 0 : index
    %1340 = vector.load %arg7[%c0_527, %c0_528] : memref<1x16xf32, #tpu.memory_space<vmem>>, vector<1x16xf32>
    %1341 = vector.shape_cast %1340 : vector<1x16xf32> to vector<1x1x16xf32>
    %1342 = vector.broadcast %1341 : vector<1x1x16xf32> to vector<8x8x16xf32>
    %1343 = arith.mulf %1339, %1342 : vector<8x8x16xf32>
    %cst_529 = arith.constant dense<0.000000e+00> : vector<8x8xf32>
    %1344 = vector.multi_reduction <add>, %1343, %cst_529 [2] : vector<8x8x16xf32> to vector<8x8xf32>
    %c0_530 = arith.constant 0 : index
    %c0_531 = arith.constant 0 : index
    %c0_532 = arith.constant 0 : index
    %1345 = vector.load %arg14[%c0_530, %c0_531, %c0_532] : memref<8x8x16xf32, #tpu.memory_space<vmem>>, vector<8x8x16xf32>
    %c0_533 = arith.constant 0 : index
    %c0_534 = arith.constant 0 : index
    %1346 = vector.load %arg8[%c0_533, %c0_534] : memref<1x16xf32, #tpu.memory_space<vmem>>, vector<1x16xf32>
    %1347 = vector.shape_cast %1346 : vector<1x16xf32> to vector<1x1x16xf32>
    %1348 = vector.broadcast %1347 : vector<1x1x16xf32> to vector<8x8x16xf32>
    %1349 = arith.mulf %1345, %1348 : vector<8x8x16xf32>
    %cst_535 = arith.constant dense<0.000000e+00> : vector<8x8xf32>
    %1350 = vector.multi_reduction <add>, %1349, %cst_535 [2] : vector<8x8x16xf32> to vector<8x8xf32>
    %1351 = arith.addf %1344, %1350 : vector<8x8xf32>
    %c0_536 = arith.constant 0 : index
    %c0_537 = arith.constant 0 : index
    %1352 = vector.load %arg9[%c0_536, %c0_537] : memref<1x1xf32, #tpu.memory_space<vmem>>, vector<1x1xf32>
    %1353 = vector.broadcast %1352 : vector<1x1xf32> to vector<8x8xf32>
    %1354 = arith.addf %1351, %1353 : vector<8x8xf32>
    %cst_538 = arith.constant 0.000000e+00 : f32
    %1355 = vector.broadcast %cst_538 : f32 to vector<8x8xf32>
    %1356 = arith.maximumf %1354, %1355 : vector<8x8xf32>
    %1357 = math.absf %1354 : vector<8x8xf32>
    %cst_539 = arith.constant 0.000000e+00 : f32
    %1358 = vector.broadcast %cst_539 : f32 to vector<8x8xf32>
    %1359 = arith.subf %1358, %1357 : vector<8x8xf32>
    %1360 = math.exp %1359 : vector<8x8xf32>
    %cst_540 = arith.constant 1.000000e+00 : f32
    %1361 = vector.broadcast %cst_540 : f32 to vector<8x8xf32>
    %1362 = arith.addf %1361, %1360 : vector<8x8xf32>
    %1363 = math.log %1362 : vector<8x8xf32>
    %1364 = arith.addf %1356, %1363 : vector<8x8xf32>
    %c0_541 = arith.constant 0 : index
    %c0_542 = arith.constant 0 : index
    %c0_543 = arith.constant 0 : index
    %1365 = vector.load %arg10[%c0_541, %c0_542, %c0_543] : memref<1x8x8xf32, #tpu.memory_space<vmem>>, vector<1x8x8xf32>
    %1366 = vector.shape_cast %1365 : vector<1x8x8xf32> to vector<8x8xf32>
    %1367 = vector.shape_cast %1364 : vector<8x8xf32> to vector<1x8x8xf32>
    tpu.vector_store %arg10[%c0_541, %c0_542, %c0_543], %1367 {strides = array<i32>} : memref<1x8x8xf32, #tpu.memory_space<vmem>>, vector<1x8x8xf32>,
    return
  }
  func.func @transform_0(%arg0: i32) -> (i32, i32, i32) {
    %c0_i32 = arith.constant 0 : i32
    %c0_i32_0 = arith.constant 0 : i32
    %c0_i32_1 = arith.constant 0 : i32
    return %c0_i32, %arg0, %c0_i32_0 : i32, i32, i32
  }
  func.func @transform_1(%arg0: i32) -> (i32, i32) {
    %c0_i32 = arith.constant 0 : i32
    %c0_i32_0 = arith.constant 0 : i32
    %c0_i32_1 = arith.constant 0 : i32
    return %c0_i32, %c0_i32_0 : i32, i32
  }
  func.func @transform_2(%arg0: i32) -> (i32, i32, i32) {
    %c0_i32 = arith.constant 0 : i32
    %c0_i32_0 = arith.constant 0 : i32
    %c0_i32_1 = arith.constant 0 : i32
    %c0_i32_2 = arith.constant 0 : i32
    return %c0_i32, %c0_i32_0, %c0_i32_1 : i32, i32, i32
  }
  func.func @transform_3(%arg0: i32) -> (i32, i32) {
    %c0_i32 = arith.constant 0 : i32
    %c0_i32_0 = arith.constant 0 : i32
    %c0_i32_1 = arith.constant 0 : i32
    return %c0_i32, %c0_i32_0 : i32, i32
  }
  func.func @transform_4(%arg0: i32) -> (i32, i32) {
    %c0_i32 = arith.constant 0 : i32
    %c0_i32_0 = arith.constant 0 : i32
    %c0_i32_1 = arith.constant 0 : i32
    return %c0_i32, %c0_i32_0 : i32, i32
  }
  func.func @transform_5(%arg0: i32) -> (i32, i32, i32, i32) {
    %c0_i32 = arith.constant 0 : i32
    %c0_i32_0 = arith.constant 0 : i32
    %c0_i32_1 = arith.constant 0 : i32
    %c0_i32_2 = arith.constant 0 : i32
    %c0_i32_3 = arith.constant 0 : i32
    return %c0_i32, %c0_i32_0, %c0_i32_1, %c0_i32_2 : i32, i32, i32, i32
  }
  func.func @transform_6(%arg0: i32) -> (i32, i32) {
    %c0_i32 = arith.constant 0 : i32
    %c0_i32_0 = arith.constant 0 : i32
    %c0_i32_1 = arith.constant 0 : i32
    return %c0_i32, %c0_i32_0 : i32, i32
  }
  func.func @transform_7(%arg0: i32) -> (i32, i32) {
    %c0_i32 = arith.constant 0 : i32
    %c0_i32_0 = arith.constant 0 : i32
    %c0_i32_1 = arith.constant 0 : i32
    return %c0_i32, %c0_i32_0 : i32, i32
  }
  func.func @transform_8(%arg0: i32) -> (i32, i32) {
    %c0_i32 = arith.constant 0 : i32
    %c0_i32_0 = arith.constant 0 : i32
    %c0_i32_1 = arith.constant 0 : i32
    return %c0_i32, %c0_i32_0 : i32, i32
  }
  func.func @transform_9(%arg0: i32) -> (i32, i32, i32) {
    %c0_i32 = arith.constant 0 : i32
    %c0_i32_0 = arith.constant 0 : i32
    %c0_i32_1 = arith.constant 0 : i32
    return %arg0, %c0_i32, %c0_i32_0 : i32, i32, i32
  }
}

</mosaic_0001>

<llo_original>
// kernel: tpu_custom_call.1
$region0: #{tpu_custom_call.1}
  #allocation0 [shape = 'u32[]', space=smem, size = 0x4, offset = 0x4, fixed_abs, tag = 'smem constant byte address 0x4 - core index']
  #allocation1 [shape = 'u32[72,128]{1,0:T(1,128)}', space=vmem, size = 0x9000, scoped, tag = 'internal scratch']
  #allocation2 [shape = 'f32[8,8,64]{2,1,0:T(8,128)}', space=vmem, size = 0x8000, scoped, tag = 'scratch operand']
  #allocation3 [shape = 'f32[8,8,64]{2,1,0:T(8,128)}', space=vmem, size = 0x8000, scoped, tag = 'scratch operand']
  #allocation4 [shape = 'f32[8,8,16]{2,1,0:T(8,128)}', space=vmem, size = 0x8000, scoped, tag = 'scratch operand']
  #allocation5 [shape = 'f32[8,8,16]{2,1,0:T(8,128)}', space=vmem, size = 0x8000, scoped, tag = 'scratch operand']
  #allocation6 [shape = 'f32[1,1]{1,0:T(1,128)S(1)}', space=vmem, size = 0x200, scoped, tag = 'scoped memory for tpu_custom_call.1']
  %s0 = inlined_call_operand.hbm [shape: f32[8,8,32], index: 0, kind: input, shape index: {}]
  %s1 = inlined_call_operand.hbm [shape: f32[32,128], index: 1, kind: input, shape index: {}]
  %s2 = inlined_call_operand.hbm [shape: f32[2,16,128], index: 2, kind: input, shape index: {}]
  %s3 = inlined_call_operand.vmem [shape: f32[1,128], index: 3, kind: input, shape index: {}]
  %s4 = inlined_call_operand.vmem [shape: f32[1,128], index: 4, kind: input, shape index: {}]
  %s5 = inlined_call_operand.hbm [shape: f32[2,2,16,64], index: 5, kind: input, shape index: {}]
  %s6 = inlined_call_operand.vmem [shape: f32[1,16], index: 6, kind: input, shape index: {}]
  %s7 = inlined_call_operand.vmem [shape: f32[1,16], index: 7, kind: input, shape index: {}]
  %s8 = inlined_call_operand.<no memory space> [shape: f32[1,1], index: 8, kind: input, shape index: {}]
  %s9 = inlined_call_operand.hbm [shape: f32[1,8,8], index: 9, kind: output, shape index: {}]
  %s10 = sld [smem:[#allocation0]]
  $region62: #{tpu_custom_call.1} parent=0
    _
  %s12 = ssub.s32 1, %s10
  %s13 = scalar_select 0, %s12, %s10
  %v14 = vstv %s8
  %15 = vst [vmem:[#allocation6] sm:$0x1] %v14
  $region1: #{tpu_custom_call.1} parent=0
    #allocation7 [shape = 'u8[32768]{0}', space=vmem, size = 0x8000, scoped, tag = 'input window, operand 0, single buffered']
    #allocation8 [shape = 's32[1]{0}', space=sflag, size = 0x4, scoped, tag = 'scoped memory for tpu_custom_call.1']
    #allocation9 [shape = 's32[1]{0}', space=sflag, size = 0x4, scoped, tag = 'scoped memory for tpu_custom_call.1']
    #allocation10 [shape = 'u8[16384]{0}', space=vmem, size = 0x4000, scoped, tag = 'input window, operand 1, single buffered']
    #allocation11 [shape = 's32[1]{0}', space=sflag, size = 0x4, scoped, tag = 'scoped memory for tpu_custom_call.1']
    #allocation12 [shape = 'u8[16384]{0}', space=vmem, size = 0x4000, scoped, tag = 'input window, operand 2, single buffered']
    #allocation13 [shape = 'u8[32768]{0}', space=vmem, size = 0x8000, scoped, tag = 'input window, operand 5, single buffered']
    #allocation14 [shape = 's32[1]{0}', space=sflag, size = 0x4, scoped, tag = 'scoped memory for tpu_custom_call.1']
    #allocation15 [shape = 'u8[4096]{0}', space=vmem, size = 0x1000, scoped, tag = 'output window, operand 0, single buffered']
    %16 = vsyncpa [#allocation8], 0
    %17 = vsyncpa [#allocation11], 0
    %18 = vsyncpa [#allocation14], 0
    %19 = vsyncpa [#allocation9], 0
    // Predicated region
    $region2: #{tpu_custom_call.1} parent=1 // pred_check
      _
    $region3: #{tpu_custom_call.1} parent=1 // pred_check_branch
      %21 = sbr.rel (0) target = $region5
    $region4: #{tpu_custom_call.1} parent=1 // pred_region
      %23 = vsyncadd [#allocation8], 0
      %s24 = sshll.u32 %s0, 4
      %s25 = int_to_ptr.hbm [resolvable:$true] %s24
      %s26 = sshll.u32 [#allocation7], 4
      %s27 = int_to_ptr.vmem [resolvable:$true] %s26
      %32 = dma.hbm_to_vmem [thread:$0]  %s25, 1024, %s27, [#allocation8], 128, 128, 8
    $region5: #{tpu_custom_call.1} parent=1 // pred_fallthru
      _
    // Predicated region
    $region6: #{tpu_custom_call.1} parent=1 // pred_check
      _
    $region7: #{tpu_custom_call.1} parent=1 // pred_check_branch
      %34 = sbr.rel (0) target = $region9
    $region8: #{tpu_custom_call.1} parent=1 // pred_region
      %36 = vsyncadd [#allocation11], 0
      %s37 = sshll.u32 %s1, 4
      %s38 = int_to_ptr.hbm [resolvable:$true] %s37
      %s39 = sshll.u32 [#allocation10], 4
      %s40 = int_to_ptr.vmem [resolvable:$true] %s39
      %45 = dma.hbm_to_vmem [thread:$0]  %s38, 512, %s40, [#allocation11], 128, 128, 8
    $region9: #{tpu_custom_call.1} parent=1 // pred_fallthru
      _
    // Predicated region
    $region10: #{tpu_custom_call.1} parent=1 // pred_check
      _
    $region11: #{tpu_custom_call.1} parent=1 // pred_check_branch
      %47 = sbr.rel (0) target = $region13
    $region12: #{tpu_custom_call.1} parent=1 // pred_region
      %49 = vsyncadd [#allocation11], 0
      %s50 = sshll.u32 %s2, 4
      %s51 = int_to_ptr.hbm [resolvable:$true] %s50
      %s52 = sshll.u32 [#allocation12], 4
      %s53 = int_to_ptr.vmem [resolvable:$true] %s52
      %58 = dma.hbm_to_vmem [thread:$0]  %s51, 512, %s53, [#allocation11], 128, 128, 8
    $region13: #{tpu_custom_call.1} parent=1 // pred_fallthru
      _
    // Predicated region
    $region14: #{tpu_custom_call.1} parent=1 // pred_check
      _
    $region15: #{tpu_custom_call.1} parent=1 // pred_check_branch
      %60 = sbr.rel (0) target = $region17
    $region16: #{tpu_custom_call.1} parent=1 // pred_region
      _
    $region17: #{tpu_custom_call.1} parent=1 // pred_fallthru
      _
    // Predicated region
    $region18: #{tpu_custom_call.1} parent=1 // pred_check
      _
    $region19: #{tpu_custom_call.1} parent=1 // pred_check_branch
      %62 = sbr.rel (0) target = $region21
    $region20: #{tpu_custom_call.1} parent=1 // pred_region
      _
    $region21: #{tpu_custom_call.1} parent=1 // pred_fallthru
      _
    // Predicated region
    $region22: #{tpu_custom_call.1} parent=1 // pred_check
      _
    $region23: #{tpu_custom_call.1} parent=1 // pred_check_branch
      %64 = sbr.rel (0) target = $region25
    $region24: #{tpu_custom_call.1} parent=1 // pred_region
      %66 = vsyncadd [#allocation14], 0
      %s67 = sshll.u32 %s5, 4
      %s68 = int_to_ptr.hbm [resolvable:$true] %s67
      %s69 = sshll.u32 [#allocation13], 4
      %s70 = int_to_ptr.vmem [resolvable:$true] %s69
      %75 = dma.hbm_to_vmem [thread:$0]  %s68, 1024, %s70, [#allocation14], 128, 128, 8
    $region25: #{tpu_custom_call.1} parent=1 // pred_fallthru
      _
    // Predicated region
    $region26: #{tpu_custom_call.1} parent=1 // pred_check
      _
    $region27: #{tpu_custom_call.1} parent=1 // pred_check_branch
      %77 = sbr.rel (0) target = $region29
    $region28: #{tpu_custom_call.1} parent=1 // pred_region
      _
    $region29: #{tpu_custom_call.1} parent=1 // pred_fallthru
      _
    // Predicated region
    $region30: #{tpu_custom_call.1} parent=1 // pred_check
      _
    $region31: #{tpu_custom_call.1} parent=1 // pred_check_branch
      %79 = sbr.rel (0) target = $region33
    $region32: #{tpu_custom_call.1} parent=1 // pred_region
      _
    $region33: #{tpu_custom_call.1} parent=1 // pred_fallthru
      _
    // Predicated region
    $region34: #{tpu_custom_call.1} parent=1 // pred_check
      _
    $region35: #{tpu_custom_call.1} parent=1 // pred_check_branch
      %81 = sbr.rel (0) target = $region37
    $region36: #{tpu_custom_call.1} parent=1 // pred_region
      _
    $region37: #{tpu_custom_call.1} parent=1 // pred_fallthru
      _
    // Predicated region
    $region38: #{tpu_custom_call.1} parent=1 // pred_check
      _
    $region39: #{tpu_custom_call.1} parent=1 // pred_check_branch
      %83 = sbr.rel (0) target = $region41
    $region40: #{tpu_custom_call.1} parent=1 // pred_region
      %85 = dma.done [#allocation8], 1024
    $region41: #{tpu_custom_call.1} parent=1 // pred_fallthru
      _
    // Predicated region
    $region42: #{tpu_custom_call.1} parent=1 // pred_check
      _
    $region43: #{tpu_custom_call.1} parent=1 // pred_check_branch
      %87 = sbr.rel (0) target = $region45
    $region44: #{tpu_custom_call.1} parent=1 // pred_region
      %89 = dma.done [#allocation11], 512
    $region45: #{tpu_custom_call.1} parent=1 // pred_fallthru
      _
    // Predicated region
    $region46: #{tpu_custom_call.1} parent=1 // pred_check
      _
    $region47: #{tpu_custom_call.1} parent=1 // pred_check_branch
      %91 = sbr.rel (0) target = $region49
    $region48: #{tpu_custom_call.1} parent=1 // pred_region
      %93 = dma.done [#allocation11], 512
    $region49: #{tpu_custom_call.1} parent=1 // pred_fallthru
      _
    // Predicated region
    $region50: #{tpu_custom_call.1} parent=1 // pred_check
      _
    $region51: #{tpu_custom_call.1} parent=1 // pred_check_branch
      %95 = sbr.rel (0) target = $region53
    $region52: #{tpu_custom_call.1} parent=1 // pred_region
      %97 = dma.done [#allocation14], 1024
    $region53: #{tpu_custom_call.1} parent=1 // pred_fallthru
      _
    %v98 = vld [vmem:[#allocation7] sm:$0xff]
    %v99 = vld [vmem:[#allocation7 + $0x8] sm:$0xff]
    %v100 = vld [vmem:[#allocation7 + $0x10] sm:$0xff]
    %v101 = vld [vmem:[#allocation7 + $0x18] sm:$0xff]
    %v102 = vld [vmem:[#allocation7 + $0x20] sm:$0xff]
    %v103 = vld [vmem:[#allocation7 + $0x28] sm:$0xff]
    %v104 = vld [vmem:[#allocation7 + $0x30] sm:$0xff]
    %v105 = vld [vmem:[#allocation7 + $0x38] sm:$0xff]
    %v106 = vld [vmem:[#allocation10] sm:$0xff]
    %v107 = vld [vmem:[#allocation10 + $0x8] sm:$0xff]
    %v108 = vld [vmem:[#allocation10 + $0x10] sm:$0xff]
    %v109 = vld [vmem:[#allocation10 + $0x18] sm:$0xff]
    %v110 = vld [vmem:[%s3] sm:$0x1]
    %v112 = vperm.slane %v110, 0
    %vm114 = vcmask 261120
    %v116 = vsel %vm114, %v98, 0
    %v119 = vsel %vm114, %v99, 0
    %v122 = vsel %vm114, %v100, 0
    %v125 = vsel %vm114, %v101, 0
    %v128 = vsel %vm114, %v102, 0
    %v131 = vsel %vm114, %v103, 0
    %v134 = vsel %vm114, %v104, 0
    %v137 = vsel %vm114, %v105, 0
    %139 = vmatpush.msra.mxu0 0.0
    %140 = vmatpush.msra.mxu0 0.0
    %141 = vmatpush.msra.mxu0 0.0
    %142 = vmatpush.msra.mxu0 0.0
    %143 = vmatpush.msra.mxu0 0.0
    %144 = vmatpush.msra.mxu0 0.0
    %145 = vmatpush.msra.mxu0 0.0
    %146 = vmatpush.msra.mxu0 0.0
    %147 = vmatpush.msra.mxu0 0.0
    %148 = vmatpush.msra.mxu0 0.0
    %149 = vmatpush.msra.mxu0 0.0
    %150 = vmatpush.msra.mxu0 0.0
    %151 = vmatpush.msra.mxu0 %v109
    %152 = vmatpush.msra.mxu0 %v108
    %153 = vmatpush.msra.mxu0 %v107
    %154 = vmatpush.msra.mxu0 %v106
    %155 = vmatmul.f32.gmra.mxu0 %v116
    %v156 = vpop.f32.mrf.mxu0
    %v157 = vadd.f32 %v112, %v156
    %158 = vmatmul.f32.gmra.mxu0 %v119
    %v159 = vpop.f32.mrf.mxu0
    %v160 = vadd.f32 %v112, %v159
    %161 = vmatmul.f32.gmra.mxu0 %v122
    %v162 = vpop.f32.mrf.mxu0
    %v163 = vadd.f32 %v112, %v162
    %164 = vmatmul.f32.gmra.mxu0 %v125
    %v165 = vpop.f32.mrf.mxu0
    %v166 = vadd.f32 %v112, %v165
    %167 = vmatmul.f32.gmra.mxu0 %v128
    %v168 = vpop.f32.mrf.mxu0
    %v169 = vadd.f32 %v112, %v168
    %170 = vmatmul.f32.gmra.mxu0 %v131
    %v171 = vpop.f32.mrf.mxu0
    %v172 = vadd.f32 %v112, %v171
    %173 = vmatmul.f32.gmra.mxu0 %v134
    %v174 = vpop.f32.mrf.mxu0
    %v175 = vadd.f32 %v112, %v174
    %176 = vmatmul.f32.gmra.mxu0 %v137
    %v177 = vpop.f32.mrf.mxu0
    %v178 = vadd.f32 %v112, %v177
    %179 = vdwg.mxu0
    %vm180 = vcmask 523264
    %181 = vst.msk [vmem:[#allocation2] sm:$0xff] %vm180, %v157
    %182 = vst.msk [vmem:[#allocation2 + $0x8] sm:$0xff] %vm180, %v160
    %183 = vst.msk [vmem:[#allocation2 + $0x10] sm:$0xff] %vm180, %v163
    %184 = vst.msk [vmem:[#allocation2 + $0x18] sm:$0xff] %vm180, %v166
    %185 = vst.msk [vmem:[#allocation2 + $0x20] sm:$0xff] %vm180, %v169
    %186 = vst.msk [vmem:[#allocation2 + $0x28] sm:$0xff] %vm180, %v172
    %187 = vst.msk [vmem:[#allocation2 + $0x30] sm:$0xff] %vm180, %v175
    %188 = vst.msk [vmem:[#allocation2 + $0x38] sm:$0xff] %vm180, %v178
    %197 = vrot.lane.b32.xlu0 %v157, 64
    %v198 = vpop.permute.xlu0 %197
    %199 = vrot.lane.b32.xlu0 %v160, 64
    %v200 = vpop.permute.xlu0 %199
    %201 = vrot.lane.b32.xlu0 %v163, 64
    %v202 = vpop.permute.xlu0 %201
    %203 = vrot.lane.b32.xlu0 %v166, 64
    %v204 = vpop.permute.xlu0 %203
    %205 = vrot.lane.b32.xlu0 %v169, 64
    %v206 = vpop.permute.xlu0 %205
    %207 = vrot.lane.b32.xlu0 %v172, 64
    %v208 = vpop.permute.xlu0 %207
    %209 = vrot.lane.b32.xlu0 %v175, 64
    %v210 = vpop.permute.xlu0 %209
    %211 = vrot.lane.b32.xlu0 %v178, 64
    %v212 = vpop.permute.xlu0 %211
    %221 = vst.msk [vmem:[#allocation3] sm:$0xff] %vm180, %v198
    %222 = vst.msk [vmem:[#allocation3 + $0x8] sm:$0xff] %vm180, %v200
    %223 = vst.msk [vmem:[#allocation3 + $0x10] sm:$0xff] %vm180, %v202
    %224 = vst.msk [vmem:[#allocation3 + $0x18] sm:$0xff] %vm180, %v204
    %225 = vst.msk [vmem:[#allocation3 + $0x20] sm:$0xff] %vm180, %v206
    %226 = vst.msk [vmem:[#allocation3 + $0x28] sm:$0xff] %vm180, %v208
    %227 = vst.msk [vmem:[#allocation3 + $0x30] sm:$0xff] %vm180, %v210
    %228 = vst.msk [vmem:[#allocation3 + $0x38] sm:$0xff] %vm180, %v212
    %v229 = vld [vmem:[#allocation13] sm:$0xff]
    %v230 = vld [vmem:[#allocation13 + $0x8] sm:$0xff]
    %s231 = scalar_lea.vmem [#allocation13], 16
    %v232 = vld [vmem:[%s231] sm:$0xff]
    %v233 = vld [vmem:[%s231 + $0x8] sm:$0xff]
    %v234 = vld [vmem:[#allocation2] sm:$0xff]
    %vm235 = vcmask 130048
    %v237 = vsel %vm235, 0.0, 0
    %239 = vmatpush.msra.mxu0 0.0
    %240 = vmatpush.msra.mxu0 0.0
    %241 = vmatpush.msra.mxu0 0.0
    %242 = vmatpush.msra.mxu0 0.0
    %243 = vmatpush.msra.mxu0 0.0
    %244 = vmatpush.msra.mxu0 0.0
    %245 = vmatpush.msra.mxu0 0.0
    %246 = vmatpush.msra.mxu0 0.0
    %247 = vmatpush.msra.mxu0 0.0
    %248 = vmatpush.msra.mxu0 0.0
    %249 = vmatpush.msra.mxu0 0.0
    %250 = vmatpush.msra.mxu0 0.0
    %251 = vmatpush.msra.mxu0 0.0
    %252 = vmatpush.msra.mxu0 0.0
    %253 = vmatpush.msra.mxu0 %v230
    %254 = vmatpush.msra.mxu0 %v229
    %255 = vmatmul.f32.gmra.mxu0 %v237
    %v256 = vpop.f32.mrf.mxu0
    %v257 = vadd.f32 0.0, %v256
    %258 = vdwg.mxu0
    %v259 = vadd.f32 %v234, %v257
    %s260 = scalar_lea.vmem [#allocation3], 56
    %v261 = vld [vmem:[%s260] sm:$0xff]
    %262 = vmatpush.msra.mxu0 0.0
    %263 = vmatpush.msra.mxu0 0.0
    %264 = vmatpush.msra.mxu0 0.0
    %265 = vmatpush.msra.mxu0 0.0
    %266 = vmatpush.msra.mxu0 0.0
    %267 = vmatpush.msra.mxu0 0.0
    %268 = vmatpush.msra.mxu0 0.0
    %269 = vmatpush.msra.mxu0 0.0
    %270 = vmatpush.msra.mxu0 0.0
    %271 = vmatpush.msra.mxu0 0.0
    %272 = vmatpush.msra.mxu0 0.0
    %273 = vmatpush.msra.mxu0 0.0
    %274 = vmatpush.msra.mxu0 0.0
    %275 = vmatpush.msra.mxu0 0.0
    %276 = vmatpush.msra.mxu0 %v233
    %277 = vmatpush.msra.mxu0 %v232
    %278 = vmatmul.f32.gmra.mxu0 %v237
    %v279 = vpop.f32.mrf.mxu0
    %v280 = vadd.f32 0.0, %v279
    %281 = vdwg.mxu0
    %v282 = vadd.f32 %v261, %v280
    %v283 = vmul.f32 %v259, 0.5
    %v284 = vtanh.pop %v283
    %v285 = vadd.f32 %v284, 1.0
    %v286 = vmul.f32 %v285, 0.5
    %v287 = vtanh.pop %v259
    %v288 = vmul.f32 %v286, 0.0
    %290 = vrot.lane.b32.xlu0 %v287, 96
    %v291 = vpop.permute.xlu0 %290
    %v293 = vmul.f32 %v286, %v291
    %295 = vrot.lane.b32.xlu0 %v293, 16
    %v296 = vpop.permute.xlu0 %295
    %v298 = vadd.f32 %v288, %v296
    %v299 = vtanh.pop %v298
    %301 = vrot.lane.b32.xlu0 %v299, 32
    %v302 = vpop.permute.xlu0 %301
    %v304 = vmul.f32 %v286, %v302
    %v305 = vmul.f32 %v282, 0.5
    %v306 = vtanh.pop %v305
    %v307 = vadd.f32 %v306, 1.0
    %v308 = vmul.f32 %v307, 0.5
    %v309 = vtanh.pop %v282
    %v310 = vmul.f32 %v308, 0.0
    %312 = vrot.lane.b32.xlu0 %v309, 96
    %v313 = vpop.permute.xlu0 %312
    %v315 = vmul.f32 %v308, %v313
    %317 = vrot.lane.b32.xlu0 %v315, 16
    %v318 = vpop.permute.xlu0 %317
    %v320 = vadd.f32 %v310, %v318
    %v321 = vtanh.pop %v320
    %323 = vrot.lane.b32.xlu0 %v321, 32
    %v324 = vpop.permute.xlu0 %323
    %v326 = vmul.f32 %v308, %v324
    %328 = vrot.lane.b32.xlu0 %v304, 80
    %v329 = vpop.permute.xlu0 %328
    %331 = vst.msk [vmem:[#allocation4] sm:$0xff] %vm235, %v329
    %333 = vrot.lane.b32.xlu0 %v326, 80
    %v334 = vpop.permute.xlu0 %333
    %s336 = scalar_lea.vmem [#allocation5], 56
    %337 = vst.msk [vmem:[%s336] sm:$0xff] %vm235, %v334
    %s338 = scalar_lea.vmem [#allocation2], 8
    %v339 = vld [vmem:[%s338] sm:$0xff]
    %v340 = vsel %vm235, %v329, 0
    %342 = vmatpush.msra.mxu0 0.0
    %343 = vmatpush.msra.mxu0 0.0
    %344 = vmatpush.msra.mxu0 0.0
    %345 = vmatpush.msra.mxu0 0.0
    %346 = vmatpush.msra.mxu0 0.0
    %347 = vmatpush.msra.mxu0 0.0
    %348 = vmatpush.msra.mxu0 0.0
    %349 = vmatpush.msra.mxu0 0.0
    %350 = vmatpush.msra.mxu0 0.0
    %351 = vmatpush.msra.mxu0 0.0
    %352 = vmatpush.msra.mxu0 0.0
    %353 = vmatpush.msra.mxu0 0.0
    %354 = vmatpush.msra.mxu0 0.0
    %355 = vmatpush.msra.mxu0 0.0
    %356 = vmatpush.msra.mxu0 %v230
    %357 = vmatpush.msra.mxu0 %v229
    %358 = vmatmul.f32.gmra.mxu0 %v340
    %v359 = vpop.f32.mrf.mxu0
    %v360 = vadd.f32 0.0, %v359
    %361 = vdwg.mxu0
    %v362 = vadd.f32 %v339, %v360
    %s363 = scalar_lea.vmem [#allocation3], 48
    %v364 = vld [vmem:[%s363] sm:$0xff]
    %v365 = vsel %vm235, %v334, 0
    %367 = vmatpush.msra.mxu0 0.0
    %368 = vmatpush.msra.mxu0 0.0
    %369 = vmatpush.msra.mxu0 0.0
    %370 = vmatpush.msra.mxu0 0.0
    %371 = vmatpush.msra.mxu0 0.0
    %372 = vmatpush.msra.mxu0 0.0
    %373 = vmatpush.msra.mxu0 0.0
    %374 = vmatpush.msra.mxu0 0.0
    %375 = vmatpush.msra.mxu0 0.0
    %376 = vmatpush.msra.mxu0 0.0
    %377 = vmatpush.msra.mxu0 0.0
    %378 = vmatpush.msra.mxu0 0.0
    %379 = vmatpush.msra.mxu0 0.0
    %380 = vmatpush.msra.mxu0 0.0
    %381 = vmatpush.msra.mxu0 %v233
    %382 = vmatpush.msra.mxu0 %v232
    %383 = vmatmul.f32.gmra.mxu0 %v365
    %v384 = vpop.f32.mrf.mxu0
    %v385 = vadd.f32 0.0, %v384
    %386 = vdwg.mxu0
    %v387 = vadd.f32 %v364, %v385
    %v388 = vmul.f32 %v362, 0.5
    %v389 = vtanh.pop %v388
    %v390 = vadd.f32 %v389, 1.0
    %v391 = vmul.f32 %v390, 0.5
    %v392 = vtanh.pop %v362
    %v393 = vmul.f32 %v391, %v298
    %395 = vrot.lane.b32.xlu0 %v392, 96
    %v396 = vpop.permute.xlu0 %395
    %v398 = vmul.f32 %v391, %v396
    %400 = vrot.lane.b32.xlu0 %v398, 16
    %v401 = vpop.permute.xlu0 %400
    %v403 = vadd.f32 %v393, %v401
    %v404 = vtanh.pop %v403
    %406 = vrot.lane.b32.xlu0 %v404, 32
    %v407 = vpop.permute.xlu0 %406
    %v409 = vmul.f32 %v391, %v407
    %v410 = vmul.f32 %v387, 0.5
    %v411 = vtanh.pop %v410
    %v412 = vadd.f32 %v411, 1.0
    %v413 = vmul.f32 %v412, 0.5
    %v414 = vtanh.pop %v387
    %v415 = vmul.f32 %v413, %v320
    %417 = vrot.lane.b32.xlu0 %v414, 96
    %v418 = vpop.permute.xlu0 %417
    %v420 = vmul.f32 %v413, %v418
    %422 = vrot.lane.b32.xlu0 %v420, 16
    %v423 = vpop.permute.xlu0 %422
    %v425 = vadd.f32 %v415, %v423
    %v426 = vtanh.pop %v425
    %428 = vrot.lane.b32.xlu0 %v426, 32
    %v429 = vpop.permute.xlu0 %428
    %v431 = vmul.f32 %v413, %v429
    %433 = vrot.lane.b32.xlu0 %v409, 80
    %v434 = vpop.permute.xlu0 %433
    %s436 = scalar_lea.vmem [#allocation4], 8
    %437 = vst.msk [vmem:[%s436] sm:$0xff] %vm235, %v434
    %439 = vrot.lane.b32.xlu0 %v431, 80
    %v440 = vpop.permute.xlu0 %439
    %s442 = scalar_lea.vmem [#allocation5], 48
    %443 = vst.msk [vmem:[%s442] sm:$0xff] %vm235, %v440
    %s444 = scalar_lea.vmem [#allocation2], 16
    %v445 = vld [vmem:[%s444] sm:$0xff]
    %v446 = vsel %vm235, %v434, 0
    %448 = vmatpush.msra.mxu0 0.0
    %449 = vmatpush.msra.mxu0 0.0
    %450 = vmatpush.msra.mxu0 0.0
    %451 = vmatpush.msra.mxu0 0.0
    %452 = vmatpush.msra.mxu0 0.0
    %453 = vmatpush.msra.mxu0 0.0
    %454 = vmatpush.msra.mxu0 0.0
    %455 = vmatpush.msra.mxu0 0.0
    %456 = vmatpush.msra.mxu0 0.0
    %457 = vmatpush.msra.mxu0 0.0
    %458 = vmatpush.msra.mxu0 0.0
    %459 = vmatpush.msra.mxu0 0.0
    %460 = vmatpush.msra.mxu0 0.0
    %461 = vmatpush.msra.mxu0 0.0
    %462 = vmatpush.msra.mxu0 %v230
    %463 = vmatpush.msra.mxu0 %v229
    %464 = vmatmul.f32.gmra.mxu0 %v446
    %v465 = vpop.f32.mrf.mxu0
    %v466 = vadd.f32 0.0, %v465
    %467 = vdwg.mxu0
    %v468 = vadd.f32 %v445, %v466
    %s469 = scalar_lea.vmem [#allocation3], 40
    %v470 = vld [vmem:[%s469] sm:$0xff]
    %v471 = vsel %vm235, %v440, 0
    %473 = vmatpush.msra.mxu0 0.0
    %474 = vmatpush.msra.mxu0 0.0
    %475 = vmatpush.msra.mxu0 0.0
    %476 = vmatpush.msra.mxu0 0.0
    %477 = vmatpush.msra.mxu0 0.0
    %478 = vmatpush.msra.mxu0 0.0
    %479 = vmatpush.msra.mxu0 0.0
    %480 = vmatpush.msra.mxu0 0.0
    %481 = vmatpush.msra.mxu0 0.0
    %482 = vmatpush.msra.mxu0 0.0
    %483 = vmatpush.msra.mxu0 0.0
    %484 = vmatpush.msra.mxu0 0.0
    %485 = vmatpush.msra.mxu0 0.0
    %486 = vmatpush.msra.mxu0 0.0
    %487 = vmatpush.msra.mxu0 %v233
    %488 = vmatpush.msra.mxu0 %v232
    %489 = vmatmul.f32.gmra.mxu0 %v471
    %v490 = vpop.f32.mrf.mxu0
    %v491 = vadd.f32 0.0, %v490
    %492 = vdwg.mxu0
    %v493 = vadd.f32 %v470, %v491
    %v494 = vmul.f32 %v468, 0.5
    %v495 = vtanh.pop %v494
    %v496 = vadd.f32 %v495, 1.0
    %v497 = vmul.f32 %v496, 0.5
    %v498 = vtanh.pop %v468
    %v499 = vmul.f32 %v497, %v403
    %501 = vrot.lane.b32.xlu0 %v498, 96
    %v502 = vpop.permute.xlu0 %501
    %v504 = vmul.f32 %v497, %v502
    %506 = vrot.lane.b32.xlu0 %v504, 16
    %v507 = vpop.permute.xlu0 %506
    %v509 = vadd.f32 %v499, %v507
    %v510 = vtanh.pop %v509
    %512 = vrot.lane.b32.xlu0 %v510, 32
    %v513 = vpop.permute.xlu0 %512
    %v515 = vmul.f32 %v497, %v513
    %v516 = vmul.f32 %v493, 0.5
    %v517 = vtanh.pop %v516
    %v518 = vadd.f32 %v517, 1.0
    %v519 = vmul.f32 %v518, 0.5
    %v520 = vtanh.pop %v493
    %v521 = vmul.f32 %v519, %v425
    %523 = vrot.lane.b32.xlu0 %v520, 96
    %v524 = vpop.permute.xlu0 %523
    %v526 = vmul.f32 %v519, %v524
    %528 = vrot.lane.b32.xlu0 %v526, 16
    %v529 = vpop.permute.xlu0 %528
    %v531 = vadd.f32 %v521, %v529
    %v532 = vtanh.pop %v531
    %534 = vrot.lane.b32.xlu0 %v532, 32
    %v535 = vpop.permute.xlu0 %534
    %v537 = vmul.f32 %v519, %v535
    %539 = vrot.lane.b32.xlu0 %v515, 80
    %v540 = vpop.permute.xlu0 %539
    %s542 = scalar_lea.vmem [#allocation4], 16
    %543 = vst.msk [vmem:[%s542] sm:$0xff] %vm235, %v540
    %545 = vrot.lane.b32.xlu0 %v537, 80
    %v546 = vpop.permute.xlu0 %545
    %s548 = scalar_lea.vmem [#allocation5], 40
    %549 = vst.msk [vmem:[%s548] sm:$0xff] %vm235, %v546
    %s550 = scalar_lea.vmem [#allocation2], 24
    %v551 = vld [vmem:[%s550] sm:$0xff]
    %v552 = vsel %vm235, %v540, 0
    %554 = vmatpush.msra.mxu0 0.0
    %555 = vmatpush.msra.mxu0 0.0
    %556 = vmatpush.msra.mxu0 0.0
    %557 = vmatpush.msra.mxu0 0.0
    %558 = vmatpush.msra.mxu0 0.0
    %559 = vmatpush.msra.mxu0 0.0
    %560 = vmatpush.msra.mxu0 0.0
    %561 = vmatpush.msra.mxu0 0.0
    %562 = vmatpush.msra.mxu0 0.0
    %563 = vmatpush.msra.mxu0 0.0
    %564 = vmatpush.msra.mxu0 0.0
    %565 = vmatpush.msra.mxu0 0.0
    %566 = vmatpush.msra.mxu0 0.0
    %567 = vmatpush.msra.mxu0 0.0
    %568 = vmatpush.msra.mxu0 %v230
    %569 = vmatpush.msra.mxu0 %v229
    %570 = vmatmul.f32.gmra.mxu0 %v552
    %v571 = vpop.f32.mrf.mxu0
    %v572 = vadd.f32 0.0, %v571
    %573 = vdwg.mxu0
    %v574 = vadd.f32 %v551, %v572
    %s575 = scalar_lea.vmem [#allocation3], 32
    %v576 = vld [vmem:[%s575] sm:$0xff]
    %v577 = vsel %vm235, %v546, 0
    %579 = vmatpush.msra.mxu0 0.0
    %580 = vmatpush.msra.mxu0 0.0
    %581 = vmatpush.msra.mxu0 0.0
    %582 = vmatpush.msra.mxu0 0.0
    %583 = vmatpush.msra.mxu0 0.0
    %584 = vmatpush.msra.mxu0 0.0
    %585 = vmatpush.msra.mxu0 0.0
    %586 = vmatpush.msra.mxu0 0.0
    %587 = vmatpush.msra.mxu0 0.0
    %588 = vmatpush.msra.mxu0 0.0
    %589 = vmatpush.msra.mxu0 0.0
    %590 = vmatpush.msra.mxu0 0.0
    %591 = vmatpush.msra.mxu0 0.0
    %592 = vmatpush.msra.mxu0 0.0
    %593 = vmatpush.msra.mxu0 %v233
    %594 = vmatpush.msra.mxu0 %v232
    %595 = vmatmul.f32.gmra.mxu0 %v577
    %v596 = vpop.f32.mrf.mxu0
    %v597 = vadd.f32 0.0, %v596
    %598 = vdwg.mxu0
    %v599 = vadd.f32 %v576, %v597
    %v600 = vmul.f32 %v574, 0.5
    %v601 = vtanh.pop %v600
    %v602 = vadd.f32 %v601, 1.0
    %v603 = vmul.f32 %v602, 0.5
    %v604 = vtanh.pop %v574
    %v605 = vmul.f32 %v603, %v509
    %607 = vrot.lane.b32.xlu0 %v604, 96
    %v608 = vpop.permute.xlu0 %607
    %v610 = vmul.f32 %v603, %v608
    %612 = vrot.lane.b32.xlu0 %v610, 16
    %v613 = vpop.permute.xlu0 %612
    %v615 = vadd.f32 %v605, %v613
    %v616 = vtanh.pop %v615
    %618 = vrot.lane.b32.xlu0 %v616, 32
    %v619 = vpop.permute.xlu0 %618
    %v621 = vmul.f32 %v603, %v619
    %v622 = vmul.f32 %v599, 0.5
    %v623 = vtanh.pop %v622
    %v624 = vadd.f32 %v623, 1.0
    %v625 = vmul.f32 %v624, 0.5
    %v626 = vtanh.pop %v599
    %v627 = vmul.f32 %v625, %v531
    %629 = vrot.lane.b32.xlu0 %v626, 96
    %v630 = vpop.permute.xlu0 %629
    %v632 = vmul.f32 %v625, %v630
    %634 = vrot.lane.b32.xlu0 %v632, 16
    %v635 = vpop.permute.xlu0 %634
    %v637 = vadd.f32 %v627, %v635
    %v638 = vtanh.pop %v637
    %640 = vrot.lane.b32.xlu0 %v638, 32
    %v641 = vpop.permute.xlu0 %640
    %v643 = vmul.f32 %v625, %v641
    %645 = vrot.lane.b32.xlu0 %v621, 80
    %v646 = vpop.permute.xlu0 %645
    %s648 = scalar_lea.vmem [#allocation4], 24
    %649 = vst.msk [vmem:[%s648] sm:$0xff] %vm235, %v646
    %651 = vrot.lane.b32.xlu0 %v643, 80
    %v652 = vpop.permute.xlu0 %651
    %s654 = scalar_lea.vmem [#allocation5], 32
    %655 = vst.msk [vmem:[%s654] sm:$0xff] %vm235, %v652
    %s656 = scalar_lea.vmem [#allocation2], 32
    %v657 = vld [vmem:[%s656] sm:$0xff]
    %v658 = vsel %vm235, %v646, 0
    %660 = vmatpush.msra.mxu0 0.0
    %661 = vmatpush.msra.mxu0 0.0
    %662 = vmatpush.msra.mxu0 0.0
    %663 = vmatpush.msra.mxu0 0.0
    %664 = vmatpush.msra.mxu0 0.0
    %665 = vmatpush.msra.mxu0 0.0
    %666 = vmatpush.msra.mxu0 0.0
    %667 = vmatpush.msra.mxu0 0.0
    %668 = vmatpush.msra.mxu0 0.0
    %669 = vmatpush.msra.mxu0 0.0
    %670 = vmatpush.msra.mxu0 0.0
    %671 = vmatpush.msra.mxu0 0.0
    %672 = vmatpush.msra.mxu0 0.0
    %673 = vmatpush.msra.mxu0 0.0
    %674 = vmatpush.msra.mxu0 %v230
    %675 = vmatpush.msra.mxu0 %v229
    %676 = vmatmul.f32.gmra.mxu0 %v658
    %v677 = vpop.f32.mrf.mxu0
    %v678 = vadd.f32 0.0, %v677
    %679 = vdwg.mxu0
    %v680 = vadd.f32 %v657, %v678
    %s681 = scalar_lea.vmem [#allocation3], 24
    %v682 = vld [vmem:[%s681] sm:$0xff]
    %v683 = vsel %vm235, %v652, 0
    %685 = vmatpush.msra.mxu0 0.0
    %686 = vmatpush.msra.mxu0 0.0
    %687 = vmatpush.msra.mxu0 0.0
    %688 = vmatpush.msra.mxu0 0.0
    %689 = vmatpush.msra.mxu0 0.0
    %690 = vmatpush.msra.mxu0 0.0
    %691 = vmatpush.msra.mxu0 0.0
    %692 = vmatpush.msra.mxu0 0.0
    %693 = vmatpush.msra.mxu0 0.0
    %694 = vmatpush.msra.mxu0 0.0
    %695 = vmatpush.msra.mxu0 0.0
    %696 = vmatpush.msra.mxu0 0.0
    %697 = vmatpush.msra.mxu0 0.0
    %698 = vmatpush.msra.mxu0 0.0
    %699 = vmatpush.msra.mxu0 %v233
    %700 = vmatpush.msra.mxu0 %v232
    %701 = vmatmul.f32.gmra.mxu0 %v683
    %v702 = vpop.f32.mrf.mxu0
    %v703 = vadd.f32 0.0, %v702
    %704 = vdwg.mxu0
    %v705 = vadd.f32 %v682, %v703
    %v706 = vmul.f32 %v680, 0.5
    %v707 = vtanh.pop %v706
    %v708 = vadd.f32 %v707, 1.0
    %v709 = vmul.f32 %v708, 0.5
    %v710 = vtanh.pop %v680
    %v711 = vmul.f32 %v709, %v615
    %713 = vrot.lane.b32.xlu0 %v710, 96
    %v714 = vpop.permute.xlu0 %713
    %v716 = vmul.f32 %v709, %v714
    %718 = vrot.lane.b32.xlu0 %v716, 16
    %v719 = vpop.permute.xlu0 %718
    %v721 = vadd.f32 %v711, %v719
    %v722 = vtanh.pop %v721
    %724 = vrot.lane.b32.xlu0 %v722, 32
    %v725 = vpop.permute.xlu0 %724
    %v727 = vmul.f32 %v709, %v725
    %v728 = vmul.f32 %v705, 0.5
    %v729 = vtanh.pop %v728
    %v730 = vadd.f32 %v729, 1.0
    %v731 = vmul.f32 %v730, 0.5
    %v732 = vtanh.pop %v705
    %v733 = vmul.f32 %v731, %v637
    %735 = vrot.lane.b32.xlu0 %v732, 96
    %v736 = vpop.permute.xlu0 %735
    %v738 = vmul.f32 %v731, %v736
    %740 = vrot.lane.b32.xlu0 %v738, 16
    %v741 = vpop.permute.xlu0 %740
    %v743 = vadd.f32 %v733, %v741
    %v744 = vtanh.pop %v743
    %746 = vrot.lane.b32.xlu0 %v744, 32
    %v747 = vpop.permute.xlu0 %746
    %v749 = vmul.f32 %v731, %v747
    %751 = vrot.lane.b32.xlu0 %v727, 80
    %v752 = vpop.permute.xlu0 %751
    %s754 = scalar_lea.vmem [#allocation4], 32
    %755 = vst.msk [vmem:[%s754] sm:$0xff] %vm235, %v752
    %757 = vrot.lane.b32.xlu0 %v749, 80
    %v758 = vpop.permute.xlu0 %757
    %s760 = scalar_lea.vmem [#allocation5], 24
    %761 = vst.msk [vmem:[%s760] sm:$0xff] %vm235, %v758
    %s762 = scalar_lea.vmem [#allocation2], 40
    %v763 = vld [vmem:[%s762] sm:$0xff]
    %v764 = vsel %vm235, %v752, 0
    %766 = vmatpush.msra.mxu0 0.0
    %767 = vmatpush.msra.mxu0 0.0
    %768 = vmatpush.msra.mxu0 0.0
    %769 = vmatpush.msra.mxu0 0.0
    %770 = vmatpush.msra.mxu0 0.0
    %771 = vmatpush.msra.mxu0 0.0
    %772 = vmatpush.msra.mxu0 0.0
    %773 = vmatpush.msra.mxu0 0.0
    %774 = vmatpush.msra.mxu0 0.0
    %775 = vmatpush.msra.mxu0 0.0
    %776 = vmatpush.msra.mxu0 0.0
    %777 = vmatpush.msra.mxu0 0.0
    %778 = vmatpush.msra.mxu0 0.0
    %779 = vmatpush.msra.mxu0 0.0
    %780 = vmatpush.msra.mxu0 %v230
    %781 = vmatpush.msra.mxu0 %v229
    %782 = vmatmul.f32.gmra.mxu0 %v764
    %v783 = vpop.f32.mrf.mxu0
    %v784 = vadd.f32 0.0, %v783
    %785 = vdwg.mxu0
    %v786 = vadd.f32 %v763, %v784
    %s787 = scalar_lea.vmem [#allocation3], 16
    %v788 = vld [vmem:[%s787] sm:$0xff]
    %v789 = vsel %vm235, %v758, 0
    %791 = vmatpush.msra.mxu0 0.0
    %792 = vmatpush.msra.mxu0 0.0
    %793 = vmatpush.msra.mxu0 0.0
    %794 = vmatpush.msra.mxu0 0.0
    %795 = vmatpush.msra.mxu0 0.0
    %796 = vmatpush.msra.mxu0 0.0
    %797 = vmatpush.msra.mxu0 0.0
    %798 = vmatpush.msra.mxu0 0.0
    %799 = vmatpush.msra.mxu0 0.0
    %800 = vmatpush.msra.mxu0 0.0
    %801 = vmatpush.msra.mxu0 0.0
    %802 = vmatpush.msra.mxu0 0.0
    %803 = vmatpush.msra.mxu0 0.0
    %804 = vmatpush.msra.mxu0 0.0
    %805 = vmatpush.msra.mxu0 %v233
    %806 = vmatpush.msra.mxu0 %v232
    %807 = vmatmul.f32.gmra.mxu0 %v789
    %v808 = vpop.f32.mrf.mxu0
    %v809 = vadd.f32 0.0, %v808
    %810 = vdwg.mxu0
    %v811 = vadd.f32 %v788, %v809
    %v812 = vmul.f32 %v786, 0.5
    %v813 = vtanh.pop %v812
    %v814 = vadd.f32 %v813, 1.0
    %v815 = vmul.f32 %v814, 0.5
    %v816 = vtanh.pop %v786
    %v817 = vmul.f32 %v815, %v721
    %819 = vrot.lane.b32.xlu0 %v816, 96
    %v820 = vpop.permute.xlu0 %819
    %v822 = vmul.f32 %v815, %v820
    %824 = vrot.lane.b32.xlu0 %v822, 16
    %v825 = vpop.permute.xlu0 %824
    %v827 = vadd.f32 %v817, %v825
    %v828 = vtanh.pop %v827
    %830 = vrot.lane.b32.xlu0 %v828, 32
    %v831 = vpop.permute.xlu0 %830
    %v833 = vmul.f32 %v815, %v831
    %v834 = vmul.f32 %v811, 0.5
    %v835 = vtanh.pop %v834
    %v836 = vadd.f32 %v835, 1.0
    %v837 = vmul.f32 %v836, 0.5
    %v838 = vtanh.pop %v811
    %v839 = vmul.f32 %v837, %v743
    %841 = vrot.lane.b32.xlu0 %v838, 96
    %v842 = vpop.permute.xlu0 %841
    %v844 = vmul.f32 %v837, %v842
    %846 = vrot.lane.b32.xlu0 %v844, 16
    %v847 = vpop.permute.xlu0 %846
    %v849 = vadd.f32 %v839, %v847
    %v850 = vtanh.pop %v849
    %852 = vrot.lane.b32.xlu0 %v850, 32
    %v853 = vpop.permute.xlu0 %852
    %v855 = vmul.f32 %v837, %v853
    %857 = vrot.lane.b32.xlu0 %v833, 80
    %v858 = vpop.permute.xlu0 %857
    %s860 = scalar_lea.vmem [#allocation4], 40
    %861 = vst.msk [vmem:[%s860] sm:$0xff] %vm235, %v858
    %863 = vrot.lane.b32.xlu0 %v855, 80
    %v864 = vpop.permute.xlu0 %863
    %s866 = scalar_lea.vmem [#allocation5], 16
    %867 = vst.msk [vmem:[%s866] sm:$0xff] %vm235, %v864
    %s868 = scalar_lea.vmem [#allocation2], 48
    %v869 = vld [vmem:[%s868] sm:$0xff]
    %v870 = vsel %vm235, %v858, 0
    %872 = vmatpush.msra.mxu0 0.0
    %873 = vmatpush.msra.mxu0 0.0
    %874 = vmatpush.msra.mxu0 0.0
    %875 = vmatpush.msra.mxu0 0.0
    %876 = vmatpush.msra.mxu0 0.0
    %877 = vmatpush.msra.mxu0 0.0
    %878 = vmatpush.msra.mxu0 0.0
    %879 = vmatpush.msra.mxu0 0.0
    %880 = vmatpush.msra.mxu0 0.0
    %881 = vmatpush.msra.mxu0 0.0
    %882 = vmatpush.msra.mxu0 0.0
    %883 = vmatpush.msra.mxu0 0.0
    %884 = vmatpush.msra.mxu0 0.0
    %885 = vmatpush.msra.mxu0 0.0
    %886 = vmatpush.msra.mxu0 %v230
    %887 = vmatpush.msra.mxu0 %v229
    %888 = vmatmul.f32.gmra.mxu0 %v870
    %v889 = vpop.f32.mrf.mxu0
    %v890 = vadd.f32 0.0, %v889
    %891 = vdwg.mxu0
    %v892 = vadd.f32 %v869, %v890
    %s893 = scalar_lea.vmem [#allocation3], 8
    %v894 = vld [vmem:[%s893] sm:$0xff]
    %v895 = vsel %vm235, %v864, 0
    %897 = vmatpush.msra.mxu0 0.0
    %898 = vmatpush.msra.mxu0 0.0
    %899 = vmatpush.msra.mxu0 0.0
    %900 = vmatpush.msra.mxu0 0.0
    %901 = vmatpush.msra.mxu0 0.0
    %902 = vmatpush.msra.mxu0 0.0
    %903 = vmatpush.msra.mxu0 0.0
    %904 = vmatpush.msra.mxu0 0.0
    %905 = vmatpush.msra.mxu0 0.0
    %906 = vmatpush.msra.mxu0 0.0
    %907 = vmatpush.msra.mxu0 0.0
    %908 = vmatpush.msra.mxu0 0.0
    %909 = vmatpush.msra.mxu0 0.0
    %910 = vmatpush.msra.mxu0 0.0
    %911 = vmatpush.msra.mxu0 %v233
    %912 = vmatpush.msra.mxu0 %v232
    %913 = vmatmul.f32.gmra.mxu0 %v895
    %v914 = vpop.f32.mrf.mxu0
    %v915 = vadd.f32 0.0, %v914
    %916 = vdwg.mxu0
    %v917 = vadd.f32 %v894, %v915
    %v918 = vmul.f32 %v892, 0.5
    %v919 = vtanh.pop %v918
    %v920 = vadd.f32 %v919, 1.0
    %v921 = vmul.f32 %v920, 0.5
    %v922 = vtanh.pop %v892
    %v923 = vmul.f32 %v921, %v827
    %925 = vrot.lane.b32.xlu0 %v922, 96
    %v926 = vpop.permute.xlu0 %925
    %v928 = vmul.f32 %v921, %v926
    %930 = vrot.lane.b32.xlu0 %v928, 16
    %v931 = vpop.permute.xlu0 %930
    %v933 = vadd.f32 %v923, %v931
    %v934 = vtanh.pop %v933
    %936 = vrot.lane.b32.xlu0 %v934, 32
    %v937 = vpop.permute.xlu0 %936
    %v939 = vmul.f32 %v921, %v937
    %v940 = vmul.f32 %v917, 0.5
    %v941 = vtanh.pop %v940
    %v942 = vadd.f32 %v941, 1.0
    %v943 = vmul.f32 %v942, 0.5
    %v944 = vtanh.pop %v917
    %v945 = vmul.f32 %v943, %v849
    %947 = vrot.lane.b32.xlu0 %v944, 96
    %v948 = vpop.permute.xlu0 %947
    %v950 = vmul.f32 %v943, %v948
    %952 = vrot.lane.b32.xlu0 %v950, 16
    %v953 = vpop.permute.xlu0 %952
    %v955 = vadd.f32 %v945, %v953
    %v956 = vtanh.pop %v955
    %958 = vrot.lane.b32.xlu0 %v956, 32
    %v959 = vpop.permute.xlu0 %958
    %v961 = vmul.f32 %v943, %v959
    %963 = vrot.lane.b32.xlu0 %v939, 80
    %v964 = vpop.permute.xlu0 %963
    %s966 = scalar_lea.vmem [#allocation4], 48
    %967 = vst.msk [vmem:[%s966] sm:$0xff] %vm235, %v964
    %969 = vrot.lane.b32.xlu0 %v961, 80
    %v970 = vpop.permute.xlu0 %969
    %s972 = scalar_lea.vmem [#allocation5], 8
    %973 = vst.msk [vmem:[%s972] sm:$0xff] %vm235, %v970
    %s974 = scalar_lea.vmem [#allocation2], 56
    %v975 = vld [vmem:[%s974] sm:$0xff]
    %v976 = vsel %vm235, %v964, 0
    %978 = vmatpush.msra.mxu0 0.0
    %979 = vmatpush.msra.mxu0 0.0
    %980 = vmatpush.msra.mxu0 0.0
    %981 = vmatpush.msra.mxu0 0.0
    %982 = vmatpush.msra.mxu0 0.0
    %983 = vmatpush.msra.mxu0 0.0
    %984 = vmatpush.msra.mxu0 0.0
    %985 = vmatpush.msra.mxu0 0.0
    %986 = vmatpush.msra.mxu0 0.0
    %987 = vmatpush.msra.mxu0 0.0
    %988 = vmatpush.msra.mxu0 0.0
    %989 = vmatpush.msra.mxu0 0.0
    %990 = vmatpush.msra.mxu0 0.0
    %991 = vmatpush.msra.mxu0 0.0
    %992 = vmatpush.msra.mxu0 %v230
    %993 = vmatpush.msra.mxu0 %v229
    %994 = vmatmul.f32.gmra.mxu0 %v976
    %v995 = vpop.f32.mrf.mxu0
    %v996 = vadd.f32 0.0, %v995
    %997 = vdwg.mxu0
    %v998 = vadd.f32 %v975, %v996
    %v999 = vld [vmem:[#allocation3] sm:$0xff]
    %v1000 = vsel %vm235, %v970, 0
    %1002 = vmatpush.msra.mxu0 0.0
    %1003 = vmatpush.msra.mxu0 0.0
    %1004 = vmatpush.msra.mxu0 0.0
    %1005 = vmatpush.msra.mxu0 0.0
    %1006 = vmatpush.msra.mxu0 0.0
    %1007 = vmatpush.msra.mxu0 0.0
    %1008 = vmatpush.msra.mxu0 0.0
    %1009 = vmatpush.msra.mxu0 0.0
    %1010 = vmatpush.msra.mxu0 0.0
    %1011 = vmatpush.msra.mxu0 0.0
    %1012 = vmatpush.msra.mxu0 0.0
    %1013 = vmatpush.msra.mxu0 0.0
    %1014 = vmatpush.msra.mxu0 0.0
    %1015 = vmatpush.msra.mxu0 0.0
    %1016 = vmatpush.msra.mxu0 %v233
    %1017 = vmatpush.msra.mxu0 %v232
    %1018 = vmatmul.f32.gmra.mxu0 %v1000
    %v1019 = vpop.f32.mrf.mxu0
    %v1020 = vadd.f32 0.0, %v1019
    %1021 = vdwg.mxu0
    %v1022 = vadd.f32 %v999, %v1020
    %v1023 = vmul.f32 %v998, 0.5
    %v1024 = vtanh.pop %v1023
    %v1025 = vadd.f32 %v1024, 1.0
    %v1026 = vmul.f32 %v1025, 0.5
    %v1027 = vtanh.pop %v998
    %v1028 = vmul.f32 %v1026, %v933
    %1030 = vrot.lane.b32.xlu0 %v1027, 96
    %v1031 = vpop.permute.xlu0 %1030
    %v1033 = vmul.f32 %v1026, %v1031
    %1035 = vrot.lane.b32.xlu0 %v1033, 16
    %v1036 = vpop.permute.xlu0 %1035
    %v1038 = vadd.f32 %v1028, %v1036
    %v1039 = vtanh.pop %v1038
    %1041 = vrot.lane.b32.xlu0 %v1039, 32
    %v1042 = vpop.permute.xlu0 %1041
    %v1044 = vmul.f32 %v1026, %v1042
    %v1045 = vmul.f32 %v1022, 0.5
    %v1046 = vtanh.pop %v1045
    %v1047 = vadd.f32 %v1046, 1.0
    %v1048 = vmul.f32 %v1047, 0.5
    %v1049 = vtanh.pop %v1022
    %v1050 = vmul.f32 %v1048, %v955
    %1052 = vrot.lane.b32.xlu0 %v1049, 96
    %v1053 = vpop.permute.xlu0 %1052
    %v1055 = vmul.f32 %v1048, %v1053
    %1057 = vrot.lane.b32.xlu0 %v1055, 16
    %v1058 = vpop.permute.xlu0 %1057
    %v1060 = vadd.f32 %v1050, %v1058
    %v1061 = vtanh.pop %v1060
    %1063 = vrot.lane.b32.xlu0 %v1061, 32
    %v1064 = vpop.permute.xlu0 %1063
    %v1066 = vmul.f32 %v1048, %v1064
    %1068 = vrot.lane.b32.xlu0 %v1044, 80
    %v1069 = vpop.permute.xlu0 %1068
    %s1071 = scalar_lea.vmem [#allocation4], 56
    %1072 = vst.msk [vmem:[%s1071] sm:$0xff] %vm235, %v1069
    %1074 = vrot.lane.b32.xlu0 %v1066, 80
    %v1075 = vpop.permute.xlu0 %1074
    %1077 = vst.msk [vmem:[#allocation5] sm:$0xff] %vm235, %v1075
    %v1078 = vld [vmem:[#allocation4] sm:$0xff]
    %v1079 = vld [vmem:[#allocation4 + $0x8] sm:$0xff]
    %v1080 = vld [vmem:[#allocation4 + $0x10] sm:$0xff]
    %v1081 = vld [vmem:[#allocation4 + $0x18] sm:$0xff]
    %v1082 = vld [vmem:[#allocation4 + $0x20] sm:$0xff]
    %v1083 = vld [vmem:[#allocation4 + $0x28] sm:$0xff]
    %v1084 = vld [vmem:[#allocation4 + $0x30] sm:$0xff]
    %v1085 = vld [vmem:[#allocation4 + $0x38] sm:$0xff]
    %v1086 = vld [vmem:[#allocation12] sm:$0xff]
    %v1087 = vld [vmem:[#allocation12 + $0x8] sm:$0xff]
    %v1088 = vld [vmem:[#allocation5] sm:$0xff]
    %v1089 = vld [vmem:[#allocation5 + $0x8] sm:$0xff]
    %v1090 = vld [vmem:[#allocation5 + $0x10] sm:$0xff]
    %v1091 = vld [vmem:[#allocation5 + $0x18] sm:$0xff]
    %v1092 = vld [vmem:[#allocation5 + $0x20] sm:$0xff]
    %v1093 = vld [vmem:[#allocation5 + $0x28] sm:$0xff]
    %v1094 = vld [vmem:[#allocation5 + $0x30] sm:$0xff]
    %v1095 = vld [vmem:[#allocation5 + $0x38] sm:$0xff]
    %s1096 = scalar_lea.vmem [#allocation12], 16
    %v1097 = vld [vmem:[%s1096] sm:$0xff]
    %v1098 = vld [vmem:[%s1096 + $0x8] sm:$0xff]
    %v1100 = vsel %vm235, %v1088, 0
    %v1103 = vsel %vm235, %v1089, 0
    %v1106 = vsel %vm235, %v1090, 0
    %v1109 = vsel %vm235, %v1091, 0
    %v1112 = vsel %vm235, %v1092, 0
    %v1115 = vsel %vm235, %v1093, 0
    %v1118 = vsel %vm235, %v1094, 0
    %v1121 = vsel %vm235, %v1095, 0
    %1123 = vmatpush.msra.mxu0 0.0
    %1124 = vmatpush.msra.mxu0 0.0
    %1125 = vmatpush.msra.mxu0 0.0
    %1126 = vmatpush.msra.mxu0 0.0
    %1127 = vmatpush.msra.mxu0 0.0
    %1128 = vmatpush.msra.mxu0 0.0
    %1129 = vmatpush.msra.mxu0 0.0
    %1130 = vmatpush.msra.mxu0 0.0
    %1131 = vmatpush.msra.mxu0 0.0
    %1132 = vmatpush.msra.mxu0 0.0
    %1133 = vmatpush.msra.mxu0 0.0
    %1134 = vmatpush.msra.mxu0 0.0
    %1135 = vmatpush.msra.mxu0 0.0
    %1136 = vmatpush.msra.mxu0 0.0
    %1137 = vmatpush.msra.mxu0 %v1098
    %1138 = vmatpush.msra.mxu0 %v1097
    %1139 = vmatmul.f32.gmra.mxu0 %v1100
    %v1140 = vpop.f32.mrf.mxu0
    %v1141 = vadd.f32 0.0, %v1140
    %1142 = vmatmul.f32.gmra.mxu0 %v1103
    %v1143 = vpop.f32.mrf.mxu0
    %v1144 = vadd.f32 0.0, %v1143
    %1145 = vmatmul.f32.gmra.mxu0 %v1106
    %v1146 = vpop.f32.mrf.mxu0
    %v1147 = vadd.f32 0.0, %v1146
    %1148 = vmatmul.f32.gmra.mxu0 %v1109
    %v1149 = vpop.f32.mrf.mxu0
    %v1150 = vadd.f32 0.0, %v1149
    %1151 = vmatmul.f32.gmra.mxu0 %v1112
    %v1152 = vpop.f32.mrf.mxu0
    %v1153 = vadd.f32 0.0, %v1152
    %1154 = vmatmul.f32.gmra.mxu0 %v1115
    %v1155 = vpop.f32.mrf.mxu0
    %v1156 = vadd.f32 0.0, %v1155
    %1157 = vmatmul.f32.gmra.mxu0 %v1118
    %v1158 = vpop.f32.mrf.mxu0
    %v1159 = vadd.f32 0.0, %v1158
    %1160 = vmatmul.f32.gmra.mxu0 %v1121
    %v1161 = vpop.f32.mrf.mxu0
    %v1162 = vadd.f32 0.0, %v1161
    %1163 = vdwg.mxu0
    %v1165 = vsel %vm235, %v1078, 0
    %v1168 = vsel %vm235, %v1079, 0
    %v1171 = vsel %vm235, %v1080, 0
    %v1174 = vsel %vm235, %v1081, 0
    %v1177 = vsel %vm235, %v1082, 0
    %v1180 = vsel %vm235, %v1083, 0
    %v1183 = vsel %vm235, %v1084, 0
    %v1186 = vsel %vm235, %v1085, 0
    %1188 = vmatpush.msra.mxu0 0.0
    %1189 = vmatpush.msra.mxu0 0.0
    %1190 = vmatpush.msra.mxu0 0.0
    %1191 = vmatpush.msra.mxu0 0.0
    %1192 = vmatpush.msra.mxu0 0.0
    %1193 = vmatpush.msra.mxu0 0.0
    %1194 = vmatpush.msra.mxu0 0.0
    %1195 = vmatpush.msra.mxu0 0.0
    %1196 = vmatpush.msra.mxu0 0.0
    %1197 = vmatpush.msra.mxu0 0.0
    %1198 = vmatpush.msra.mxu0 0.0
    %1199 = vmatpush.msra.mxu0 0.0
    %1200 = vmatpush.msra.mxu0 0.0
    %1201 = vmatpush.msra.mxu0 0.0
    %1202 = vmatpush.msra.mxu0 %v1087
    %1203 = vmatpush.msra.mxu0 %v1086
    %1204 = vmatmul.f32.gmra.mxu0 %v1165
    %v1205 = vpop.f32.mrf.mxu0
    %v1206 = vadd.f32 %v1141, %v1205
    %1207 = vmatmul.f32.gmra.mxu0 %v1168
    %v1208 = vpop.f32.mrf.mxu0
    %v1209 = vadd.f32 %v1144, %v1208
    %1210 = vmatmul.f32.gmra.mxu0 %v1171
    %v1211 = vpop.f32.mrf.mxu0
    %v1212 = vadd.f32 %v1147, %v1211
    %1213 = vmatmul.f32.gmra.mxu0 %v1174
    %v1214 = vpop.f32.mrf.mxu0
    %v1215 = vadd.f32 %v1150, %v1214
    %1216 = vmatmul.f32.gmra.mxu0 %v1177
    %v1217 = vpop.f32.mrf.mxu0
    %v1218 = vadd.f32 %v1153, %v1217
    %1219 = vmatmul.f32.gmra.mxu0 %v1180
    %v1220 = vpop.f32.mrf.mxu0
    %v1221 = vadd.f32 %v1156, %v1220
    %1222 = vmatmul.f32.gmra.mxu0 %v1183
    %v1223 = vpop.f32.mrf.mxu0
    %v1224 = vadd.f32 %v1159, %v1223
    %1225 = vmatmul.f32.gmra.mxu0 %v1186
    %v1226 = vpop.f32.mrf.mxu0
    %v1227 = vadd.f32 %v1162, %v1226
    %1228 = vdwg.mxu0
    %v1229 = vld [vmem:[%s4] sm:$0x1]
    %v1231 = vperm.slane %v1229, 0
    %v1233 = vadd.f32 %v1206, %v1231
    %v1234 = vadd.f32 %v1209, %v1231
    %v1235 = vadd.f32 %v1212, %v1231
    %v1236 = vadd.f32 %v1215, %v1231
    %v1237 = vadd.f32 %v1218, %v1231
    %v1238 = vadd.f32 %v1221, %v1231
    %v1239 = vadd.f32 %v1224, %v1231
    %v1240 = vadd.f32 %v1227, %v1231
    %1241 = vst.msk [vmem:[#allocation2] sm:$0xff] %vm180, %v1233
    %1242 = vst.msk [vmem:[#allocation2 + $0x8] sm:$0xff] %vm180, %v1234
    %1243 = vst.msk [vmem:[#allocation2 + $0x10] sm:$0xff] %vm180, %v1235
    %1244 = vst.msk [vmem:[#allocation2 + $0x18] sm:$0xff] %vm180, %v1236
    %1245 = vst.msk [vmem:[#allocation2 + $0x20] sm:$0xff] %vm180, %v1237
    %1246 = vst.msk [vmem:[#allocation2 + $0x28] sm:$0xff] %vm180, %v1238
    %1247 = vst.msk [vmem:[#allocation2 + $0x30] sm:$0xff] %vm180, %v1239
    %1248 = vst.msk [vmem:[#allocation2 + $0x38] sm:$0xff] %vm180, %v1240
    %1257 = vrot.lane.b32.xlu0 %v1233, 64
    %v1258 = vpop.permute.xlu0 %1257
    %1259 = vrot.lane.b32.xlu0 %v1234, 64
    %v1260 = vpop.permute.xlu0 %1259
    %1261 = vrot.lane.b32.xlu0 %v1235, 64
    %v1262 = vpop.permute.xlu0 %1261
    %1263 = vrot.lane.b32.xlu0 %v1236, 64
    %v1264 = vpop.permute.xlu0 %1263
    %1265 = vrot.lane.b32.xlu0 %v1237, 64
    %v1266 = vpop.permute.xlu0 %1265
    %1267 = vrot.lane.b32.xlu0 %v1238, 64
    %v1268 = vpop.permute.xlu0 %1267
    %1269 = vrot.lane.b32.xlu0 %v1239, 64
    %v1270 = vpop.permute.xlu0 %1269
    %1271 = vrot.lane.b32.xlu0 %v1240, 64
    %v1272 = vpop.permute.xlu0 %1271
    %1281 = vst.msk [vmem:[#allocation3] sm:$0xff] %vm180, %v1258
    %1282 = vst.msk [vmem:[#allocation3 + $0x8] sm:$0xff] %vm180, %v1260
    %1283 = vst.msk [vmem:[#allocation3 + $0x10] sm:$0xff] %vm180, %v1262
    %1284 = vst.msk [vmem:[#allocation3 + $0x18] sm:$0xff] %vm180, %v1264
    %1285 = vst.msk [vmem:[#allocation3 + $0x20] sm:$0xff] %vm180, %v1266
    %1286 = vst.msk [vmem:[#allocation3 + $0x28] sm:$0xff] %vm180, %v1268
    %1287 = vst.msk [vmem:[#allocation3 + $0x30] sm:$0xff] %vm180, %v1270
    %1288 = vst.msk [vmem:[#allocation3 + $0x38] sm:$0xff] %vm180, %v1272
    %s1289 = scalar_lea.vmem [#allocation13], 32
    %v1290 = vld [vmem:[%s1289] sm:$0xff]
    %v1291 = vld [vmem:[%s1289 + $0x8] sm:$0xff]
    %s1292 = scalar_lea.vmem [#allocation13], 48
    %v1293 = vld [vmem:[%s1292] sm:$0xff]
    %v1294 = vld [vmem:[%s1292 + $0x8] sm:$0xff]
    %v1295 = vld [vmem:[#allocation2] sm:$0xff]
    %1296 = vmatpush.msra.mxu0 0.0
    %1297 = vmatpush.msra.mxu0 0.0
    %1298 = vmatpush.msra.mxu0 0.0
    %1299 = vmatpush.msra.mxu0 0.0
    %1300 = vmatpush.msra.mxu0 0.0
    %1301 = vmatpush.msra.mxu0 0.0
    %1302 = vmatpush.msra.mxu0 0.0
    %1303 = vmatpush.msra.mxu0 0.0
    %1304 = vmatpush.msra.mxu0 0.0
    %1305 = vmatpush.msra.mxu0 0.0
    %1306 = vmatpush.msra.mxu0 0.0
    %1307 = vmatpush.msra.mxu0 0.0
    %1308 = vmatpush.msra.mxu0 0.0
    %1309 = vmatpush.msra.mxu0 0.0
    %1310 = vmatpush.msra.mxu0 %v1291
    %1311 = vmatpush.msra.mxu0 %v1290
    %1312 = vmatmul.f32.gmra.mxu0 %v237
    %v1313 = vpop.f32.mrf.mxu0
    %v1314 = vadd.f32 0.0, %v1313
    %1315 = vdwg.mxu0
    %v1316 = vadd.f32 %v1295, %v1314
    %v1317 = vld [vmem:[%s260] sm:$0xff]
    %1318 = vmatpush.msra.mxu0 0.0
    %1319 = vmatpush.msra.mxu0 0.0
    %1320 = vmatpush.msra.mxu0 0.0
    %1321 = vmatpush.msra.mxu0 0.0
    %1322 = vmatpush.msra.mxu0 0.0
    %1323 = vmatpush.msra.mxu0 0.0
    %1324 = vmatpush.msra.mxu0 0.0
    %1325 = vmatpush.msra.mxu0 0.0
    %1326 = vmatpush.msra.mxu0 0.0
    %1327 = vmatpush.msra.mxu0 0.0
    %1328 = vmatpush.msra.mxu0 0.0
    %1329 = vmatpush.msra.mxu0 0.0
    %1330 = vmatpush.msra.mxu0 0.0
    %1331 = vmatpush.msra.mxu0 0.0
    %1332 = vmatpush.msra.mxu0 %v1294
    %1333 = vmatpush.msra.mxu0 %v1293
    %1334 = vmatmul.f32.gmra.mxu0 %v237
    %v1335 = vpop.f32.mrf.mxu0
    %v1336 = vadd.f32 0.0, %v1335
    %1337 = vdwg.mxu0
    %v1338 = vadd.f32 %v1317, %v1336
    %v1339 = vmul.f32 %v1316, 0.5
    %v1340 = vtanh.pop %v1339
    %v1341 = vadd.f32 %v1340, 1.0
    %v1342 = vmul.f32 %v1341, 0.5
    %v1343 = vtanh.pop %v1316
    %v1344 = vmul.f32 %v1342, 0.0
    %1346 = vrot.lane.b32.xlu0 %v1343, 96
    %v1347 = vpop.permute.xlu0 %1346
    %v1349 = vmul.f32 %v1342, %v1347
    %1351 = vrot.lane.b32.xlu0 %v1349, 16
    %v1352 = vpop.permute.xlu0 %1351
    %v1354 = vadd.f32 %v1344, %v1352
    %v1355 = vtanh.pop %v1354
    %1357 = vrot.lane.b32.xlu0 %v1355, 32
    %v1358 = vpop.permute.xlu0 %1357
    %v1360 = vmul.f32 %v1342, %v1358
    %v1361 = vmul.f32 %v1338, 0.5
    %v1362 = vtanh.pop %v1361
    %v1363 = vadd.f32 %v1362, 1.0
    %v1364 = vmul.f32 %v1363, 0.5
    %v1365 = vtanh.pop %v1338
    %v1366 = vmul.f32 %v1364, 0.0
    %1368 = vrot.lane.b32.xlu0 %v1365, 96
    %v1369 = vpop.permute.xlu0 %1368
    %v1371 = vmul.f32 %v1364, %v1369
    %1373 = vrot.lane.b32.xlu0 %v1371, 16
    %v1374 = vpop.permute.xlu0 %1373
    %v1376 = vadd.f32 %v1366, %v1374
    %v1377 = vtanh.pop %v1376
    %1379 = vrot.lane.b32.xlu0 %v1377, 32
    %v1380 = vpop.permute.xlu0 %1379
    %v1382 = vmul.f32 %v1364, %v1380
    %1384 = vrot.lane.b32.xlu0 %v1360, 80
    %v1385 = vpop.permute.xlu0 %1384
    %1387 = vst.msk [vmem:[#allocation4] sm:$0xff] %vm235, %v1385
    %1389 = vrot.lane.b32.xlu0 %v1382, 80
    %v1390 = vpop.permute.xlu0 %1389
    %1392 = vst.msk [vmem:[%s336] sm:$0xff] %vm235, %v1390
    %v1393 = vld [vmem:[%s338] sm:$0xff]
    %v1394 = vsel %vm235, %v1385, 0
    %1396 = vmatpush.msra.mxu0 0.0
    %1397 = vmatpush.msra.mxu0 0.0
    %1398 = vmatpush.msra.mxu0 0.0
    %1399 = vmatpush.msra.mxu0 0.0
    %1400 = vmatpush.msra.mxu0 0.0
    %1401 = vmatpush.msra.mxu0 0.0
    %1402 = vmatpush.msra.mxu0 0.0
    %1403 = vmatpush.msra.mxu0 0.0
    %1404 = vmatpush.msra.mxu0 0.0
    %1405 = vmatpush.msra.mxu0 0.0
    %1406 = vmatpush.msra.mxu0 0.0
    %1407 = vmatpush.msra.mxu0 0.0
    %1408 = vmatpush.msra.mxu0 0.0
    %1409 = vmatpush.msra.mxu0 0.0
    %1410 = vmatpush.msra.mxu0 %v1291
    %1411 = vmatpush.msra.mxu0 %v1290
    %1412 = vmatmul.f32.gmra.mxu0 %v1394
    %v1413 = vpop.f32.mrf.mxu0
    %v1414 = vadd.f32 0.0, %v1413
    %1415 = vdwg.mxu0
    %v1416 = vadd.f32 %v1393, %v1414
    %v1417 = vld [vmem:[%s363] sm:$0xff]
    %v1418 = vsel %vm235, %v1390, 0
    %1420 = vmatpush.msra.mxu0 0.0
    %1421 = vmatpush.msra.mxu0 0.0
    %1422 = vmatpush.msra.mxu0 0.0
    %1423 = vmatpush.msra.mxu0 0.0
    %1424 = vmatpush.msra.mxu0 0.0
    %1425 = vmatpush.msra.mxu0 0.0
    %1426 = vmatpush.msra.mxu0 0.0
    %1427 = vmatpush.msra.mxu0 0.0
    %1428 = vmatpush.msra.mxu0 0.0
    %1429 = vmatpush.msra.mxu0 0.0
    %1430 = vmatpush.msra.mxu0 0.0
    %1431 = vmatpush.msra.mxu0 0.0
    %1432 = vmatpush.msra.mxu0 0.0
    %1433 = vmatpush.msra.mxu0 0.0
    %1434 = vmatpush.msra.mxu0 %v1294
    %1435 = vmatpush.msra.mxu0 %v1293
    %1436 = vmatmul.f32.gmra.mxu0 %v1418
    %v1437 = vpop.f32.mrf.mxu0
    %v1438 = vadd.f32 0.0, %v1437
    %1439 = vdwg.mxu0
    %v1440 = vadd.f32 %v1417, %v1438
    %v1441 = vmul.f32 %v1416, 0.5
    %v1442 = vtanh.pop %v1441
    %v1443 = vadd.f32 %v1442, 1.0
    %v1444 = vmul.f32 %v1443, 0.5
    %v1445 = vtanh.pop %v1416
    %v1446 = vmul.f32 %v1444, %v1354
    %1448 = vrot.lane.b32.xlu0 %v1445, 96
    %v1449 = vpop.permute.xlu0 %1448
    %v1451 = vmul.f32 %v1444, %v1449
    %1453 = vrot.lane.b32.xlu0 %v1451, 16
    %v1454 = vpop.permute.xlu0 %1453
    %v1456 = vadd.f32 %v1446, %v1454
    %v1457 = vtanh.pop %v1456
    %1459 = vrot.lane.b32.xlu0 %v1457, 32
    %v1460 = vpop.permute.xlu0 %1459
    %v1462 = vmul.f32 %v1444, %v1460
    %v1463 = vmul.f32 %v1440, 0.5
    %v1464 = vtanh.pop %v1463
    %v1465 = vadd.f32 %v1464, 1.0
    %v1466 = vmul.f32 %v1465, 0.5
    %v1467 = vtanh.pop %v1440
    %v1468 = vmul.f32 %v1466, %v1376
    %1470 = vrot.lane.b32.xlu0 %v1467, 96
    %v1471 = vpop.permute.xlu0 %1470
    %v1473 = vmul.f32 %v1466, %v1471
    %1475 = vrot.lane.b32.xlu0 %v1473, 16
    %v1476 = vpop.permute.xlu0 %1475
    %v1478 = vadd.f32 %v1468, %v1476
    %v1479 = vtanh.pop %v1478
    %1481 = vrot.lane.b32.xlu0 %v1479, 32
    %v1482 = vpop.permute.xlu0 %1481
    %v1484 = vmul.f32 %v1466, %v1482
    %1486 = vrot.lane.b32.xlu0 %v1462, 80
    %v1487 = vpop.permute.xlu0 %1486
    %1489 = vst.msk [vmem:[%s436] sm:$0xff] %vm235, %v1487
    %1491 = vrot.lane.b32.xlu0 %v1484, 80
    %v1492 = vpop.permute.xlu0 %1491
    %1494 = vst.msk [vmem:[%s442] sm:$0xff] %vm235, %v1492
    %v1495 = vld [vmem:[%s444] sm:$0xff]
    %v1496 = vsel %vm235, %v1487, 0
    %1498 = vmatpush.msra.mxu0 0.0
    %1499 = vmatpush.msra.mxu0 0.0
    %1500 = vmatpush.msra.mxu0 0.0
    %1501 = vmatpush.msra.mxu0 0.0
    %1502 = vmatpush.msra.mxu0 0.0
    %1503 = vmatpush.msra.mxu0 0.0
    %1504 = vmatpush.msra.mxu0 0.0
    %1505 = vmatpush.msra.mxu0 0.0
    %1506 = vmatpush.msra.mxu0 0.0
    %1507 = vmatpush.msra.mxu0 0.0
    %1508 = vmatpush.msra.mxu0 0.0
    %1509 = vmatpush.msra.mxu0 0.0
    %1510 = vmatpush.msra.mxu0 0.0
    %1511 = vmatpush.msra.mxu0 0.0
    %1512 = vmatpush.msra.mxu0 %v1291
    %1513 = vmatpush.msra.mxu0 %v1290
    %1514 = vmatmul.f32.gmra.mxu0 %v1496
    %v1515 = vpop.f32.mrf.mxu0
    %v1516 = vadd.f32 0.0, %v1515
    %1517 = vdwg.mxu0
    %v1518 = vadd.f32 %v1495, %v1516
    %v1519 = vld [vmem:[%s469] sm:$0xff]
    %v1520 = vsel %vm235, %v1492, 0
    %1522 = vmatpush.msra.mxu0 0.0
    %1523 = vmatpush.msra.mxu0 0.0
    %1524 = vmatpush.msra.mxu0 0.0
    %1525 = vmatpush.msra.mxu0 0.0
    %1526 = vmatpush.msra.mxu0 0.0
    %1527 = vmatpush.msra.mxu0 0.0
    %1528 = vmatpush.msra.mxu0 0.0
    %1529 = vmatpush.msra.mxu0 0.0
    %1530 = vmatpush.msra.mxu0 0.0
    %1531 = vmatpush.msra.mxu0 0.0
    %1532 = vmatpush.msra.mxu0 0.0
    %1533 = vmatpush.msra.mxu0 0.0
    %1534 = vmatpush.msra.mxu0 0.0
    %1535 = vmatpush.msra.mxu0 0.0
    %1536 = vmatpush.msra.mxu0 %v1294
    %1537 = vmatpush.msra.mxu0 %v1293
    %1538 = vmatmul.f32.gmra.mxu0 %v1520
    %v1539 = vpop.f32.mrf.mxu0
    %v1540 = vadd.f32 0.0, %v1539
    %1541 = vdwg.mxu0
    %v1542 = vadd.f32 %v1519, %v1540
    %v1543 = vmul.f32 %v1518, 0.5
    %v1544 = vtanh.pop %v1543
    %v1545 = vadd.f32 %v1544, 1.0
    %v1546 = vmul.f32 %v1545, 0.5
    %v1547 = vtanh.pop %v1518
    %v1548 = vmul.f32 %v1546, %v1456
    %1550 = vrot.lane.b32.xlu0 %v1547, 96
    %v1551 = vpop.permute.xlu0 %1550
    %v1553 = vmul.f32 %v1546, %v1551
    %1555 = vrot.lane.b32.xlu0 %v1553, 16
    %v1556 = vpop.permute.xlu0 %1555
    %v1558 = vadd.f32 %v1548, %v1556
    %v1559 = vtanh.pop %v1558
    %1561 = vrot.lane.b32.xlu0 %v1559, 32
    %v1562 = vpop.permute.xlu0 %1561
    %v1564 = vmul.f32 %v1546, %v1562
    %v1565 = vmul.f32 %v1542, 0.5
    %v1566 = vtanh.pop %v1565
    %v1567 = vadd.f32 %v1566, 1.0
    %v1568 = vmul.f32 %v1567, 0.5
    %v1569 = vtanh.pop %v1542
    %v1570 = vmul.f32 %v1568, %v1478
    %1572 = vrot.lane.b32.xlu0 %v1569, 96
    %v1573 = vpop.permute.xlu0 %1572
    %v1575 = vmul.f32 %v1568, %v1573
    %1577 = vrot.lane.b32.xlu0 %v1575, 16
    %v1578 = vpop.permute.xlu0 %1577
    %v1580 = vadd.f32 %v1570, %v1578
    %v1581 = vtanh.pop %v1580
    %1583 = vrot.lane.b32.xlu0 %v1581, 32
    %v1584 = vpop.permute.xlu0 %1583
    %v1586 = vmul.f32 %v1568, %v1584
    %1588 = vrot.lane.b32.xlu0 %v1564, 80
    %v1589 = vpop.permute.xlu0 %1588
    %1591 = vst.msk [vmem:[%s542] sm:$0xff] %vm235, %v1589
    %1593 = vrot.lane.b32.xlu0 %v1586, 80
    %v1594 = vpop.permute.xlu0 %1593
    %1596 = vst.msk [vmem:[%s548] sm:$0xff] %vm235, %v1594
    %v1597 = vld [vmem:[%s550] sm:$0xff]
    %v1598 = vsel %vm235, %v1589, 0
    %1600 = vmatpush.msra.mxu0 0.0
    %1601 = vmatpush.msra.mxu0 0.0
    %1602 = vmatpush.msra.mxu0 0.0
    %1603 = vmatpush.msra.mxu0 0.0
    %1604 = vmatpush.msra.mxu0 0.0
    %1605 = vmatpush.msra.mxu0 0.0
    %1606 = vmatpush.msra.mxu0 0.0
    %1607 = vmatpush.msra.mxu0 0.0
    %1608 = vmatpush.msra.mxu0 0.0
    %1609 = vmatpush.msra.mxu0 0.0
    %1610 = vmatpush.msra.mxu0 0.0
    %1611 = vmatpush.msra.mxu0 0.0
    %1612 = vmatpush.msra.mxu0 0.0
    %1613 = vmatpush.msra.mxu0 0.0
    %1614 = vmatpush.msra.mxu0 %v1291
    %1615 = vmatpush.msra.mxu0 %v1290
    %1616 = vmatmul.f32.gmra.mxu0 %v1598
    %v1617 = vpop.f32.mrf.mxu0
    %v1618 = vadd.f32 0.0, %v1617
    %1619 = vdwg.mxu0
    %v1620 = vadd.f32 %v1597, %v1618
    %v1621 = vld [vmem:[%s575] sm:$0xff]
    %v1622 = vsel %vm235, %v1594, 0
    %1624 = vmatpush.msra.mxu0 0.0
    %1625 = vmatpush.msra.mxu0 0.0
    %1626 = vmatpush.msra.mxu0 0.0
    %1627 = vmatpush.msra.mxu0 0.0
    %1628 = vmatpush.msra.mxu0 0.0
    %1629 = vmatpush.msra.mxu0 0.0
    %1630 = vmatpush.msra.mxu0 0.0
    %1631 = vmatpush.msra.mxu0 0.0
    %1632 = vmatpush.msra.mxu0 0.0
    %1633 = vmatpush.msra.mxu0 0.0
    %1634 = vmatpush.msra.mxu0 0.0
    %1635 = vmatpush.msra.mxu0 0.0
    %1636 = vmatpush.msra.mxu0 0.0
    %1637 = vmatpush.msra.mxu0 0.0
    %1638 = vmatpush.msra.mxu0 %v1294
    %1639 = vmatpush.msra.mxu0 %v1293
    %1640 = vmatmul.f32.gmra.mxu0 %v1622
    %v1641 = vpop.f32.mrf.mxu0
    %v1642 = vadd.f32 0.0, %v1641
    %1643 = vdwg.mxu0
    %v1644 = vadd.f32 %v1621, %v1642
    %v1645 = vmul.f32 %v1620, 0.5
    %v1646 = vtanh.pop %v1645
    %v1647 = vadd.f32 %v1646, 1.0
    %v1648 = vmul.f32 %v1647, 0.5
    %v1649 = vtanh.pop %v1620
    %v1650 = vmul.f32 %v1648, %v1558
    %1652 = vrot.lane.b32.xlu0 %v1649, 96
    %v1653 = vpop.permute.xlu0 %1652
    %v1655 = vmul.f32 %v1648, %v1653
    %1657 = vrot.lane.b32.xlu0 %v1655, 16
    %v1658 = vpop.permute.xlu0 %1657
    %v1660 = vadd.f32 %v1650, %v1658
    %v1661 = vtanh.pop %v1660
    %1663 = vrot.lane.b32.xlu0 %v1661, 32
    %v1664 = vpop.permute.xlu0 %1663
    %v1666 = vmul.f32 %v1648, %v1664
    %v1667 = vmul.f32 %v1644, 0.5
    %v1668 = vtanh.pop %v1667
    %v1669 = vadd.f32 %v1668, 1.0
    %v1670 = vmul.f32 %v1669, 0.5
    %v1671 = vtanh.pop %v1644
    %v1672 = vmul.f32 %v1670, %v1580
    %1674 = vrot.lane.b32.xlu0 %v1671, 96
    %v1675 = vpop.permute.xlu0 %1674
    %v1677 = vmul.f32 %v1670, %v1675
    %1679 = vrot.lane.b32.xlu0 %v1677, 16
    %v1680 = vpop.permute.xlu0 %1679
    %v1682 = vadd.f32 %v1672, %v1680
    %v1683 = vtanh.pop %v1682
    %1685 = vrot.lane.b32.xlu0 %v1683, 32
    %v1686 = vpop.permute.xlu0 %1685
    %v1688 = vmul.f32 %v1670, %v1686
    %1690 = vrot.lane.b32.xlu0 %v1666, 80
    %v1691 = vpop.permute.xlu0 %1690
    %1693 = vst.msk [vmem:[%s648] sm:$0xff] %vm235, %v1691
    %1695 = vrot.lane.b32.xlu0 %v1688, 80
    %v1696 = vpop.permute.xlu0 %1695
    %1698 = vst.msk [vmem:[%s654] sm:$0xff] %vm235, %v1696
    %v1699 = vld [vmem:[%s656] sm:$0xff]
    %v1700 = vsel %vm235, %v1691, 0
    %1702 = vmatpush.msra.mxu0 0.0
    %1703 = vmatpush.msra.mxu0 0.0
    %1704 = vmatpush.msra.mxu0 0.0
    %1705 = vmatpush.msra.mxu0 0.0
    %1706 = vmatpush.msra.mxu0 0.0
    %1707 = vmatpush.msra.mxu0 0.0
    %1708 = vmatpush.msra.mxu0 0.0
    %1709 = vmatpush.msra.mxu0 0.0
    %1710 = vmatpush.msra.mxu0 0.0
    %1711 = vmatpush.msra.mxu0 0.0
    %1712 = vmatpush.msra.mxu0 0.0
    %1713 = vmatpush.msra.mxu0 0.0
    %1714 = vmatpush.msra.mxu0 0.0
    %1715 = vmatpush.msra.mxu0 0.0
    %1716 = vmatpush.msra.mxu0 %v1291
    %1717 = vmatpush.msra.mxu0 %v1290
    %1718 = vmatmul.f32.gmra.mxu0 %v1700
    %v1719 = vpop.f32.mrf.mxu0
    %v1720 = vadd.f32 0.0, %v1719
    %1721 = vdwg.mxu0
    %v1722 = vadd.f32 %v1699, %v1720
    %v1723 = vld [vmem:[%s681] sm:$0xff]
    %v1724 = vsel %vm235, %v1696, 0
    %1726 = vmatpush.msra.mxu0 0.0
    %1727 = vmatpush.msra.mxu0 0.0
    %1728 = vmatpush.msra.mxu0 0.0
    %1729 = vmatpush.msra.mxu0 0.0
    %1730 = vmatpush.msra.mxu0 0.0
    %1731 = vmatpush.msra.mxu0 0.0
    %1732 = vmatpush.msra.mxu0 0.0
    %1733 = vmatpush.msra.mxu0 0.0
    %1734 = vmatpush.msra.mxu0 0.0
    %1735 = vmatpush.msra.mxu0 0.0
    %1736 = vmatpush.msra.mxu0 0.0
    %1737 = vmatpush.msra.mxu0 0.0
    %1738 = vmatpush.msra.mxu0 0.0
    %1739 = vmatpush.msra.mxu0 0.0
    %1740 = vmatpush.msra.mxu0 %v1294
    %1741 = vmatpush.msra.mxu0 %v1293
    %1742 = vmatmul.f32.gmra.mxu0 %v1724
    %v1743 = vpop.f32.mrf.mxu0
    %v1744 = vadd.f32 0.0, %v1743
    %1745 = vdwg.mxu0
    %v1746 = vadd.f32 %v1723, %v1744
    %v1747 = vmul.f32 %v1722, 0.5
    %v1748 = vtanh.pop %v1747
    %v1749 = vadd.f32 %v1748, 1.0
    %v1750 = vmul.f32 %v1749, 0.5
    %v1751 = vtanh.pop %v1722
    %v1752 = vmul.f32 %v1750, %v1660
    %1754 = vrot.lane.b32.xlu0 %v1751, 96
    %v1755 = vpop.permute.xlu0 %1754
    %v1757 = vmul.f32 %v1750, %v1755
    %1759 = vrot.lane.b32.xlu0 %v1757, 16
    %v1760 = vpop.permute.xlu0 %1759
    %v1762 = vadd.f32 %v1752, %v1760
    %v1763 = vtanh.pop %v1762
    %1765 = vrot.lane.b32.xlu0 %v1763, 32
    %v1766 = vpop.permute.xlu0 %1765
    %v1768 = vmul.f32 %v1750, %v1766
    %v1769 = vmul.f32 %v1746, 0.5
    %v1770 = vtanh.pop %v1769
    %v1771 = vadd.f32 %v1770, 1.0
    %v1772 = vmul.f32 %v1771, 0.5
    %v1773 = vtanh.pop %v1746
    %v1774 = vmul.f32 %v1772, %v1682
    %1776 = vrot.lane.b32.xlu0 %v1773, 96
    %v1777 = vpop.permute.xlu0 %1776
    %v1779 = vmul.f32 %v1772, %v1777
    %1781 = vrot.lane.b32.xlu0 %v1779, 16
    %v1782 = vpop.permute.xlu0 %1781
    %v1784 = vadd.f32 %v1774, %v1782
    %v1785 = vtanh.pop %v1784
    %1787 = vrot.lane.b32.xlu0 %v1785, 32
    %v1788 = vpop.permute.xlu0 %1787
    %v1790 = vmul.f32 %v1772, %v1788
    %1792 = vrot.lane.b32.xlu0 %v1768, 80
    %v1793 = vpop.permute.xlu0 %1792
    %1795 = vst.msk [vmem:[%s754] sm:$0xff] %vm235, %v1793
    %1797 = vrot.lane.b32.xlu0 %v1790, 80
    %v1798 = vpop.permute.xlu0 %1797
    %1800 = vst.msk [vmem:[%s760] sm:$0xff] %vm235, %v1798
    %v1801 = vld [vmem:[%s762] sm:$0xff]
    %v1802 = vsel %vm235, %v1793, 0
    %1804 = vmatpush.msra.mxu0 0.0
    %1805 = vmatpush.msra.mxu0 0.0
    %1806 = vmatpush.msra.mxu0 0.0
    %1807 = vmatpush.msra.mxu0 0.0
    %1808 = vmatpush.msra.mxu0 0.0
    %1809 = vmatpush.msra.mxu0 0.0
    %1810 = vmatpush.msra.mxu0 0.0
    %1811 = vmatpush.msra.mxu0 0.0
    %1812 = vmatpush.msra.mxu0 0.0
    %1813 = vmatpush.msra.mxu0 0.0
    %1814 = vmatpush.msra.mxu0 0.0
    %1815 = vmatpush.msra.mxu0 0.0
    %1816 = vmatpush.msra.mxu0 0.0
    %1817 = vmatpush.msra.mxu0 0.0
    %1818 = vmatpush.msra.mxu0 %v1291
    %1819 = vmatpush.msra.mxu0 %v1290
    %1820 = vmatmul.f32.gmra.mxu0 %v1802
    %v1821 = vpop.f32.mrf.mxu0
    %v1822 = vadd.f32 0.0, %v1821
    %1823 = vdwg.mxu0
    %v1824 = vadd.f32 %v1801, %v1822
    %v1825 = vld [vmem:[%s787] sm:$0xff]
    %v1826 = vsel %vm235, %v1798, 0
    %1828 = vmatpush.msra.mxu0 0.0
    %1829 = vmatpush.msra.mxu0 0.0
    %1830 = vmatpush.msra.mxu0 0.0
    %1831 = vmatpush.msra.mxu0 0.0
    %1832 = vmatpush.msra.mxu0 0.0
    %1833 = vmatpush.msra.mxu0 0.0
    %1834 = vmatpush.msra.mxu0 0.0
    %1835 = vmatpush.msra.mxu0 0.0
    %1836 = vmatpush.msra.mxu0 0.0
    %1837 = vmatpush.msra.mxu0 0.0
    %1838 = vmatpush.msra.mxu0 0.0
    %1839 = vmatpush.msra.mxu0 0.0
    %1840 = vmatpush.msra.mxu0 0.0
    %1841 = vmatpush.msra.mxu0 0.0
    %1842 = vmatpush.msra.mxu0 %v1294
    %1843 = vmatpush.msra.mxu0 %v1293
    %1844 = vmatmul.f32.gmra.mxu0 %v1826
    %v1845 = vpop.f32.mrf.mxu0
    %v1846 = vadd.f32 0.0, %v1845
    %1847 = vdwg.mxu0
    %v1848 = vadd.f32 %v1825, %v1846
    %v1849 = vmul.f32 %v1824, 0.5
    %v1850 = vtanh.pop %v1849
    %v1851 = vadd.f32 %v1850, 1.0
    %v1852 = vmul.f32 %v1851, 0.5
    %v1853 = vtanh.pop %v1824
    %v1854 = vmul.f32 %v1852, %v1762
    %1856 = vrot.lane.b32.xlu0 %v1853, 96
    %v1857 = vpop.permute.xlu0 %1856
    %v1859 = vmul.f32 %v1852, %v1857
    %1861 = vrot.lane.b32.xlu0 %v1859, 16
    %v1862 = vpop.permute.xlu0 %1861
    %v1864 = vadd.f32 %v1854, %v1862
    %v1865 = vtanh.pop %v1864
    %1867 = vrot.lane.b32.xlu0 %v1865, 32
    %v1868 = vpop.permute.xlu0 %1867
    %v1870 = vmul.f32 %v1852, %v1868
    %v1871 = vmul.f32 %v1848, 0.5
    %v1872 = vtanh.pop %v1871
    %v1873 = vadd.f32 %v1872, 1.0
    %v1874 = vmul.f32 %v1873, 0.5
    %v1875 = vtanh.pop %v1848
    %v1876 = vmul.f32 %v1874, %v1784
    %1878 = vrot.lane.b32.xlu0 %v1875, 96
    %v1879 = vpop.permute.xlu0 %1878
    %v1881 = vmul.f32 %v1874, %v1879
    %1883 = vrot.lane.b32.xlu0 %v1881, 16
    %v1884 = vpop.permute.xlu0 %1883
    %v1886 = vadd.f32 %v1876, %v1884
    %v1887 = vtanh.pop %v1886
    %1889 = vrot.lane.b32.xlu0 %v1887, 32
    %v1890 = vpop.permute.xlu0 %1889
    %v1892 = vmul.f32 %v1874, %v1890
    %1894 = vrot.lane.b32.xlu0 %v1870, 80
    %v1895 = vpop.permute.xlu0 %1894
    %1897 = vst.msk [vmem:[%s860] sm:$0xff] %vm235, %v1895
    %1899 = vrot.lane.b32.xlu0 %v1892, 80
    %v1900 = vpop.permute.xlu0 %1899
    %1902 = vst.msk [vmem:[%s866] sm:$0xff] %vm235, %v1900
    %v1903 = vld [vmem:[%s868] sm:$0xff]
    %v1904 = vsel %vm235, %v1895, 0
    %1906 = vmatpush.msra.mxu0 0.0
    %1907 = vmatpush.msra.mxu0 0.0
    %1908 = vmatpush.msra.mxu0 0.0
    %1909 = vmatpush.msra.mxu0 0.0
    %1910 = vmatpush.msra.mxu0 0.0
    %1911 = vmatpush.msra.mxu0 0.0
    %1912 = vmatpush.msra.mxu0 0.0
    %1913 = vmatpush.msra.mxu0 0.0
    %1914 = vmatpush.msra.mxu0 0.0
    %1915 = vmatpush.msra.mxu0 0.0
    %1916 = vmatpush.msra.mxu0 0.0
    %1917 = vmatpush.msra.mxu0 0.0
    %1918 = vmatpush.msra.mxu0 0.0
    %1919 = vmatpush.msra.mxu0 0.0
    %1920 = vmatpush.msra.mxu0 %v1291
    %1921 = vmatpush.msra.mxu0 %v1290
    %1922 = vmatmul.f32.gmra.mxu0 %v1904
    %v1923 = vpop.f32.mrf.mxu0
    %v1924 = vadd.f32 0.0, %v1923
    %1925 = vdwg.mxu0
    %v1926 = vadd.f32 %v1903, %v1924
    %v1927 = vld [vmem:[%s893] sm:$0xff]
    %v1928 = vsel %vm235, %v1900, 0
    %1930 = vmatpush.msra.mxu0 0.0
    %1931 = vmatpush.msra.mxu0 0.0
    %1932 = vmatpush.msra.mxu0 0.0
    %1933 = vmatpush.msra.mxu0 0.0
    %1934 = vmatpush.msra.mxu0 0.0
    %1935 = vmatpush.msra.mxu0 0.0
    %1936 = vmatpush.msra.mxu0 0.0
    %1937 = vmatpush.msra.mxu0 0.0
    %1938 = vmatpush.msra.mxu0 0.0
    %1939 = vmatpush.msra.mxu0 0.0
    %1940 = vmatpush.msra.mxu0 0.0
    %1941 = vmatpush.msra.mxu0 0.0
    %1942 = vmatpush.msra.mxu0 0.0
    %1943 = vmatpush.msra.mxu0 0.0
    %1944 = vmatpush.msra.mxu0 %v1294
    %1945 = vmatpush.msra.mxu0 %v1293
    %1946 = vmatmul.f32.gmra.mxu0 %v1928
    %v1947 = vpop.f32.mrf.mxu0
    %v1948 = vadd.f32 0.0, %v1947
    %1949 = vdwg.mxu0
    %v1950 = vadd.f32 %v1927, %v1948
    %v1951 = vmul.f32 %v1926, 0.5
    %v1952 = vtanh.pop %v1951
    %v1953 = vadd.f32 %v1952, 1.0
    %v1954 = vmul.f32 %v1953, 0.5
    %v1955 = vtanh.pop %v1926
    %v1956 = vmul.f32 %v1954, %v1864
    %1958 = vrot.lane.b32.xlu0 %v1955, 96
    %v1959 = vpop.permute.xlu0 %1958
    %v1961 = vmul.f32 %v1954, %v1959
    %1963 = vrot.lane.b32.xlu0 %v1961, 16
    %v1964 = vpop.permute.xlu0 %1963
    %v1966 = vadd.f32 %v1956, %v1964
    %v1967 = vtanh.pop %v1966
    %1969 = vrot.lane.b32.xlu0 %v1967, 32
    %v1970 = vpop.permute.xlu0 %1969
    %v1972 = vmul.f32 %v1954, %v1970
    %v1973 = vmul.f32 %v1950, 0.5
    %v1974 = vtanh.pop %v1973
    %v1975 = vadd.f32 %v1974, 1.0
    %v1976 = vmul.f32 %v1975, 0.5
    %v1977 = vtanh.pop %v1950
    %v1978 = vmul.f32 %v1976, %v1886
    %1980 = vrot.lane.b32.xlu0 %v1977, 96
    %v1981 = vpop.permute.xlu0 %1980
    %v1983 = vmul.f32 %v1976, %v1981
    %1985 = vrot.lane.b32.xlu0 %v1983, 16
    %v1986 = vpop.permute.xlu0 %1985
    %v1988 = vadd.f32 %v1978, %v1986
    %v1989 = vtanh.pop %v1988
    %1991 = vrot.lane.b32.xlu0 %v1989, 32
    %v1992 = vpop.permute.xlu0 %1991
    %v1994 = vmul.f32 %v1976, %v1992
    %1996 = vrot.lane.b32.xlu0 %v1972, 80
    %v1997 = vpop.permute.xlu0 %1996
    %1999 = vst.msk [vmem:[%s966] sm:$0xff] %vm235, %v1997
    %2001 = vrot.lane.b32.xlu0 %v1994, 80
    %v2002 = vpop.permute.xlu0 %2001
    %2004 = vst.msk [vmem:[%s972] sm:$0xff] %vm235, %v2002
    %v2005 = vld [vmem:[%s974] sm:$0xff]
    %v2006 = vsel %vm235, %v1997, 0
    %2008 = vmatpush.msra.mxu0 0.0
    %2009 = vmatpush.msra.mxu0 0.0
    %2010 = vmatpush.msra.mxu0 0.0
    %2011 = vmatpush.msra.mxu0 0.0
    %2012 = vmatpush.msra.mxu0 0.0
    %2013 = vmatpush.msra.mxu0 0.0
    %2014 = vmatpush.msra.mxu0 0.0
    %2015 = vmatpush.msra.mxu0 0.0
    %2016 = vmatpush.msra.mxu0 0.0
    %2017 = vmatpush.msra.mxu0 0.0
    %2018 = vmatpush.msra.mxu0 0.0
    %2019 = vmatpush.msra.mxu0 0.0
    %2020 = vmatpush.msra.mxu0 0.0
    %2021 = vmatpush.msra.mxu0 0.0
    %2022 = vmatpush.msra.mxu0 %v1291
    %2023 = vmatpush.msra.mxu0 %v1290
    %2024 = vmatmul.f32.gmra.mxu0 %v2006
    %v2025 = vpop.f32.mrf.mxu0
    %v2026 = vadd.f32 0.0, %v2025
    %2027 = vdwg.mxu0
    %v2028 = vadd.f32 %v2005, %v2026
    %v2029 = vld [vmem:[#allocation3] sm:$0xff]
    %v2030 = vsel %vm235, %v2002, 0
    %2032 = vmatpush.msra.mxu0 0.0
    %2033 = vmatpush.msra.mxu0 0.0
    %2034 = vmatpush.msra.mxu0 0.0
    %2035 = vmatpush.msra.mxu0 0.0
    %2036 = vmatpush.msra.mxu0 0.0
    %2037 = vmatpush.msra.mxu0 0.0
    %2038 = vmatpush.msra.mxu0 0.0
    %2039 = vmatpush.msra.mxu0 0.0
    %2040 = vmatpush.msra.mxu0 0.0
    %2041 = vmatpush.msra.mxu0 0.0
    %2042 = vmatpush.msra.mxu0 0.0
    %2043 = vmatpush.msra.mxu0 0.0
    %2044 = vmatpush.msra.mxu0 0.0
    %2045 = vmatpush.msra.mxu0 0.0
    %2046 = vmatpush.msra.mxu0 %v1294
    %2047 = vmatpush.msra.mxu0 %v1293
    %2048 = vmatmul.f32.gmra.mxu0 %v2030
    %v2049 = vpop.f32.mrf.mxu0
    %v2050 = vadd.f32 0.0, %v2049
    %2051 = vdwg.mxu0
    %v2052 = vadd.f32 %v2029, %v2050
    %v2053 = vmul.f32 %v2028, 0.5
    %v2054 = vtanh.pop %v2053
    %v2055 = vadd.f32 %v2054, 1.0
    %v2056 = vmul.f32 %v2055, 0.5
    %v2057 = vtanh.pop %v2028
    %v2058 = vmul.f32 %v2056, %v1966
    %2060 = vrot.lane.b32.xlu0 %v2057, 96
    %v2061 = vpop.permute.xlu0 %2060
    %v2063 = vmul.f32 %v2056, %v2061
    %2065 = vrot.lane.b32.xlu0 %v2063, 16
    %v2066 = vpop.permute.xlu0 %2065
    %v2068 = vadd.f32 %v2058, %v2066
    %v2069 = vtanh.pop %v2068
    %2071 = vrot.lane.b32.xlu0 %v2069, 32
    %v2072 = vpop.permute.xlu0 %2071
    %v2074 = vmul.f32 %v2056, %v2072
    %v2075 = vmul.f32 %v2052, 0.5
    %v2076 = vtanh.pop %v2075
    %v2077 = vadd.f32 %v2076, 1.0
    %v2078 = vmul.f32 %v2077, 0.5
    %v2079 = vtanh.pop %v2052
    %v2080 = vmul.f32 %v2078, %v1988
    %2082 = vrot.lane.b32.xlu0 %v2079, 96
    %v2083 = vpop.permute.xlu0 %2082
    %v2085 = vmul.f32 %v2078, %v2083
    %2087 = vrot.lane.b32.xlu0 %v2085, 16
    %v2088 = vpop.permute.xlu0 %2087
    %v2090 = vadd.f32 %v2080, %v2088
    %v2091 = vtanh.pop %v2090
    %2093 = vrot.lane.b32.xlu0 %v2091, 32
    %v2094 = vpop.permute.xlu0 %2093
    %v2096 = vmul.f32 %v2078, %v2094
    %2098 = vrot.lane.b32.xlu0 %v2074, 80
    %v2099 = vpop.permute.xlu0 %2098
    %2101 = vst.msk [vmem:[%s1071] sm:$0xff] %vm235, %v2099
    %2103 = vrot.lane.b32.xlu0 %v2096, 80
    %v2104 = vpop.permute.xlu0 %2103
    %2106 = vst.msk [vmem:[#allocation5] sm:$0xff] %vm235, %v2104
    %v2107 = vld [vmem:[#allocation4] sm:$0xff]
    %v2108 = vld [vmem:[#allocation4 + $0x8] sm:$0xff]
    %v2109 = vld [vmem:[#allocation4 + $0x10] sm:$0xff]
    %v2110 = vld [vmem:[#allocation4 + $0x18] sm:$0xff]
    %v2111 = vld [vmem:[#allocation4 + $0x20] sm:$0xff]
    %v2112 = vld [vmem:[#allocation4 + $0x28] sm:$0xff]
    %v2113 = vld [vmem:[#allocation4 + $0x30] sm:$0xff]
    %v2114 = vld [vmem:[#allocation4 + $0x38] sm:$0xff]
    %v2115 = vld [vmem:[%s6] sm:$0x1]
    %v2117 = vperm.slane %v2115, 0
    %v2119 = vmul.f32 %v2107, %v2117
    %v2120 = vmul.f32 %v2108, %v2117
    %v2121 = vmul.f32 %v2109, %v2117
    %v2122 = vmul.f32 %v2110, %v2117
    %v2123 = vmul.f32 %v2111, %v2117
    %v2124 = vmul.f32 %v2112, %v2117
    %v2125 = vmul.f32 %v2113, %v2117
    %v2126 = vmul.f32 %v2114, %v2117
    %v2127 = vsel %vm235, %v2119, 0.0
    %2128 = vadd.xlane.f32.xlu0 %v2127
    %v2129 = vpop.xlane.xlu0 %2128
    %v2130 = vsel %vm235, %v2120, 0.0
    %2131 = vadd.xlane.f32.xlu0 %v2130
    %v2132 = vpop.xlane.xlu0 %2131
    %v2133 = vsel %vm235, %v2121, 0.0
    %2134 = vadd.xlane.f32.xlu0 %v2133
    %v2135 = vpop.xlane.xlu0 %2134
    %v2136 = vsel %vm235, %v2122, 0.0
    %2137 = vadd.xlane.f32.xlu0 %v2136
    %v2138 = vpop.xlane.xlu0 %2137
    %v2139 = vsel %vm235, %v2123, 0.0
    %2140 = vadd.xlane.f32.xlu0 %v2139
    %v2141 = vpop.xlane.xlu0 %2140
    %v2142 = vsel %vm235, %v2124, 0.0
    %2143 = vadd.xlane.f32.xlu0 %v2142
    %v2144 = vpop.xlane.xlu0 %2143
    %v2145 = vsel %vm235, %v2125, 0.0
    %2146 = vadd.xlane.f32.xlu0 %v2145
    %v2147 = vpop.xlane.xlu0 %2146
    %v2148 = vsel %vm235, %v2126, 0.0
    %2149 = vadd.xlane.f32.xlu0 %v2148
    %v2150 = vpop.xlane.xlu0 %2149
    %v2151 = vld [vmem:[#allocation5] sm:$0xff]
    %v2152 = vld [vmem:[#allocation5 + $0x8] sm:$0xff]
    %v2153 = vld [vmem:[#allocation5 + $0x10] sm:$0xff]
    %v2154 = vld [vmem:[#allocation5 + $0x18] sm:$0xff]
    %v2155 = vld [vmem:[#allocation5 + $0x20] sm:$0xff]
    %v2156 = vld [vmem:[#allocation5 + $0x28] sm:$0xff]
    %v2157 = vld [vmem:[#allocation5 + $0x30] sm:$0xff]
    %v2158 = vld [vmem:[#allocation5 + $0x38] sm:$0xff]
    %v2159 = vld [vmem:[%s7] sm:$0x1]
    %v2161 = vperm.slane %v2159, 0
    %v2163 = vmul.f32 %v2151, %v2161
    %v2164 = vmul.f32 %v2152, %v2161
    %v2165 = vmul.f32 %v2153, %v2161
    %v2166 = vmul.f32 %v2154, %v2161
    %v2167 = vmul.f32 %v2155, %v2161
    %v2168 = vmul.f32 %v2156, %v2161
    %v2169 = vmul.f32 %v2157, %v2161
    %v2170 = vmul.f32 %v2158, %v2161
    %v2171 = vsel %vm235, %v2163, 0.0
    %2172 = vadd.xlane.f32.xlu0 %v2171
    %v2173 = vpop.xlane.xlu0 %2172
    %v2174 = vsel %vm235, %v2164, 0.0
    %2175 = vadd.xlane.f32.xlu0 %v2174
    %v2176 = vpop.xlane.xlu0 %2175
    %v2177 = vsel %vm235, %v2165, 0.0
    %2178 = vadd.xlane.f32.xlu0 %v2177
    %v2179 = vpop.xlane.xlu0 %2178
    %v2180 = vsel %vm235, %v2166, 0.0
    %2181 = vadd.xlane.f32.xlu0 %v2180
    %v2182 = vpop.xlane.xlu0 %2181
    %v2183 = vsel %vm235, %v2167, 0.0
    %2184 = vadd.xlane.f32.xlu0 %v2183
    %v2185 = vpop.xlane.xlu0 %2184
    %v2186 = vsel %vm235, %v2168, 0.0
    %2187 = vadd.xlane.f32.xlu0 %v2186
    %v2188 = vpop.xlane.xlu0 %2187
    %v2189 = vsel %vm235, %v2169, 0.0
    %2190 = vadd.xlane.f32.xlu0 %v2189
    %v2191 = vpop.xlane.xlu0 %2190
    %v2192 = vsel %vm235, %v2170, 0.0
    %2193 = vadd.xlane.f32.xlu0 %v2192
    %v2194 = vpop.xlane.xlu0 %2193
    %v2195 = vadd.f32 %v2129, %v2173
    %v2196 = vadd.f32 %v2132, %v2176
    %v2197 = vadd.f32 %v2135, %v2179
    %v2198 = vadd.f32 %v2138, %v2182
    %v2199 = vadd.f32 %v2141, %v2185
    %v2200 = vadd.f32 %v2144, %v2188
    %v2201 = vadd.f32 %v2147, %v2191
    %v2202 = vadd.f32 %v2150, %v2194
    %v2203 = vld [vmem:[#allocation6] sm:$0x1]
    %v2205 = vperm.slane %v2203, 0
    %2206 = vset.pattern.permute.xlu0 0
    %2207 = vperm.xlu0 %2206, %v2205
    %v2208 = vpop.permute.xlu0 %2207
    %v2210 = vadd.f32 %v2195, %v2208
    %v2211 = vadd.f32 %v2196, %v2208
    %v2212 = vadd.f32 %v2197, %v2208
    %v2213 = vadd.f32 %v2198, %v2208
    %v2214 = vadd.f32 %v2199, %v2208
    %v2215 = vadd.f32 %v2200, %v2208
    %v2216 = vadd.f32 %v2201, %v2208
    %v2217 = vadd.f32 %v2202, %v2208
    %v2218 = vmax.f32 %v2210, 0.0
    %v2219 = vmax.f32 %v2211, 0.0
    %v2220 = vmax.f32 %v2212, 0.0
    %v2221 = vmax.f32 %v2213, 0.0
    %v2222 = vmax.f32 %v2214, 0.0
    %v2223 = vmax.f32 %v2215, 0.0
    %v2224 = vmax.f32 %v2216, 0.0
    %v2225 = vmax.f32 %v2217, 0.0
    %v2226 = vand.u32 2147483647, %v2210
    %v2227 = vand.u32 2147483647, %v2211
    %v2228 = vand.u32 2147483647, %v2212
    %v2229 = vand.u32 2147483647, %v2213
    %v2230 = vand.u32 2147483647, %v2214
    %v2231 = vand.u32 2147483647, %v2215
    %v2232 = vand.u32 2147483647, %v2216
    %v2233 = vand.u32 2147483647, %v2217
    %v2234 = vsub.f32 0.0, %v2226
    %v2235 = vsub.f32 0.0, %v2227
    %v2236 = vsub.f32 0.0, %v2228
    %v2237 = vsub.f32 0.0, %v2229
    %v2238 = vsub.f32 0.0, %v2230
    %v2239 = vsub.f32 0.0, %v2231
    %v2240 = vsub.f32 0.0, %v2232
    %v2241 = vsub.f32 0.0, %v2233
    %v2242 = vmul.f32 %v2234, 1.442695
    %v2243 = vpow.pop %v2242
    %v2244 = vmul.f32 %v2235, 1.442695
    %v2245 = vpow.pop %v2244
    %v2246 = vmul.f32 %v2236, 1.442695
    %v2247 = vpow.pop %v2246
    %v2248 = vmul.f32 %v2237, 1.442695
    %v2249 = vpow.pop %v2248
    %v2250 = vmul.f32 %v2238, 1.442695
    %v2251 = vpow.pop %v2250
    %v2252 = vmul.f32 %v2239, 1.442695
    %v2253 = vpow.pop %v2252
    %v2254 = vmul.f32 %v2240, 1.442695
    %v2255 = vpow.pop %v2254
    %v2256 = vmul.f32 %v2241, 1.442695
    %v2257 = vpow.pop %v2256
    %v2258 = vadd.f32 %v2243, 1.0
    %v2259 = vadd.f32 %v2245, 1.0
    %v2260 = vadd.f32 %v2247, 1.0
    %v2261 = vadd.f32 %v2249, 1.0
    %v2262 = vadd.f32 %v2251, 1.0
    %v2263 = vadd.f32 %v2253, 1.0
    %v2264 = vadd.f32 %v2255, 1.0
    %v2265 = vadd.f32 %v2257, 1.0
    %v2266 = vlog2.pop %v2258
    %v2267 = vmul.f32 %v2266, 0.6931472
    %v2268 = vlog2.pop %v2259
    %v2269 = vmul.f32 %v2268, 0.6931472
    %v2270 = vlog2.pop %v2260
    %v2271 = vmul.f32 %v2270, 0.6931472
    %v2272 = vlog2.pop %v2261
    %v2273 = vmul.f32 %v2272, 0.6931472
    %v2274 = vlog2.pop %v2262
    %v2275 = vmul.f32 %v2274, 0.6931472
    %v2276 = vlog2.pop %v2263
    %v2277 = vmul.f32 %v2276, 0.6931472
    %v2278 = vlog2.pop %v2264
    %v2279 = vmul.f32 %v2278, 0.6931472
    %v2280 = vlog2.pop %v2265
    %v2281 = vmul.f32 %v2280, 0.6931472
    %v2282 = vadd.f32 %v2218, %v2267
    %v2283 = vadd.f32 %v2219, %v2269
    %v2284 = vadd.f32 %v2220, %v2271
    %v2285 = vadd.f32 %v2221, %v2273
    %v2286 = vadd.f32 %v2222, %v2275
    %v2287 = vadd.f32 %v2223, %v2277
    %v2288 = vadd.f32 %v2224, %v2279
    %v2289 = vadd.f32 %v2225, %v2281
    %v2298 = vlaneseq
    %v2299 = vand.u32 %v2298, 127
    %v2300 = vperm.slane %v2282, %v2299
    %v2301 = vperm.slane %v2283, %v2299
    %v2302 = vperm.slane %v2284, %v2299
    %v2303 = vperm.slane %v2285, %v2299
    %v2304 = vperm.slane %v2286, %v2299
    %v2305 = vperm.slane %v2287, %v2299
    %v2306 = vperm.slane %v2288, %v2299
    %v2307 = vperm.slane %v2289, %v2299
    %vm2308 = vcmask 1041409
    %v2309 = vsel %vm2308, %v2301, %v2300
    %vm2310 = vcmask 1042434
    %v2311 = vsel %vm2310, %v2302, %v2309
    %vm2312 = vcmask 1043459
    %v2313 = vsel %vm2312, %v2303, %v2311
    %vm2314 = vcmask 1044484
    %v2315 = vsel %vm2314, %v2304, %v2313
    %vm2316 = vcmask 1045509
    %v2317 = vsel %vm2316, %v2305, %v2315
    %vm2318 = vcmask 1046534
    %v2319 = vsel %vm2318, %v2306, %v2317
    %vm2320 = vcmask 1047559
    %v2321 = vsel %vm2320, %v2307, %v2319
    %vm2323 = vcmask 64512
    %2324 = vst.msk [vmem:[#allocation15] sm:$0xff] %vm2323, %v2321
    // Predicated region
    $region54: #{tpu_custom_call.1} parent=1 // pred_check
      _
    $region55: #{tpu_custom_call.1} parent=1 // pred_check_branch
      %2326 = sbr.rel (0) target = $region57
    $region56: #{tpu_custom_call.1} parent=1 // pred_region
      %2328 = vsyncadd [#allocation9], 0
      %s2330 = sshll.u32 [#allocation15], 4
      %s2331 = int_to_ptr.vmem [resolvable:$true] %s2330
      %s2332 = sshll.u32 %s9, 4
      %s2333 = int_to_ptr.hbm [resolvable:$true] %s2332
      %2335 = dma.vmem_to_hbm [thread:$0]  %s2331, 128, %s2333, [#allocation9]
    $region57: #{tpu_custom_call.1} parent=1 // pred_fallthru
      _
    // Predicated region
    $region58: #{tpu_custom_call.1} parent=1 // pred_check
      _
    $region59: #{tpu_custom_call.1} parent=1 // pred_check_branch
      %2337 = sbr.rel (0) target = $region61
    $region60: #{tpu_custom_call.1} parent=1 // pred_region
      %2339 = dma.done [#allocation9], 128
    $region61: #{tpu_custom_call.1} parent=1 // pred_fallthru
      _
    %2340 = vsyncpa [#allocation8], 1
    %2341 = vsyncpa [#allocation11], 1
    %2342 = vsyncpa [#allocation14], 1
    %2343 = vsyncpa [#allocation9], 1

</llo_original>
